<compile_context>
chip_gen: v6e
topology: v6e:2x2x1
jax: 0.10.0
libtpu: 0.0.40
codegen_flags: <defaults>
</compile_context>

<pallas_src>
import functools

import numpy as np
import jax
import jax.numpy as jnp
from jax import lax
from jax.experimental import pallas as pl
from jax.experimental.pallas import tpu as pltpu


# ----------------------------- Pallas kernel -------------------------------

def _predictor_kernel(x_ref,                      # (TB, L)       input tile, f32
                      m1_ref, m2_ref, m3_ref,     # dense conv matrices, bf16
                      w1_ref, w2_ref,             # fc weights (in, out), bf16
                      b1_ref, b2_ref, b3_ref,     # tiled conv biases (1, L*C), f32
                      fb1_ref, fb2_ref,           # fc biases (1, N), f32
                      o_ref):                     # (TB, OUT) output tile, f32
    f32 = jnp.float32
    bf16 = jnp.bfloat16

    h = x_ref[...].astype(bf16)
    # conv1 -> relu   (B, L*1) @ (L*1, L*16)
    h = jnp.maximum(
        jnp.dot(h, m1_ref[...], preferred_element_type=f32) + b1_ref[...],
        0.0).astype(bf16)
    # conv2 -> relu   (B, L*16) @ (L*16, L*32)
    h = jnp.maximum(
        jnp.dot(h, m2_ref[...], preferred_element_type=f32) + b2_ref[...],
        0.0).astype(bf16)
    # conv3 -> relu   (B, L*32) @ (L*32, L*64)
    h = jnp.maximum(
        jnp.dot(h, m3_ref[...], preferred_element_type=f32) + b3_ref[...],
        0.0).astype(bf16)
    # fc1 -> relu     (B, L*64) @ (L*64, 1024)
    h = jnp.maximum(
        jnp.dot(h, w1_ref[...], preferred_element_type=f32) + fb1_ref[...],
        0.0).astype(bf16)
    # dropout(p=0.3): identity (inference mode)
    # fc2             (B, 1024) @ (1024, OUT)
    o_ref[...] = (jnp.dot(h, w2_ref[...], preferred_element_type=f32)
                  + fb2_ref[...]).astype(o_ref.dtype)


# ----------------------- one-time weight preparation ------------------------

def _conv1d_as_dense(w, L):
    """Conv1d(kernel=3, stride=1, pad=1) over fixed length L as a dense matrix.

    w: (C_out, C_in, 3) PyTorch-layout weight (concrete array).
    Returns M of shape (L*C_in, L*C_out) acting on L-major-flattened activations:
        out[l*C_out + co] = sum_{ci,k} w[co, ci, k] * x[(l+k-1)*C_in + ci]
    """
    c_out, c_in, k = w.shape
    assert k == 3
    w_np = np.asarray(w, dtype=np.float32)
    m = np.zeros((L * c_in, L * c_out), dtype=np.float32)
    for lo in range(L):
        for kk in range(3):
            li = lo + kk - 1
            if 0 <= li < L:
                m[li * c_in:(li + 1) * c_in, lo * c_out:(lo + 1) * c_out] = \
                    w_np[:, :, kk].T
    return jnp.asarray(m)


def prepare_params(params, L):
    """One-time prep of kernel operands (host side, concrete arrays only)."""
    out_size = int(params["fc2_w"].shape[0])

    m1 = _conv1d_as_dense(params["c1_w"], L).astype(jnp.bfloat16)
    m2 = _conv1d_as_dense(params["c2_w"], L).astype(jnp.bfloat16)
    m3 = _conv1d_as_dense(params["c3_w"], L).astype(jnp.bfloat16)
    b1 = jnp.tile(jnp.asarray(params["c1_b"], jnp.float32), L)[None, :]   # (1, L*16)
    b2 = jnp.tile(jnp.asarray(params["c2_b"], jnp.float32), L)[None, :]   # (1, L*32)
    b3 = jnp.tile(jnp.asarray(params["c3_b"], jnp.float32), L)[None, :]   # (1, L*64)

    # fc1 column permutation: PyTorch flattens (B, 64, L) channel-major (c*L + l);
    # kernel activations are L-major (l*64 + c).
    perm = np.array([c * L + l for l in range(L) for c in range(64)],
                    dtype=np.int32)
    w1_np = np.asarray(params["fc1_w"], np.float32)[:, perm].T            # (L*64, 1024)
    w1 = jnp.asarray(w1_np, jnp.bfloat16)
    fb1 = jnp.asarray(params["fc1_b"], jnp.float32)[None, :]              # (1, 1024)

    # fc2: no output padding — the kernel writes (B, out_size) directly; only the
    # final partial 128-lane vreg gets a masked store (negligible).
    w2 = jnp.asarray(np.asarray(params["fc2_w"], np.float32).T, jnp.bfloat16)   # (1024, out)
    fb2 = jnp.asarray(params["fc2_b"], jnp.float32)[None, :]                    # (1, out)

    return {"m1": m1, "m2": m2, "m3": m3, "b1": b1, "b2": b2, "b3": b3,
            "w1": w1, "fb1": fb1, "w2": w2, "fb2": fb2,
            "L": L, "out_size": out_size}


# ------------------------------- forward -----------------------------------

def _num_tensorcores():
    """2 TensorCores per chip on v7x; 1 on v5e/v6e. Best-effort detection."""
    try:
        kind = jax.devices()[0].device_kind.lower()
        if "v7" in kind or "7x" in kind:
            return 2
    except Exception:
        pass
    return 1


def _pick_tile_b(B, n_tc, cap=256):
    """Batch-tile policy.

    Single-TC chips (v5e/v6e): the grid is a serial loop, so prefer one grid step
    (tile_b = B) up to `cap` rows — extra steps only re-stream the resident
    weights through the MXU and add per-step overhead. On multi-TC chips (v7x)
    keep >= n_tc 'parallel' steps once there is enough work (B > 32).
    """
    if B <= cap and (n_tc == 1 or B <= 32):
        return B
    best = None
    for t in range(cap, 7, -8):                     # multiple-of-8 rows
        if B % t == 0 and B // t >= n_tc:
            best = t
            break
    if best is None:
        best = B                                    # single step: block == full dims
    return best


@functools.partial(jax.jit, static_argnames=("tile_b", "out_size"))
def _forward(x, m1, m2, m3, w1, w2, b1, b2, b3, fb1, fb2,
             *, tile_b, out_size):
    B, c_in, L = x.shape
    assert c_in == 1 and B % tile_b == 0
    x2d = x.reshape(B, L).astype(jnp.float32)

    consts = (m1, m2, m3, w1, w2, b1, b2, b3, fb1, fb2)
    const_bytes = sum(int(np.prod(a.shape)) * a.dtype.itemsize for a in consts)

    # Right-sized VMEM budget: single-buffered resident weights + double-buffered
    # I/O batch tiles + in-kernel activation slack. Floor for safety; cap below
    # v7x's 64 MiB/TC physical budget.
    io_bytes = 2 * tile_b * L * 4 + 2 * tile_b * out_size * 4
    act_bytes = tile_b * (L * 64 * 2 + 1024 * 2 + max(out_size, 1024) * 4 + L * 64 * 4)
    vmem_limit = const_bytes + io_bytes + act_bytes + (8 << 20)
    vmem_limit = int(min(max(vmem_limit, 24 << 20), 60 << 20))

    # Advisory cost so XLA can overlap the one-time weight HBM->VMEM DMA with
    # surrounding ops when this kernel runs inside a larger graph.
    flops = 2 * B * (L * L * 16 + L * 16 * L * 32 + L * 32 * L * 64
                     + L * 64 * 1024 + 1024 * out_size)
    cost = pl.CostEstimate(
        flops=flops, transcendentals=0,
        bytes_accessed=B * L * 4 + const_bytes + B * out_size * 4)

    # Whole-array VMEM residency for constant operands -> single-buffered, no
    # per-grid-step re-DMA.
    def resident():
        return pl.BlockSpec(memory_space=pltpu.MemorySpace.VMEM)

    out = pl.pallas_call(
        _predictor_kernel,
        out_shape=jax.ShapeDtypeStruct((B, out_size), jnp.float32),
        grid=(B // tile_b,),
        in_specs=[
            pl.BlockSpec((tile_b, L), lambda i: (i, 0)),     # x tile (pipelined)
            resident(), resident(), resident(),              # m1, m2, m3
            resident(), resident(),                          # w1, w2
            resident(), resident(), resident(),              # b1, b2, b3
            resident(), resident(),                          # fb1, fb2
        ],
        # Last block dim equals the full array dim (out_size), so no 128-padding
        # or post-kernel slice is needed.
        out_specs=pl.BlockSpec((tile_b, out_size), lambda i: (i, 0)),
        compiler_params=pltpu.CompilerParams(
            dimension_semantics=("parallel",),
            vmem_limit_bytes=vmem_limit,
        ),
        cost_estimate=cost,
    )(x2d, *consts)
    return out


def temperature_predictor_forward(x, prep, *, tile_b=None):
    """x: (B, 1, L) float32 -> (B, output_size) float32. `prep` = prepare_params()."""
    if tile_b is None:
        tile_b = _pick_tile_b(x.shape[0], _num_tensorcores())
    return _forward(x, prep["m1"], prep["m2"], prep["m3"], prep["w1"], prep["w2"],
                    prep["b1"], prep["b2"], prep["b3"], prep["fb1"], prep["fb2"],
                    tile_b=tile_b, out_size=prep["out_size"])


# ------------------------- parameter init & reference -----------------------

def _init_params(key, L, output_size):
    """Deterministic uniform(-1/sqrt(fan_in), +1/sqrt(fan_in)) init (PyTorch-like)."""
    ks = jax.random.split(key, 10)

    def u(k, shape, fan_in):
        b = 1.0 / np.sqrt(fan_in)
        return jax.random.uniform(k, shape, jnp.float32, -b, b)

    p = {}
    p["c1_w"] = u(ks[0], (16, 1, 3), 1 * 3);   p["c1_b"] = u(ks[1], (16,), 1 * 3)
    p["c2_w"] = u(ks[2], (32, 16, 3), 16 * 3); p["c2_b"] = u(ks[3], (32,), 16 * 3)
    p["c3_w"] = u(ks[4], (64, 32, 3), 32 * 3); p["c3_b"] = u(ks[5], (64,), 32 * 3)
    p["fc1_w"] = u(ks[6], (1024, 64 * L), 64 * L)
    p["fc1_b"] = u(ks[7], (1024,), 64 * L)
    p["fc2_w"] = u(ks[8], (output_size, 1024), 1024)
    p["fc2_b"] = u(ks[9], (output_size,), 1024)
    return p


def reference_forward(x, params):
    def conv(h, w, b):
        y = lax.conv_general_dilated(
            h, w, window_strides=(1,), padding=[(1, 1)],
            dimension_numbers=("NCH", "OIH", "NCH"))
        return y + b[None, :, None]

    h = jax.nn.relu(conv(x, params["c1_w"], params["c1_b"]))
    h = jax.nn.relu(conv(h, params["c2_w"], params["c2_b"]))
    h = jax.nn.relu(conv(h, params["c3_w"], params["c3_b"]))
    h = h.reshape(h.shape[0], -1)                      # channel-major flatten (c*L + l)
    h = jax.nn.relu(h @ params["fc1_w"].T + params["fc1_b"])
    return h @ params["fc2_w"].T + params["fc2_b"]


# --------------------------------- main -------------------------------------

if __name__ == "__main__":
    B = 16            # batch
    L = 8             # input_size (Conv1d sequence length)
    OUT = 500         # output_size stand-in for 3476 (non-128-multiple lane tail)

    key = jax.random.PRNGKey(0)
    k_x, k_p = jax.random.split(key)
    x = jax.random.normal(k_x, (B, 1, L), jnp.float32)   # PyTorch NCL input
    params = _init_params(k_p, L, OUT)

    prep = prepare_params(params, L)                      # one-time weight prep
    y = temperature_predictor_forward(x, prep)
    y = jax.block_until_ready(y)
    assert y.shape == (B, OUT)

    y_ref = jax.block_until_ready(reference_forward(x, params))
    # bf16 weights/activations with f32 accumulation -> looser tolerance than pure f32.
    np.testing.assert_allclose(np.asarray(y), np.asarray(y_ref), rtol=2e-2, atol=2e-2)

    print("KERNEL_OK")
</pallas_src>

<mosaic_0001>
module attributes {stable_mosaic.version = 11 : i64} {
  func.func @_predictor_kernel(%arg0: i32, %arg1: memref<16x8xf32, #tpu.memory_space<vmem>>, %arg2: memref<8x128xbf16, #tpu.memory_space<vmem>>, %arg3: memref<128x256xbf16, #tpu.memory_space<vmem>>, %arg4: memref<256x512xbf16, #tpu.memory_space<vmem>>, %arg5: memref<512x1024xbf16, #tpu.memory_space<vmem>>, %arg6: memref<1024x500xbf16, #tpu.memory_space<vmem>>, %arg7: memref<1x128xf32, #tpu.memory_space<vmem>>, %arg8: memref<1x256xf32, #tpu.memory_space<vmem>>, %arg9: memref<1x512xf32, #tpu.memory_space<vmem>>, %arg10: memref<1x1024xf32, #tpu.memory_space<vmem>>, %arg11: memref<1x500xf32, #tpu.memory_space<vmem>>, %arg12: memref<16x500xf32, #tpu.memory_space<vmem>>) attributes {dimension_semantics = [#tpu.dimension_semantics<parallel>], iteration_bounds = array<i64: 1>, scalar_prefetch = 0 : i64, scratch_operands = 0 : i64, tpu.core_type = #tpu.core_type<tc>, window_params = [{transform_indices = @transform_0, window_bounds = array<i64: 16, 8>}, {pipeline_mode = #tpu.pipeline_mode<synchronous>, transform_indices = @transform_1, window_bounds = array<i64: 8, 128>}, {pipeline_mode = #tpu.pipeline_mode<synchronous>, transform_indices = @transform_2, window_bounds = array<i64: 128, 256>}, {pipeline_mode = #tpu.pipeline_mode<synchronous>, transform_indices = @transform_3, window_bounds = array<i64: 256, 512>}, {pipeline_mode = #tpu.pipeline_mode<synchronous>, transform_indices = @transform_4, window_bounds = array<i64: 512, 1024>}, {pipeline_mode = #tpu.pipeline_mode<synchronous>, transform_indices = @transform_5, window_bounds = array<i64: 1024, 500>}, {pipeline_mode = #tpu.pipeline_mode<synchronous>, transform_indices = @transform_6, window_bounds = array<i64: 1, 128>}, {pipeline_mode = #tpu.pipeline_mode<synchronous>, transform_indices = @transform_7, window_bounds = array<i64: 1, 256>}, {pipeline_mode = #tpu.pipeline_mode<synchronous>, transform_indices = @transform_8, window_bounds = array<i64: 1, 512>}, {pipeline_mode = #tpu.pipeline_mode<synchronous>, transform_indices = @transform_9, window_bounds = array<i64: 1, 1024>}, {pipeline_mode = #tpu.pipeline_mode<synchronous>, transform_indices = @transform_10, window_bounds = array<i64: 1, 500>}, {transform_indices = @transform_11, window_bounds = array<i64: 16, 500>}]} {
    %c0 = arith.constant 0 : index
    %c0_0 = arith.constant 0 : index
    %0 = vector.load %arg1[%c0, %c0_0] : memref<16x8xf32, #tpu.memory_space<vmem>>, vector<16x8xf32>
    %1 = arith.truncf %0 : vector<16x8xf32> to vector<16x8xbf16>
    %c0_1 = arith.constant 0 : index
    %c0_2 = arith.constant 0 : index
    %2 = vector.load %arg2[%c0_1, %c0_2] : memref<8x128xbf16, #tpu.memory_space<vmem>>, vector<8x128xbf16>
    %cst = arith.constant dense<0.000000e+00> : vector<16x128xf32>
    %3 = tpu.matmul %1, %2, %cst {dimension_numbers = #tpu.dot_dimension_numbers<[1], [0], [0], [1], [0, 0, 1, 1], [], []>} : vector<16x8xbf16>, vector<8x128xbf16>, vector<16x128xf32> -> vector<16x128xf32>
    %c0_3 = arith.constant 0 : index
    %c0_4 = arith.constant 0 : index
    %4 = vector.load %arg7[%c0_3, %c0_4] : memref<1x128xf32, #tpu.memory_space<vmem>>, vector<1x128xf32>
    %5 = vector.broadcast %4 : vector<1x128xf32> to vector<16x128xf32>
    %6 = arith.addf %3, %5 : vector<16x128xf32>
    %cst_5 = arith.constant 0.000000e+00 : f32
    %7 = vector.broadcast %cst_5 : f32 to vector<16x128xf32>
    %8 = arith.maximumf %6, %7 : vector<16x128xf32>
    %9 = arith.truncf %8 : vector<16x128xf32> to vector<16x128xbf16>
    %c0_6 = arith.constant 0 : index
    %c0_7 = arith.constant 0 : index
    %10 = vector.load %arg3[%c0_6, %c0_7] : memref<128x256xbf16, #tpu.memory_space<vmem>>, vector<128x256xbf16>
    %cst_8 = arith.constant dense<0.000000e+00> : vector<16x256xf32>
    %11 = tpu.matmul %9, %10, %cst_8 {dimension_numbers = #tpu.dot_dimension_numbers<[1], [0], [0], [1], [0, 0, 1, 1], [], []>} : vector<16x128xbf16>, vector<128x256xbf16>, vector<16x256xf32> -> vector<16x256xf32>
    %c0_9 = arith.constant 0 : index
    %c0_10 = arith.constant 0 : index
    %12 = vector.load %arg8[%c0_9, %c0_10] : memref<1x256xf32, #tpu.memory_space<vmem>>, vector<1x256xf32>
    %13 = vector.broadcast %12 : vector<1x256xf32> to vector<16x256xf32>
    %14 = arith.addf %11, %13 : vector<16x256xf32>
    %cst_11 = arith.constant 0.000000e+00 : f32
    %15 = vector.broadcast %cst_11 : f32 to vector<16x256xf32>
    %16 = arith.maximumf %14, %15 : vector<16x256xf32>
    %17 = arith.truncf %16 : vector<16x256xf32> to vector<16x256xbf16>
    %c0_12 = arith.constant 0 : index
    %c0_13 = arith.constant 0 : index
    %18 = vector.load %arg4[%c0_12, %c0_13] : memref<256x512xbf16, #tpu.memory_space<vmem>>, vector<256x512xbf16>
    %cst_14 = arith.constant dense<0.000000e+00> : vector<16x512xf32>
    %19 = tpu.matmul %17, %18, %cst_14 {dimension_numbers = #tpu.dot_dimension_numbers<[1], [0], [0], [1], [0, 0, 1, 1], [], []>} : vector<16x256xbf16>, vector<256x512xbf16>, vector<16x512xf32> -> vector<16x512xf32>
    %c0_15 = arith.constant 0 : index
    %c0_16 = arith.constant 0 : index
    %20 = vector.load %arg9[%c0_15, %c0_16] : memref<1x512xf32, #tpu.memory_space<vmem>>, vector<1x512xf32>
    %21 = vector.broadcast %20 : vector<1x512xf32> to vector<16x512xf32>
    %22 = arith.addf %19, %21 : vector<16x512xf32>
    %cst_17 = arith.constant 0.000000e+00 : f32
    %23 = vector.broadcast %cst_17 : f32 to vector<16x512xf32>
    %24 = arith.maximumf %22, %23 : vector<16x512xf32>
    %25 = arith.truncf %24 : vector<16x512xf32> to vector<16x512xbf16>
    %c0_18 = arith.constant 0 : index
    %c0_19 = arith.constant 0 : index
    %26 = vector.load %arg5[%c0_18, %c0_19] : memref<512x1024xbf16, #tpu.memory_space<vmem>>, vector<512x1024xbf16>
    %cst_20 = arith.constant dense<0.000000e+00> : vector<16x1024xf32>
    %27 = tpu.matmul %25, %26, %cst_20 {dimension_numbers = #tpu.dot_dimension_numbers<[1], [0], [0], [1], [0, 0, 1, 1], [], []>} : vector<16x512xbf16>, vector<512x1024xbf16>, vector<16x1024xf32> -> vector<16x1024xf32>
    %c0_21 = arith.constant 0 : index
    %c0_22 = arith.constant 0 : index
    %28 = vector.load %arg10[%c0_21, %c0_22] : memref<1x1024xf32, #tpu.memory_space<vmem>>, vector<1x1024xf32>
    %29 = vector.broadcast %28 : vector<1x1024xf32> to vector<16x1024xf32>
    %30 = arith.addf %27, %29 : vector<16x1024xf32>
    %cst_23 = arith.constant 0.000000e+00 : f32
    %31 = vector.broadcast %cst_23 : f32 to vector<16x1024xf32>
    %32 = arith.maximumf %30, %31 : vector<16x1024xf32>
    %33 = arith.truncf %32 : vector<16x1024xf32> to vector<16x1024xbf16>
    %c0_24 = arith.constant 0 : index
    %c0_25 = arith.constant 0 : index
    %34 = vector.load %arg6[%c0_24, %c0_25] : memref<1024x500xbf16, #tpu.memory_space<vmem>>, vector<1024x500xbf16>
    %cst_26 = arith.constant dense<0.000000e+00> : vector<16x500xf32>
    %35 = tpu.matmul %33, %34, %cst_26 {dimension_numbers = #tpu.dot_dimension_numbers<[1], [0], [0], [1], [0, 0, 1, 1], [], []>} : vector<16x1024xbf16>, vector<1024x500xbf16>, vector<16x500xf32> -> vector<16x500xf32>
    %c0_27 = arith.constant 0 : index
    %c0_28 = arith.constant 0 : index
    %36 = vector.load %arg11[%c0_27, %c0_28] : memref<1x500xf32, #tpu.memory_space<vmem>>, vector<1x500xf32>
    %37 = vector.broadcast %36 : vector<1x500xf32> to vector<16x500xf32>
    %38 = arith.addf %35, %37 : vector<16x500xf32>
    %c0_29 = arith.constant 0 : index
    %c0_30 = arith.constant 0 : index
    %39 = vector.load %arg12[%c0_29, %c0_30] : memref<16x500xf32, #tpu.memory_space<vmem>>, vector<16x500xf32>
    tpu.vector_store %arg12[%c0_29, %c0_30], %38 {strides = array<i32>} : memref<16x500xf32, #tpu.memory_space<vmem>>, vector<16x500xf32>,
    return
  }
  func.func @transform_0(%arg0: i32) -> (i32, i32) {
    %c0_i32 = arith.constant 0 : i32
    %c0_i32_0 = arith.constant 0 : i32
    return %arg0, %c0_i32 : i32, i32
  }
  func.func @transform_1(%arg0: i32) -> (i32, i32) {
    %c0_i32 = arith.constant 0 : i32
    %c0_i32_0 = arith.constant 0 : i32
    %c0_i32_1 = arith.constant 0 : i32
    return %c0_i32, %c0_i32_0 : i32, i32
  }
  func.func @transform_2(%arg0: i32) -> (i32, i32) {
    %c0_i32 = arith.constant 0 : i32
    %c0_i32_0 = arith.constant 0 : i32
    %c0_i32_1 = arith.constant 0 : i32
    return %c0_i32, %c0_i32_0 : i32, i32
  }
  func.func @transform_3(%arg0: i32) -> (i32, i32) {
    %c0_i32 = arith.constant 0 : i32
    %c0_i32_0 = arith.constant 0 : i32
    %c0_i32_1 = arith.constant 0 : i32
    return %c0_i32, %c0_i32_0 : i32, i32
  }
  func.func @transform_4(%arg0: i32) -> (i32, i32) {
    %c0_i32 = arith.constant 0 : i32
    %c0_i32_0 = arith.constant 0 : i32
    %c0_i32_1 = arith.constant 0 : i32
    return %c0_i32, %c0_i32_0 : i32, i32
  }
  func.func @transform_5(%arg0: i32) -> (i32, i32) {
    %c0_i32 = arith.constant 0 : i32
    %c0_i32_0 = arith.constant 0 : i32
    %c0_i32_1 = arith.constant 0 : i32
    return %c0_i32, %c0_i32_0 : i32, i32
  }
  func.func @transform_6(%arg0: i32) -> (i32, i32) {
    %c0_i32 = arith.constant 0 : i32
    %c0_i32_0 = arith.constant 0 : i32
    %c0_i32_1 = arith.constant 0 : i32
    return %c0_i32, %c0_i32_0 : i32, i32
  }
  func.func @transform_7(%arg0: i32) -> (i32, i32) {
    %c0_i32 = arith.constant 0 : i32
    %c0_i32_0 = arith.constant 0 : i32
    %c0_i32_1 = arith.constant 0 : i32
    return %c0_i32, %c0_i32_0 : i32, i32
  }
  func.func @transform_8(%arg0: i32) -> (i32, i32) {
    %c0_i32 = arith.constant 0 : i32
    %c0_i32_0 = arith.constant 0 : i32
    %c0_i32_1 = arith.constant 0 : i32
    return %c0_i32, %c0_i32_0 : i32, i32
  }
  func.func @transform_9(%arg0: i32) -> (i32, i32) {
    %c0_i32 = arith.constant 0 : i32
    %c0_i32_0 = arith.constant 0 : i32
    %c0_i32_1 = arith.constant 0 : i32
    return %c0_i32, %c0_i32_0 : i32, i32
  }
  func.func @transform_10(%arg0: i32) -> (i32, i32) {
    %c0_i32 = arith.constant 0 : i32
    %c0_i32_0 = arith.constant 0 : i32
    %c0_i32_1 = arith.constant 0 : i32
    return %c0_i32, %c0_i32_0 : i32, i32
  }
  func.func @transform_11(%arg0: i32) -> (i32, i32) {
    %c0_i32 = arith.constant 0 : i32
    %c0_i32_0 = arith.constant 0 : i32
    return %arg0, %c0_i32 : i32, i32
  }
}

</mosaic_0001>

<llo_original>
// kernel: _forward.1
$region0: #{_forward.1}
  #allocation0 [shape = 'u32[]', space=smem, size = 0x4, offset = 0x4, fixed_abs, tag = 'smem constant byte address 0x4 - core index']
  #allocation1 [shape = 'u32[144,128]{1,0:T(1,128)}', space=vmem, size = 0x12000, scoped, tag = 'internal scratch']
  %s0 = inlined_call_operand.vmem [shape: f32[16,8], index: 0, kind: input, shape index: {}]
  %s1 = inlined_call_operand.vmem [shape: bf16[8,128], index: 1, kind: input, shape index: {}]
  %s2 = inlined_call_operand.vmem [shape: bf16[128,256], index: 2, kind: input, shape index: {}]
  %s3 = inlined_call_operand.vmem [shape: bf16[256,512], index: 3, kind: input, shape index: {}]
  %s4 = inlined_call_operand.vmem [shape: bf16[512,1024], index: 4, kind: input, shape index: {}]
  %s5 = inlined_call_operand.vmem [shape: bf16[1024,500], index: 5, kind: input, shape index: {}]
  %s6 = inlined_call_operand.vmem [shape: f32[1,128], index: 6, kind: input, shape index: {}]
  %s7 = inlined_call_operand.vmem [shape: f32[1,256], index: 7, kind: input, shape index: {}]
  %s8 = inlined_call_operand.vmem [shape: f32[1,512], index: 8, kind: input, shape index: {}]
  %s9 = inlined_call_operand.vmem [shape: f32[1,1024], index: 9, kind: input, shape index: {}]
  %s10 = inlined_call_operand.vmem [shape: f32[1,500], index: 10, kind: input, shape index: {}]
  %s11 = inlined_call_operand.hbm [shape: f32[16,500], index: 11, kind: output, shape index: {}]
  %s12 = sld [smem:[#allocation0]]
  $region54: #{_forward.1} parent=0
    _
  %s14 = ssub.s32 1, %s12
  %s15 = scalar_select 0, %s14, %s12
  $region1: #{_forward.1} parent=0
    #allocation2 [shape = 'u8[32768]{0}', space=vmem, size = 0x8000, scoped, tag = 'output window, operand 0, single buffered']
    #allocation3 [shape = 's32[1]{0}', space=sflag, size = 0x4, scoped, tag = 'scoped memory for _forward.1']
    %16 = vsyncpa [#allocation3], 0
    // Predicated region
    $region2: #{_forward.1} parent=1 // pred_check
      _
    $region3: #{_forward.1} parent=1 // pred_check_branch
      %18 = sbr.rel (0) target = $region5
    $region4: #{_forward.1} parent=1 // pred_region
      _
    $region5: #{_forward.1} parent=1 // pred_fallthru
      _
    // Predicated region
    $region6: #{_forward.1} parent=1 // pred_check
      _
    $region7: #{_forward.1} parent=1 // pred_check_branch
      %20 = sbr.rel (0) target = $region9
    $region8: #{_forward.1} parent=1 // pred_region
      _
    $region9: #{_forward.1} parent=1 // pred_fallthru
      _
    // Predicated region
    $region10: #{_forward.1} parent=1 // pred_check
      _
    $region11: #{_forward.1} parent=1 // pred_check_branch
      %22 = sbr.rel (0) target = $region13
    $region12: #{_forward.1} parent=1 // pred_region
      _
    $region13: #{_forward.1} parent=1 // pred_fallthru
      _
    // Predicated region
    $region14: #{_forward.1} parent=1 // pred_check
      _
    $region15: #{_forward.1} parent=1 // pred_check_branch
      %24 = sbr.rel (0) target = $region17
    $region16: #{_forward.1} parent=1 // pred_region
      _
    $region17: #{_forward.1} parent=1 // pred_fallthru
      _
    // Predicated region
    $region18: #{_forward.1} parent=1 // pred_check
      _
    $region19: #{_forward.1} parent=1 // pred_check_branch
      %26 = sbr.rel (0) target = $region21
    $region20: #{_forward.1} parent=1 // pred_region
      _
    $region21: #{_forward.1} parent=1 // pred_fallthru
      _
    // Predicated region
    $region22: #{_forward.1} parent=1 // pred_check
      _
    $region23: #{_forward.1} parent=1 // pred_check_branch
      %28 = sbr.rel (0) target = $region25
    $region24: #{_forward.1} parent=1 // pred_region
      _
    $region25: #{_forward.1} parent=1 // pred_fallthru
      _
    // Predicated region
    $region26: #{_forward.1} parent=1 // pred_check
      _
    $region27: #{_forward.1} parent=1 // pred_check_branch
      %30 = sbr.rel (0) target = $region29
    $region28: #{_forward.1} parent=1 // pred_region
      _
    $region29: #{_forward.1} parent=1 // pred_fallthru
      _
    // Predicated region
    $region30: #{_forward.1} parent=1 // pred_check
      _
    $region31: #{_forward.1} parent=1 // pred_check_branch
      %32 = sbr.rel (0) target = $region33
    $region32: #{_forward.1} parent=1 // pred_region
      _
    $region33: #{_forward.1} parent=1 // pred_fallthru
      _
    // Predicated region
    $region34: #{_forward.1} parent=1 // pred_check
      _
    $region35: #{_forward.1} parent=1 // pred_check_branch
      %34 = sbr.rel (0) target = $region37
    $region36: #{_forward.1} parent=1 // pred_region
      _
    $region37: #{_forward.1} parent=1 // pred_fallthru
      _
    // Predicated region
    $region38: #{_forward.1} parent=1 // pred_check
      _
    $region39: #{_forward.1} parent=1 // pred_check_branch
      %36 = sbr.rel (0) target = $region41
    $region40: #{_forward.1} parent=1 // pred_region
      _
    $region41: #{_forward.1} parent=1 // pred_fallthru
      _
    // Predicated region
    $region42: #{_forward.1} parent=1 // pred_check
      _
    $region43: #{_forward.1} parent=1 // pred_check_branch
      %38 = sbr.rel (0) target = $region45
    $region44: #{_forward.1} parent=1 // pred_region
      _
    $region45: #{_forward.1} parent=1 // pred_fallthru
      _
    %v40 = vld [vmem:[%s0] sm:$0xff]
    %v41 = vld [vmem:[%s0 + $0x8] sm:$0xff]
    %v42 = vpack.c.bf16 %v41, %v40
    %v43 = vld [vmem:[%s1] sm:$0xf]
    %v44 = vld [vmem:[%s6] sm:$0x1]
    %v46 = vlaneseq
    %v47 = vshrl.u32 %v46, 7
    %v48 = vsub.s32 0, %v47
    %v49 = vrot.slane %v44, %v48
    %vm51 = vcmask 64512
    %v53 = vsel %vm51, %v42, 0
    %vm55 = vcmask 1043456
    %v57 = vsel %vm55, %v43, 0
    %59 = vmatprep.subr.bf16.mxu0 0
    %60 = vmatpush1.bf16.msra.mxu0 0
    %61 = vmatprep.subr.bf16.mxu0 0
    %62 = vmatpush1.bf16.msra.mxu0 0
    %63 = vmatprep.subr.bf16.mxu0 0
    %64 = vmatpush1.bf16.msra.mxu0 0
    %65 = vmatprep.subr.bf16.mxu0 0
    %66 = vmatpush1.bf16.msra.mxu0 0
    %67 = vmatprep.subr.bf16.mxu0 0
    %68 = vmatpush1.bf16.msra.mxu0 0
    %69 = vmatprep.subr.bf16.mxu0 0
    %70 = vmatpush1.bf16.msra.mxu0 0
    %71 = vmatprep.subr.bf16.mxu0 0
    %72 = vmatpush1.bf16.msra.mxu0 0
    %73 = vmatprep.subr.bf16.mxu0 0
    %74 = vmatpush1.bf16.msra.mxu0 %v57
    %75 = vmatprep.subr.bf16.mxu0 0
    %76 = vmatpush2.bf16.msra.mxu0 0
    %77 = vmatprep.subr.bf16.mxu0 0
    %78 = vmatpush2.bf16.msra.mxu0 0
    %79 = vmatprep.subr.bf16.mxu0 0
    %80 = vmatpush2.bf16.msra.mxu0 0
    %81 = vmatprep.subr.bf16.mxu0 0
    %82 = vmatpush2.bf16.msra.mxu0 0
    %83 = vmatprep.subr.bf16.mxu0 0
    %84 = vmatpush2.bf16.msra.mxu0 0
    %85 = vmatprep.subr.bf16.mxu0 0
    %86 = vmatpush2.bf16.msra.mxu0 0
    %87 = vmatprep.subr.bf16.mxu0 0
    %88 = vmatpush2.bf16.msra.mxu0 0
    %89 = vmatprep.subr.bf16.mxu0 0
    %90 = vmatpush2.bf16.msra.mxu0 0
    %91 = vmatprep.mubr.bf16.mxu0 0
    %92 = vmatmul.mubr.bf16.gmra.mxu0 %v53
    %v93 = vpop.f32.mrf.mxu0
    %v94 = vadd.f32 %v49, %v93
    %v95 = vpop.f32.mrf.mxu0
    %v96 = vpop.f32.mrf.mxu0
    %v97 = vadd.f32 %v49, %v96
    %v98 = vpop.f32.mrf.mxu0
    %99 = vdwg.mxu0
    %v100 = vmax.f32 %v94, 0.0
    %v101 = vmax.f32 %v97, 0.0
    %v102 = vpack.c.bf16 %v101, %v100
    %v103 = vld [vmem:[%s2] sm:$0xff]
    %v104 = vld [vmem:[%s2 + $0x8] sm:$0xff]
    %v105 = vld [vmem:[%s2 + $0x10] sm:$0xff]
    %v106 = vld [vmem:[%s2 + $0x18] sm:$0xff]
    %v107 = vld [vmem:[%s2 + $0x20] sm:$0xff]
    %v108 = vld [vmem:[%s2 + $0x28] sm:$0xff]
    %v109 = vld [vmem:[%s2 + $0x30] sm:$0xff]
    %v110 = vld [vmem:[%s2 + $0x38] sm:$0xff]
    %v111 = vld [vmem:[%s2 + $0x40] sm:$0xff]
    %v112 = vld [vmem:[%s2 + $0x48] sm:$0xff]
    %v113 = vld [vmem:[%s2 + $0x50] sm:$0xff]
    %v114 = vld [vmem:[%s2 + $0x58] sm:$0xff]
    %v115 = vld [vmem:[%s2 + $0x60] sm:$0xff]
    %v116 = vld [vmem:[%s2 + $0x68] sm:$0xff]
    %v117 = vld [vmem:[%s2 + $0x70] sm:$0xff]
    %v118 = vld [vmem:[%s2 + $0x78] sm:$0xff]
    %v119 = vld [vmem:[%s7] sm:$0x3]
    %v121 = vlaneseq
    %v122 = vshrl.u32 %v121, 7
    %v123 = vsub.s32 0, %v122
    %v124 = vrot.slane %v119, %v123
    %v125 = vlaneseq
    %v126 = vshrl.u32 %v125, 7
    %v127 = vsub.s32 1, %v126
    %v128 = vrot.slane %v119, %v127
    %v147 = vunpack.c.l.b16 %v103
    %v148 = vunpack.c.h.b16 %v103
    %v149 = vunpack.c.l.b16 %v104
    %v150 = vunpack.c.h.b16 %v104
    %v151 = vunpack.c.l.b16 %v105
    %v152 = vunpack.c.h.b16 %v105
    %v153 = vunpack.c.l.b16 %v106
    %v154 = vunpack.c.h.b16 %v106
    %v155 = vunpack.c.l.b16 %v107
    %v156 = vunpack.c.h.b16 %v107
    %v157 = vunpack.c.l.b16 %v108
    %v158 = vunpack.c.h.b16 %v108
    %v159 = vunpack.c.l.b16 %v109
    %v160 = vunpack.c.h.b16 %v109
    %v161 = vunpack.c.l.b16 %v110
    %v162 = vunpack.c.h.b16 %v110
    %v163 = vunpack.c.l.b16 %v111
    %v164 = vunpack.c.h.b16 %v111
    %v165 = vunpack.c.l.b16 %v112
    %v166 = vunpack.c.h.b16 %v112
    %v167 = vunpack.c.l.b16 %v113
    %v168 = vunpack.c.h.b16 %v113
    %v169 = vunpack.c.l.b16 %v114
    %v170 = vunpack.c.h.b16 %v114
    %v171 = vunpack.c.l.b16 %v115
    %v172 = vunpack.c.h.b16 %v115
    %v173 = vunpack.c.l.b16 %v116
    %v174 = vunpack.c.h.b16 %v116
    %v175 = vunpack.c.l.b16 %v117
    %v176 = vunpack.c.h.b16 %v117
    %v177 = vunpack.c.l.b16 %v118
    %v178 = vunpack.c.h.b16 %v118
    %v179 = vpack.c.b16 %v149, %v147
    %v180 = vpack.c.b16 %v150, %v148
    %v181 = vpack.c.b16 %v153, %v151
    %v182 = vpack.c.b16 %v154, %v152
    %v183 = vpack.c.b16 %v157, %v155
    %v184 = vpack.c.b16 %v158, %v156
    %v185 = vpack.c.b16 %v161, %v159
    %v186 = vpack.c.b16 %v162, %v160
    %v187 = vpack.c.b16 %v165, %v163
    %v188 = vpack.c.b16 %v166, %v164
    %v189 = vpack.c.b16 %v169, %v167
    %v190 = vpack.c.b16 %v170, %v168
    %v191 = vpack.c.b16 %v173, %v171
    %v192 = vpack.c.b16 %v174, %v172
    %v193 = vpack.c.b16 %v177, %v175
    %v194 = vpack.c.b16 %v178, %v176
    %211 = vmatprep.subr.bf16.mxu0 %v194
    %212 = vmatpush1.bf16.msra.mxu0 %v193
    %213 = vmatprep.subr.bf16.mxu0 %v192
    %214 = vmatpush1.bf16.msra.mxu0 %v191
    %215 = vmatprep.subr.bf16.mxu0 %v190
    %216 = vmatpush1.bf16.msra.mxu0 %v189
    %217 = vmatprep.subr.bf16.mxu0 %v188
    %218 = vmatpush1.bf16.msra.mxu0 %v187
    %219 = vmatprep.subr.bf16.mxu0 %v186
    %220 = vmatpush1.bf16.msra.mxu0 %v185
    %221 = vmatprep.subr.bf16.mxu0 %v184
    %222 = vmatpush1.bf16.msra.mxu0 %v183
    %223 = vmatprep.subr.bf16.mxu0 %v182
    %224 = vmatpush1.bf16.msra.mxu0 %v181
    %225 = vmatprep.subr.bf16.mxu0 %v180
    %226 = vmatpush1.bf16.msra.mxu0 %v179
    %227 = vmatprep.subr.bf16.mxu0 0
    %228 = vmatpush2.bf16.msra.mxu0 0
    %229 = vmatprep.subr.bf16.mxu0 0
    %230 = vmatpush2.bf16.msra.mxu0 0
    %231 = vmatprep.subr.bf16.mxu0 0
    %232 = vmatpush2.bf16.msra.mxu0 0
    %233 = vmatprep.subr.bf16.mxu0 0
    %234 = vmatpush2.bf16.msra.mxu0 0
    %235 = vmatprep.subr.bf16.mxu0 0
    %236 = vmatpush2.bf16.msra.mxu0 0
    %237 = vmatprep.subr.bf16.mxu0 0
    %238 = vmatpush2.bf16.msra.mxu0 0
    %239 = vmatprep.subr.bf16.mxu0 0
    %240 = vmatpush2.bf16.msra.mxu0 0
    %241 = vmatprep.subr.bf16.mxu0 0
    %242 = vmatpush2.bf16.msra.mxu0 0
    %243 = vmatprep.mubr.bf16.mxu0 0
    %244 = vmatmul.mubr.bf16.gmra.mxu0 %v102
    %v245 = vpop.f32.mrf.mxu0
    %v246 = vadd.f32 %v124, %v245
    %v247 = vpop.f32.mrf.mxu0
    %v248 = vadd.f32 %v128, %v247
    %v249 = vpop.f32.mrf.mxu0
    %v250 = vadd.f32 %v124, %v249
    %v251 = vpop.f32.mrf.mxu0
    %v252 = vadd.f32 %v128, %v251
    %253 = vdwg.mxu0
    %v254 = vmax.f32 %v246, 0.0
    %v255 = vmax.f32 %v248, 0.0
    %v256 = vmax.f32 %v250, 0.0
    %v257 = vmax.f32 %v252, 0.0
    %v258 = vpack.c.bf16 %v256, %v254
    %v259 = vpack.c.bf16 %v257, %v255
    %v260 = vld [vmem:[%s3] sm:$0xff]
    %v261 = vld [vmem:[%s3 + $0x8] sm:$0xff]
    %v262 = vld [vmem:[%s3 + $0x10] sm:$0xff]
    %v263 = vld [vmem:[%s3 + $0x18] sm:$0xff]
    %v264 = vld [vmem:[%s3 + $0x20] sm:$0xff]
    %v265 = vld [vmem:[%s3 + $0x28] sm:$0xff]
    %v266 = vld [vmem:[%s3 + $0x30] sm:$0xff]
    %v267 = vld [vmem:[%s3 + $0x38] sm:$0xff]
    %v268 = vld [vmem:[%s3 + $0x40] sm:$0xff]
    %v269 = vld [vmem:[%s3 + $0x48] sm:$0xff]
    %v270 = vld [vmem:[%s3 + $0x50] sm:$0xff]
    %v271 = vld [vmem:[%s3 + $0x58] sm:$0xff]
    %v272 = vld [vmem:[%s3 + $0x60] sm:$0xff]
    %v273 = vld [vmem:[%s3 + $0x68] sm:$0xff]
    %v274 = vld [vmem:[%s3 + $0x70] sm:$0xff]
    %v275 = vld [vmem:[%s3 + $0x78] sm:$0xff]
    %v276 = vld [vmem:[%s3 + $0x80] sm:$0xff]
    %v277 = vld [vmem:[%s3 + $0x88] sm:$0xff]
    %v278 = vld [vmem:[%s3 + $0x90] sm:$0xff]
    %v279 = vld [vmem:[%s3 + $0x98] sm:$0xff]
    %v280 = vld [vmem:[%s3 + $0xa0] sm:$0xff]
    %v281 = vld [vmem:[%s3 + $0xa8] sm:$0xff]
    %v282 = vld [vmem:[%s3 + $0xb0] sm:$0xff]
    %v283 = vld [vmem:[%s3 + $0xb8] sm:$0xff]
    %v284 = vld [vmem:[%s3 + $0xc0] sm:$0xff]
    %v285 = vld [vmem:[%s3 + $0xc8] sm:$0xff]
    %v286 = vld [vmem:[%s3 + $0xd0] sm:$0xff]
    %v287 = vld [vmem:[%s3 + $0xd8] sm:$0xff]
    %v288 = vld [vmem:[%s3 + $0xe0] sm:$0xff]
    %v289 = vld [vmem:[%s3 + $0xe8] sm:$0xff]
    %v290 = vld [vmem:[%s3 + $0xf0] sm:$0xff]
    %v291 = vld [vmem:[%s3 + $0xf8] sm:$0xff]
    %v292 = vld [vmem:[%s3 + $0x100] sm:$0xff]
    %v293 = vld [vmem:[%s3 + $0x108] sm:$0xff]
    %v294 = vld [vmem:[%s3 + $0x110] sm:$0xff]
    %v295 = vld [vmem:[%s3 + $0x118] sm:$0xff]
    %v296 = vld [vmem:[%s3 + $0x120] sm:$0xff]
    %v297 = vld [vmem:[%s3 + $0x128] sm:$0xff]
    %v298 = vld [vmem:[%s3 + $0x130] sm:$0xff]
    %v299 = vld [vmem:[%s3 + $0x138] sm:$0xff]
    %v300 = vld [vmem:[%s3 + $0x140] sm:$0xff]
    %v301 = vld [vmem:[%s3 + $0x148] sm:$0xff]
    %v302 = vld [vmem:[%s3 + $0x150] sm:$0xff]
    %v303 = vld [vmem:[%s3 + $0x158] sm:$0xff]
    %v304 = vld [vmem:[%s3 + $0x160] sm:$0xff]
    %v305 = vld [vmem:[%s3 + $0x168] sm:$0xff]
    %v306 = vld [vmem:[%s3 + $0x170] sm:$0xff]
    %v307 = vld [vmem:[%s3 + $0x178] sm:$0xff]
    %v308 = vld [vmem:[%s3 + $0x180] sm:$0xff]
    %v309 = vld [vmem:[%s3 + $0x188] sm:$0xff]
    %v310 = vld [vmem:[%s3 + $0x190] sm:$0xff]
    %v311 = vld [vmem:[%s3 + $0x198] sm:$0xff]
    %v312 = vld [vmem:[%s3 + $0x1a0] sm:$0xff]
    %v313 = vld [vmem:[%s3 + $0x1a8] sm:$0xff]
    %v314 = vld [vmem:[%s3 + $0x1b0] sm:$0xff]
    %v315 = vld [vmem:[%s3 + $0x1b8] sm:$0xff]
    %v316 = vld [vmem:[%s3 + $0x1c0] sm:$0xff]
    %v317 = vld [vmem:[%s3 + $0x1c8] sm:$0xff]
    %v318 = vld [vmem:[%s3 + $0x1d0] sm:$0xff]
    %v319 = vld [vmem:[%s3 + $0x1d8] sm:$0xff]
    %v320 = vld [vmem:[%s3 + $0x1e0] sm:$0xff]
    %v321 = vld [vmem:[%s3 + $0x1e8] sm:$0xff]
    %v322 = vld [vmem:[%s3 + $0x1f0] sm:$0xff]
    %v323 = vld [vmem:[%s3 + $0x1f8] sm:$0xff]
    %v324 = vld [vmem:[%s8] sm:$0xf]
    %v326 = vlaneseq
    %v327 = vshrl.u32 %v326, 7
    %v328 = vsub.s32 0, %v327
    %v329 = vrot.slane %v324, %v328
    %v330 = vlaneseq
    %v331 = vshrl.u32 %v330, 7
    %v332 = vsub.s32 1, %v331
    %v333 = vrot.slane %v324, %v332
    %v334 = vlaneseq
    %v335 = vshrl.u32 %v334, 7
    %v336 = vsub.s32 2, %v335
    %v337 = vrot.slane %v324, %v336
    %v338 = vlaneseq
    %v339 = vshrl.u32 %v338, 7
    %v340 = vsub.s32 3, %v339
    %v341 = vrot.slane %v324, %v340
    %v410 = vunpack.c.l.b16 %v260
    %v411 = vunpack.c.h.b16 %v260
    %v412 = vunpack.c.l.b16 %v261
    %v413 = vunpack.c.h.b16 %v261
    %v414 = vunpack.c.l.b16 %v262
    %v415 = vunpack.c.h.b16 %v262
    %v416 = vunpack.c.l.b16 %v263
    %v417 = vunpack.c.h.b16 %v263
    %v418 = vunpack.c.l.b16 %v264
    %v419 = vunpack.c.h.b16 %v264
    %v420 = vunpack.c.l.b16 %v265
    %v421 = vunpack.c.h.b16 %v265
    %v422 = vunpack.c.l.b16 %v266
    %v423 = vunpack.c.h.b16 %v266
    %v424 = vunpack.c.l.b16 %v267
    %v425 = vunpack.c.h.b16 %v267
    %v426 = vunpack.c.l.b16 %v268
    %v427 = vunpack.c.h.b16 %v268
    %v428 = vunpack.c.l.b16 %v269
    %v429 = vunpack.c.h.b16 %v269
    %v430 = vunpack.c.l.b16 %v270
    %v431 = vunpack.c.h.b16 %v270
    %v432 = vunpack.c.l.b16 %v271
    %v433 = vunpack.c.h.b16 %v271
    %v434 = vunpack.c.l.b16 %v272
    %v435 = vunpack.c.h.b16 %v272
    %v436 = vunpack.c.l.b16 %v273
    %v437 = vunpack.c.h.b16 %v273
    %v438 = vunpack.c.l.b16 %v274
    %v439 = vunpack.c.h.b16 %v274
    %v440 = vunpack.c.l.b16 %v275
    %v441 = vunpack.c.h.b16 %v275
    %v442 = vunpack.c.l.b16 %v276
    %v443 = vunpack.c.h.b16 %v276
    %v444 = vunpack.c.l.b16 %v277
    %v445 = vunpack.c.h.b16 %v277
    %v446 = vunpack.c.l.b16 %v278
    %v447 = vunpack.c.h.b16 %v278
    %v448 = vunpack.c.l.b16 %v279
    %v449 = vunpack.c.h.b16 %v279
    %v450 = vunpack.c.l.b16 %v280
    %v451 = vunpack.c.h.b16 %v280
    %v452 = vunpack.c.l.b16 %v281
    %v453 = vunpack.c.h.b16 %v281
    %v454 = vunpack.c.l.b16 %v282
    %v455 = vunpack.c.h.b16 %v282
    %v456 = vunpack.c.l.b16 %v283
    %v457 = vunpack.c.h.b16 %v283
    %v458 = vunpack.c.l.b16 %v284
    %v459 = vunpack.c.h.b16 %v284
    %v460 = vunpack.c.l.b16 %v285
    %v461 = vunpack.c.h.b16 %v285
    %v462 = vunpack.c.l.b16 %v286
    %v463 = vunpack.c.h.b16 %v286
    %v464 = vunpack.c.l.b16 %v287
    %v465 = vunpack.c.h.b16 %v287
    %v466 = vunpack.c.l.b16 %v288
    %v467 = vunpack.c.h.b16 %v288
    %v468 = vunpack.c.l.b16 %v289
    %v469 = vunpack.c.h.b16 %v289
    %v470 = vunpack.c.l.b16 %v290
    %v471 = vunpack.c.h.b16 %v290
    %v472 = vunpack.c.l.b16 %v291
    %v473 = vunpack.c.h.b16 %v291
    %v474 = vunpack.c.l.b16 %v292
    %v475 = vunpack.c.h.b16 %v292
    %v476 = vunpack.c.l.b16 %v293
    %v477 = vunpack.c.h.b16 %v293
    %v478 = vunpack.c.l.b16 %v294
    %v479 = vunpack.c.h.b16 %v294
    %v480 = vunpack.c.l.b16 %v295
    %v481 = vunpack.c.h.b16 %v295
    %v482 = vunpack.c.l.b16 %v296
    %v483 = vunpack.c.h.b16 %v296
    %v484 = vunpack.c.l.b16 %v297
    %v485 = vunpack.c.h.b16 %v297
    %v486 = vunpack.c.l.b16 %v298
    %v487 = vunpack.c.h.b16 %v298
    %v488 = vunpack.c.l.b16 %v299
    %v489 = vunpack.c.h.b16 %v299
    %v490 = vunpack.c.l.b16 %v300
    %v491 = vunpack.c.h.b16 %v300
    %v492 = vunpack.c.l.b16 %v301
    %v493 = vunpack.c.h.b16 %v301
    %v494 = vunpack.c.l.b16 %v302
    %v495 = vunpack.c.h.b16 %v302
    %v496 = vunpack.c.l.b16 %v303
    %v497 = vunpack.c.h.b16 %v303
    %v498 = vunpack.c.l.b16 %v304
    %v499 = vunpack.c.h.b16 %v304
    %v500 = vunpack.c.l.b16 %v305
    %v501 = vunpack.c.h.b16 %v305
    %v502 = vunpack.c.l.b16 %v306
    %v503 = vunpack.c.h.b16 %v306
    %v504 = vunpack.c.l.b16 %v307
    %v505 = vunpack.c.h.b16 %v307
    %v506 = vunpack.c.l.b16 %v308
    %v507 = vunpack.c.h.b16 %v308
    %v508 = vunpack.c.l.b16 %v309
    %v509 = vunpack.c.h.b16 %v309
    %v510 = vunpack.c.l.b16 %v310
    %v511 = vunpack.c.h.b16 %v310
    %v512 = vunpack.c.l.b16 %v311
    %v513 = vunpack.c.h.b16 %v311
    %v514 = vunpack.c.l.b16 %v312
    %v515 = vunpack.c.h.b16 %v312
    %v516 = vunpack.c.l.b16 %v313
    %v517 = vunpack.c.h.b16 %v313
    %v518 = vunpack.c.l.b16 %v314
    %v519 = vunpack.c.h.b16 %v314
    %v520 = vunpack.c.l.b16 %v315
    %v521 = vunpack.c.h.b16 %v315
    %v522 = vunpack.c.l.b16 %v316
    %v523 = vunpack.c.h.b16 %v316
    %v524 = vunpack.c.l.b16 %v317
    %v525 = vunpack.c.h.b16 %v317
    %v526 = vunpack.c.l.b16 %v318
    %v527 = vunpack.c.h.b16 %v318
    %v528 = vunpack.c.l.b16 %v319
    %v529 = vunpack.c.h.b16 %v319
    %v530 = vunpack.c.l.b16 %v320
    %v531 = vunpack.c.h.b16 %v320
    %v532 = vunpack.c.l.b16 %v321
    %v533 = vunpack.c.h.b16 %v321
    %v534 = vunpack.c.l.b16 %v322
    %v535 = vunpack.c.h.b16 %v322
    %v536 = vunpack.c.l.b16 %v323
    %v537 = vunpack.c.h.b16 %v323
    %v538 = vpack.c.b16 %v414, %v410
    %v539 = vpack.c.b16 %v415, %v411
    %v540 = vpack.c.b16 %v416, %v412
    %v541 = vpack.c.b16 %v417, %v413
    %v542 = vpack.c.b16 %v422, %v418
    %v543 = vpack.c.b16 %v423, %v419
    %v544 = vpack.c.b16 %v424, %v420
    %v545 = vpack.c.b16 %v425, %v421
    %v546 = vpack.c.b16 %v430, %v426
    %v547 = vpack.c.b16 %v431, %v427
    %v548 = vpack.c.b16 %v432, %v428
    %v549 = vpack.c.b16 %v433, %v429
    %v550 = vpack.c.b16 %v438, %v434
    %v551 = vpack.c.b16 %v439, %v435
    %v552 = vpack.c.b16 %v440, %v436
    %v553 = vpack.c.b16 %v441, %v437
    %v554 = vpack.c.b16 %v446, %v442
    %v555 = vpack.c.b16 %v447, %v443
    %v556 = vpack.c.b16 %v448, %v444
    %v557 = vpack.c.b16 %v449, %v445
    %v558 = vpack.c.b16 %v454, %v450
    %v559 = vpack.c.b16 %v455, %v451
    %v560 = vpack.c.b16 %v456, %v452
    %v561 = vpack.c.b16 %v457, %v453
    %v562 = vpack.c.b16 %v462, %v458
    %v563 = vpack.c.b16 %v463, %v459
    %v564 = vpack.c.b16 %v464, %v460
    %v565 = vpack.c.b16 %v465, %v461
    %v566 = vpack.c.b16 %v470, %v466
    %v567 = vpack.c.b16 %v471, %v467
    %v568 = vpack.c.b16 %v472, %v468
    %v569 = vpack.c.b16 %v473, %v469
    %v570 = vpack.c.b16 %v478, %v474
    %v571 = vpack.c.b16 %v479, %v475
    %v572 = vpack.c.b16 %v480, %v476
    %v573 = vpack.c.b16 %v481, %v477
    %v574 = vpack.c.b16 %v486, %v482
    %v575 = vpack.c.b16 %v487, %v483
    %v576 = vpack.c.b16 %v488, %v484
    %v577 = vpack.c.b16 %v489, %v485
    %v578 = vpack.c.b16 %v494, %v490
    %v579 = vpack.c.b16 %v495, %v491
    %v580 = vpack.c.b16 %v496, %v492
    %v581 = vpack.c.b16 %v497, %v493
    %v582 = vpack.c.b16 %v502, %v498
    %v583 = vpack.c.b16 %v503, %v499
    %v584 = vpack.c.b16 %v504, %v500
    %v585 = vpack.c.b16 %v505, %v501
    %v586 = vpack.c.b16 %v510, %v506
    %v587 = vpack.c.b16 %v511, %v507
    %v588 = vpack.c.b16 %v512, %v508
    %v589 = vpack.c.b16 %v513, %v509
    %v590 = vpack.c.b16 %v518, %v514
    %v591 = vpack.c.b16 %v519, %v515
    %v592 = vpack.c.b16 %v520, %v516
    %v593 = vpack.c.b16 %v521, %v517
    %v594 = vpack.c.b16 %v526, %v522
    %v595 = vpack.c.b16 %v527, %v523
    %v596 = vpack.c.b16 %v528, %v524
    %v597 = vpack.c.b16 %v529, %v525
    %v598 = vpack.c.b16 %v534, %v530
    %v599 = vpack.c.b16 %v535, %v531
    %v600 = vpack.c.b16 %v536, %v532
    %v601 = vpack.c.b16 %v537, %v533
    %666 = vmatprep.subr.bf16.mxu0 %v567
    %667 = vmatpush1.bf16.msra.mxu0 %v566
    %668 = vmatprep.subr.bf16.mxu0 %v563
    %669 = vmatpush1.bf16.msra.mxu0 %v562
    %670 = vmatprep.subr.bf16.mxu0 %v559
    %671 = vmatpush1.bf16.msra.mxu0 %v558
    %672 = vmatprep.subr.bf16.mxu0 %v555
    %673 = vmatpush1.bf16.msra.mxu0 %v554
    %674 = vmatprep.subr.bf16.mxu0 %v551
    %675 = vmatpush1.bf16.msra.mxu0 %v550
    %676 = vmatprep.subr.bf16.mxu0 %v547
    %677 = vmatpush1.bf16.msra.mxu0 %v546
    %678 = vmatprep.subr.bf16.mxu0 %v543
    %679 = vmatpush1.bf16.msra.mxu0 %v542
    %680 = vmatprep.subr.bf16.mxu0 %v539
    %681 = vmatpush1.bf16.msra.mxu0 %v538
    %682 = vmatprep.subr.bf16.mxu0 %v599
    %683 = vmatpush2.bf16.msra.mxu0 %v598
    %684 = vmatprep.subr.bf16.mxu0 %v595
    %685 = vmatpush2.bf16.msra.mxu0 %v594
    %686 = vmatprep.subr.bf16.mxu0 %v591
    %687 = vmatpush2.bf16.msra.mxu0 %v590
    %688 = vmatprep.subr.bf16.mxu0 %v587
    %689 = vmatpush2.bf16.msra.mxu0 %v586
    %690 = vmatprep.subr.bf16.mxu0 %v583
    %691 = vmatpush2.bf16.msra.mxu0 %v582
    %692 = vmatprep.subr.bf16.mxu0 %v579
    %693 = vmatpush2.bf16.msra.mxu0 %v578
    %694 = vmatprep.subr.bf16.mxu0 %v575
    %695 = vmatpush2.bf16.msra.mxu0 %v574
    %696 = vmatprep.subr.bf16.mxu0 %v571
    %697 = vmatpush2.bf16.msra.mxu0 %v570
    %698 = vmatprep.mubr.bf16.mxu0 %v259
    %699 = vmatmul.mubr.bf16.gmra.mxu0 %v258
    %v700 = vpop.f32.mrf.mxu0
    %v701 = vadd.f32 %v329, %v700
    %v702 = vpop.f32.mrf.mxu0
    %v703 = vadd.f32 %v333, %v702
    %v704 = vpop.f32.mrf.mxu0
    %v705 = vadd.f32 %v329, %v704
    %v706 = vpop.f32.mrf.mxu0
    %v707 = vadd.f32 %v333, %v706
    %708 = vdwg.mxu0
    %709 = vmatprep.subr.bf16.mxu0 %v569
    %710 = vmatpush1.bf16.msra.mxu0 %v568
    %711 = vmatprep.subr.bf16.mxu0 %v565
    %712 = vmatpush1.bf16.msra.mxu0 %v564
    %713 = vmatprep.subr.bf16.mxu0 %v561
    %714 = vmatpush1.bf16.msra.mxu0 %v560
    %715 = vmatprep.subr.bf16.mxu0 %v557
    %716 = vmatpush1.bf16.msra.mxu0 %v556
    %717 = vmatprep.subr.bf16.mxu0 %v553
    %718 = vmatpush1.bf16.msra.mxu0 %v552
    %719 = vmatprep.subr.bf16.mxu0 %v549
    %720 = vmatpush1.bf16.msra.mxu0 %v548
    %721 = vmatprep.subr.bf16.mxu0 %v545
    %722 = vmatpush1.bf16.msra.mxu0 %v544
    %723 = vmatprep.subr.bf16.mxu0 %v541
    %724 = vmatpush1.bf16.msra.mxu0 %v540
    %725 = vmatprep.subr.bf16.mxu0 %v601
    %726 = vmatpush2.bf16.msra.mxu0 %v600
    %727 = vmatprep.subr.bf16.mxu0 %v597
    %728 = vmatpush2.bf16.msra.mxu0 %v596
    %729 = vmatprep.subr.bf16.mxu0 %v593
    %730 = vmatpush2.bf16.msra.mxu0 %v592
    %731 = vmatprep.subr.bf16.mxu0 %v589
    %732 = vmatpush2.bf16.msra.mxu0 %v588
    %733 = vmatprep.subr.bf16.mxu0 %v585
    %734 = vmatpush2.bf16.msra.mxu0 %v584
    %735 = vmatprep.subr.bf16.mxu0 %v581
    %736 = vmatpush2.bf16.msra.mxu0 %v580
    %737 = vmatprep.subr.bf16.mxu0 %v577
    %738 = vmatpush2.bf16.msra.mxu0 %v576
    %739 = vmatprep.subr.bf16.mxu0 %v573
    %740 = vmatpush2.bf16.msra.mxu0 %v572
    %741 = vmatprep.mubr.bf16.mxu0 %v259
    %742 = vmatmul.mubr.bf16.gmra.mxu0 %v258
    %v743 = vpop.f32.mrf.mxu0
    %v744 = vadd.f32 %v337, %v743
    %v745 = vpop.f32.mrf.mxu0
    %v746 = vadd.f32 %v341, %v745
    %v747 = vpop.f32.mrf.mxu0
    %v748 = vadd.f32 %v337, %v747
    %v749 = vpop.f32.mrf.mxu0
    %v750 = vadd.f32 %v341, %v749
    %751 = vdwg.mxu0
    %v752 = vmax.f32 %v701, 0.0
    %v753 = vmax.f32 %v703, 0.0
    %v754 = vmax.f32 %v744, 0.0
    %v755 = vmax.f32 %v746, 0.0
    %v756 = vmax.f32 %v705, 0.0
    %v757 = vmax.f32 %v707, 0.0
    %v758 = vmax.f32 %v748, 0.0
    %v759 = vmax.f32 %v750, 0.0
    %v760 = vpack.c.bf16 %v756, %v752
    %v761 = vpack.c.bf16 %v757, %v753
    %v762 = vpack.c.bf16 %v758, %v754
    %v763 = vpack.c.bf16 %v759, %v755
    %v764 = vld [vmem:[%s4] sm:$0xff]
    %v765 = vld [vmem:[%s4 + $0x8] sm:$0xff]
    %v766 = vld [vmem:[%s4 + $0x10] sm:$0xff]
    %v767 = vld [vmem:[%s4 + $0x18] sm:$0xff]
    %v768 = vld [vmem:[%s4 + $0x20] sm:$0xff]
    %v769 = vld [vmem:[%s4 + $0x28] sm:$0xff]
    %v770 = vld [vmem:[%s4 + $0x30] sm:$0xff]
    %v771 = vld [vmem:[%s4 + $0x38] sm:$0xff]
    %v772 = vld [vmem:[%s4 + $0x40] sm:$0xff]
    %v773 = vld [vmem:[%s4 + $0x48] sm:$0xff]
    %v774 = vld [vmem:[%s4 + $0x50] sm:$0xff]
    %v775 = vld [vmem:[%s4 + $0x58] sm:$0xff]
    %v776 = vld [vmem:[%s4 + $0x60] sm:$0xff]
    %v777 = vld [vmem:[%s4 + $0x68] sm:$0xff]
    %v778 = vld [vmem:[%s4 + $0x70] sm:$0xff]
    %v779 = vld [vmem:[%s4 + $0x78] sm:$0xff]
    %v780 = vld [vmem:[%s4 + $0x80] sm:$0xff]
    %v781 = vld [vmem:[%s4 + $0x88] sm:$0xff]
    %v782 = vld [vmem:[%s4 + $0x90] sm:$0xff]
    %v783 = vld [vmem:[%s4 + $0x98] sm:$0xff]
    %v784 = vld [vmem:[%s4 + $0xa0] sm:$0xff]
    %v785 = vld [vmem:[%s4 + $0xa8] sm:$0xff]
    %v786 = vld [vmem:[%s4 + $0xb0] sm:$0xff]
    %v787 = vld [vmem:[%s4 + $0xb8] sm:$0xff]
    %v788 = vld [vmem:[%s4 + $0xc0] sm:$0xff]
    %v789 = vld [vmem:[%s4 + $0xc8] sm:$0xff]
    %v790 = vld [vmem:[%s4 + $0xd0] sm:$0xff]
    %v791 = vld [vmem:[%s4 + $0xd8] sm:$0xff]
    %v792 = vld [vmem:[%s4 + $0xe0] sm:$0xff]
    %v793 = vld [vmem:[%s4 + $0xe8] sm:$0xff]
    %v794 = vld [vmem:[%s4 + $0xf0] sm:$0xff]
    %v795 = vld [vmem:[%s4 + $0xf8] sm:$0xff]
    %v796 = vld [vmem:[%s4 + $0x100] sm:$0xff]
    %v797 = vld [vmem:[%s4 + $0x108] sm:$0xff]
    %v798 = vld [vmem:[%s4 + $0x110] sm:$0xff]
    %v799 = vld [vmem:[%s4 + $0x118] sm:$0xff]
    %v800 = vld [vmem:[%s4 + $0x120] sm:$0xff]
    %v801 = vld [vmem:[%s4 + $0x128] sm:$0xff]
    %v802 = vld [vmem:[%s4 + $0x130] sm:$0xff]
    %v803 = vld [vmem:[%s4 + $0x138] sm:$0xff]
    %v804 = vld [vmem:[%s4 + $0x140] sm:$0xff]
    %v805 = vld [vmem:[%s4 + $0x148] sm:$0xff]
    %v806 = vld [vmem:[%s4 + $0x150] sm:$0xff]
    %v807 = vld [vmem:[%s4 + $0x158] sm:$0xff]
    %v808 = vld [vmem:[%s4 + $0x160] sm:$0xff]
    %v809 = vld [vmem:[%s4 + $0x168] sm:$0xff]
    %v810 = vld [vmem:[%s4 + $0x170] sm:$0xff]
    %v811 = vld [vmem:[%s4 + $0x178] sm:$0xff]
    %v812 = vld [vmem:[%s4 + $0x180] sm:$0xff]
    %v813 = vld [vmem:[%s4 + $0x188] sm:$0xff]
    %v814 = vld [vmem:[%s4 + $0x190] sm:$0xff]
    %v815 = vld [vmem:[%s4 + $0x198] sm:$0xff]
    %v816 = vld [vmem:[%s4 + $0x1a0] sm:$0xff]
    %v817 = vld [vmem:[%s4 + $0x1a8] sm:$0xff]
    %v818 = vld [vmem:[%s4 + $0x1b0] sm:$0xff]
    %v819 = vld [vmem:[%s4 + $0x1b8] sm:$0xff]
    %v820 = vld [vmem:[%s4 + $0x1c0] sm:$0xff]
    %v821 = vld [vmem:[%s4 + $0x1c8] sm:$0xff]
    %v822 = vld [vmem:[%s4 + $0x1d0] sm:$0xff]
    %v823 = vld [vmem:[%s4 + $0x1d8] sm:$0xff]
    %v824 = vld [vmem:[%s4 + $0x1e0] sm:$0xff]
    %v825 = vld [vmem:[%s4 + $0x1e8] sm:$0xff]
    %v826 = vld [vmem:[%s4 + $0x1f0] sm:$0xff]
    %v827 = vld [vmem:[%s4 + $0x1f8] sm:$0xff]
    %v828 = vld [vmem:[%s4 + $0x200] sm:$0xff]
    %v829 = vld [vmem:[%s4 + $0x208] sm:$0xff]
    %v830 = vld [vmem:[%s4 + $0x210] sm:$0xff]
    %v831 = vld [vmem:[%s4 + $0x218] sm:$0xff]
    %v832 = vld [vmem:[%s4 + $0x220] sm:$0xff]
    %v833 = vld [vmem:[%s4 + $0x228] sm:$0xff]
    %v834 = vld [vmem:[%s4 + $0x230] sm:$0xff]
    %v835 = vld [vmem:[%s4 + $0x238] sm:$0xff]
    %v836 = vld [vmem:[%s4 + $0x240] sm:$0xff]
    %v837 = vld [vmem:[%s4 + $0x248] sm:$0xff]
    %v838 = vld [vmem:[%s4 + $0x250] sm:$0xff]
    %v839 = vld [vmem:[%s4 + $0x258] sm:$0xff]
    %v840 = vld [vmem:[%s4 + $0x260] sm:$0xff]
    %v841 = vld [vmem:[%s4 + $0x268] sm:$0xff]
    %v842 = vld [vmem:[%s4 + $0x270] sm:$0xff]
    %v843 = vld [vmem:[%s4 + $0x278] sm:$0xff]
    %v844 = vld [vmem:[%s4 + $0x280] sm:$0xff]
    %v845 = vld [vmem:[%s4 + $0x288] sm:$0xff]
    %v846 = vld [vmem:[%s4 + $0x290] sm:$0xff]
    %v847 = vld [vmem:[%s4 + $0x298] sm:$0xff]
    %v848 = vld [vmem:[%s4 + $0x2a0] sm:$0xff]
    %v849 = vld [vmem:[%s4 + $0x2a8] sm:$0xff]
    %v850 = vld [vmem:[%s4 + $0x2b0] sm:$0xff]
    %v851 = vld [vmem:[%s4 + $0x2b8] sm:$0xff]
    %v852 = vld [vmem:[%s4 + $0x2c0] sm:$0xff]
    %v853 = vld [vmem:[%s4 + $0x2c8] sm:$0xff]
    %v854 = vld [vmem:[%s4 + $0x2d0] sm:$0xff]
    %v855 = vld [vmem:[%s4 + $0x2d8] sm:$0xff]
    %v856 = vld [vmem:[%s4 + $0x2e0] sm:$0xff]
    %v857 = vld [vmem:[%s4 + $0x2e8] sm:$0xff]
    %v858 = vld [vmem:[%s4 + $0x2f0] sm:$0xff]
    %v859 = vld [vmem:[%s4 + $0x2f8] sm:$0xff]
    %v860 = vld [vmem:[%s4 + $0x300] sm:$0xff]
    %v861 = vld [vmem:[%s4 + $0x308] sm:$0xff]
    %v862 = vld [vmem:[%s4 + $0x310] sm:$0xff]
    %v863 = vld [vmem:[%s4 + $0x318] sm:$0xff]
    %v864 = vld [vmem:[%s4 + $0x320] sm:$0xff]
    %v865 = vld [vmem:[%s4 + $0x328] sm:$0xff]
    %v866 = vld [vmem:[%s4 + $0x330] sm:$0xff]
    %v867 = vld [vmem:[%s4 + $0x338] sm:$0xff]
    %v868 = vld [vmem:[%s4 + $0x340] sm:$0xff]
    %v869 = vld [vmem:[%s4 + $0x348] sm:$0xff]
    %v870 = vld [vmem:[%s4 + $0x350] sm:$0xff]
    %v871 = vld [vmem:[%s4 + $0x358] sm:$0xff]
    %v872 = vld [vmem:[%s4 + $0x360] sm:$0xff]
    %v873 = vld [vmem:[%s4 + $0x368] sm:$0xff]
    %v874 = vld [vmem:[%s4 + $0x370] sm:$0xff]
    %v875 = vld [vmem:[%s4 + $0x378] sm:$0xff]
    %v876 = vld [vmem:[%s4 + $0x380] sm:$0xff]
    %v877 = vld [vmem:[%s4 + $0x388] sm:$0xff]
    %v878 = vld [vmem:[%s4 + $0x390] sm:$0xff]
    %v879 = vld [vmem:[%s4 + $0x398] sm:$0xff]
    %v880 = vld [vmem:[%s4 + $0x3a0] sm:$0xff]
    %v881 = vld [vmem:[%s4 + $0x3a8] sm:$0xff]
    %v882 = vld [vmem:[%s4 + $0x3b0] sm:$0xff]
    %v883 = vld [vmem:[%s4 + $0x3b8] sm:$0xff]
    %v884 = vld [vmem:[%s4 + $0x3c0] sm:$0xff]
    %v885 = vld [vmem:[%s4 + $0x3c8] sm:$0xff]
    %v886 = vld [vmem:[%s4 + $0x3d0] sm:$0xff]
    %v887 = vld [vmem:[%s4 + $0x3d8] sm:$0xff]
    %v888 = vld [vmem:[%s4 + $0x3e0] sm:$0xff]
    %v889 = vld [vmem:[%s4 + $0x3e8] sm:$0xff]
    %v890 = vld [vmem:[%s4 + $0x3f0] sm:$0xff]
    %v891 = vld [vmem:[%s4 + $0x3f8] sm:$0xff]
    %v892 = vld [vmem:[%s4 + $0x400] sm:$0xff]
    %v893 = vld [vmem:[%s4 + $0x408] sm:$0xff]
    %v894 = vld [vmem:[%s4 + $0x410] sm:$0xff]
    %v895 = vld [vmem:[%s4 + $0x418] sm:$0xff]
    %v896 = vld [vmem:[%s4 + $0x420] sm:$0xff]
    %v897 = vld [vmem:[%s4 + $0x428] sm:$0xff]
    %v898 = vld [vmem:[%s4 + $0x430] sm:$0xff]
    %v899 = vld [vmem:[%s4 + $0x438] sm:$0xff]
    %v900 = vld [vmem:[%s4 + $0x440] sm:$0xff]
    %v901 = vld [vmem:[%s4 + $0x448] sm:$0xff]
    %v902 = vld [vmem:[%s4 + $0x450] sm:$0xff]
    %v903 = vld [vmem:[%s4 + $0x458] sm:$0xff]
    %v904 = vld [vmem:[%s4 + $0x460] sm:$0xff]
    %v905 = vld [vmem:[%s4 + $0x468] sm:$0xff]
    %v906 = vld [vmem:[%s4 + $0x470] sm:$0xff]
    %v907 = vld [vmem:[%s4 + $0x478] sm:$0xff]
    %v908 = vld [vmem:[%s4 + $0x480] sm:$0xff]
    %v909 = vld [vmem:[%s4 + $0x488] sm:$0xff]
    %v910 = vld [vmem:[%s4 + $0x490] sm:$0xff]
    %v911 = vld [vmem:[%s4 + $0x498] sm:$0xff]
    %v912 = vld [vmem:[%s4 + $0x4a0] sm:$0xff]
    %v913 = vld [vmem:[%s4 + $0x4a8] sm:$0xff]
    %v914 = vld [vmem:[%s4 + $0x4b0] sm:$0xff]
    %v915 = vld [vmem:[%s4 + $0x4b8] sm:$0xff]
    %v916 = vld [vmem:[%s4 + $0x4c0] sm:$0xff]
    %v917 = vld [vmem:[%s4 + $0x4c8] sm:$0xff]
    %v918 = vld [vmem:[%s4 + $0x4d0] sm:$0xff]
    %v919 = vld [vmem:[%s4 + $0x4d8] sm:$0xff]
    %v920 = vld [vmem:[%s4 + $0x4e0] sm:$0xff]
    %v921 = vld [vmem:[%s4 + $0x4e8] sm:$0xff]
    %v922 = vld [vmem:[%s4 + $0x4f0] sm:$0xff]
    %v923 = vld [vmem:[%s4 + $0x4f8] sm:$0xff]
    %v924 = vld [vmem:[%s4 + $0x500] sm:$0xff]
    %v925 = vld [vmem:[%s4 + $0x508] sm:$0xff]
    %v926 = vld [vmem:[%s4 + $0x510] sm:$0xff]
    %v927 = vld [vmem:[%s4 + $0x518] sm:$0xff]
    %v928 = vld [vmem:[%s4 + $0x520] sm:$0xff]
    %v929 = vld [vmem:[%s4 + $0x528] sm:$0xff]
    %v930 = vld [vmem:[%s4 + $0x530] sm:$0xff]
    %v931 = vld [vmem:[%s4 + $0x538] sm:$0xff]
    %v932 = vld [vmem:[%s4 + $0x540] sm:$0xff]
    %v933 = vld [vmem:[%s4 + $0x548] sm:$0xff]
    %v934 = vld [vmem:[%s4 + $0x550] sm:$0xff]
    %v935 = vld [vmem:[%s4 + $0x558] sm:$0xff]
    %v936 = vld [vmem:[%s4 + $0x560] sm:$0xff]
    %v937 = vld [vmem:[%s4 + $0x568] sm:$0xff]
    %v938 = vld [vmem:[%s4 + $0x570] sm:$0xff]
    %v939 = vld [vmem:[%s4 + $0x578] sm:$0xff]
    %v940 = vld [vmem:[%s4 + $0x580] sm:$0xff]
    %v941 = vld [vmem:[%s4 + $0x588] sm:$0xff]
    %v942 = vld [vmem:[%s4 + $0x590] sm:$0xff]
    %v943 = vld [vmem:[%s4 + $0x598] sm:$0xff]
    %v944 = vld [vmem:[%s4 + $0x5a0] sm:$0xff]
    %v945 = vld [vmem:[%s4 + $0x5a8] sm:$0xff]
    %v946 = vld [vmem:[%s4 + $0x5b0] sm:$0xff]
    %v947 = vld [vmem:[%s4 + $0x5b8] sm:$0xff]
    %v948 = vld [vmem:[%s4 + $0x5c0] sm:$0xff]
    %v949 = vld [vmem:[%s4 + $0x5c8] sm:$0xff]
    %v950 = vld [vmem:[%s4 + $0x5d0] sm:$0xff]
    %v951 = vld [vmem:[%s4 + $0x5d8] sm:$0xff]
    %v952 = vld [vmem:[%s4 + $0x5e0] sm:$0xff]
    %v953 = vld [vmem:[%s4 + $0x5e8] sm:$0xff]
    %v954 = vld [vmem:[%s4 + $0x5f0] sm:$0xff]
    %v955 = vld [vmem:[%s4 + $0x5f8] sm:$0xff]
    %v956 = vld [vmem:[%s4 + $0x600] sm:$0xff]
    %v957 = vld [vmem:[%s4 + $0x608] sm:$0xff]
    %v958 = vld [vmem:[%s4 + $0x610] sm:$0xff]
    %v959 = vld [vmem:[%s4 + $0x618] sm:$0xff]
    %v960 = vld [vmem:[%s4 + $0x620] sm:$0xff]
    %v961 = vld [vmem:[%s4 + $0x628] sm:$0xff]
    %v962 = vld [vmem:[%s4 + $0x630] sm:$0xff]
    %v963 = vld [vmem:[%s4 + $0x638] sm:$0xff]
    %v964 = vld [vmem:[%s4 + $0x640] sm:$0xff]
    %v965 = vld [vmem:[%s4 + $0x648] sm:$0xff]
    %v966 = vld [vmem:[%s4 + $0x650] sm:$0xff]
    %v967 = vld [vmem:[%s4 + $0x658] sm:$0xff]
    %v968 = vld [vmem:[%s4 + $0x660] sm:$0xff]
    %v969 = vld [vmem:[%s4 + $0x668] sm:$0xff]
    %v970 = vld [vmem:[%s4 + $0x670] sm:$0xff]
    %v971 = vld [vmem:[%s4 + $0x678] sm:$0xff]
    %v972 = vld [vmem:[%s4 + $0x680] sm:$0xff]
    %v973 = vld [vmem:[%s4 + $0x688] sm:$0xff]
    %v974 = vld [vmem:[%s4 + $0x690] sm:$0xff]
    %v975 = vld [vmem:[%s4 + $0x698] sm:$0xff]
    %v976 = vld [vmem:[%s4 + $0x6a0] sm:$0xff]
    %v977 = vld [vmem:[%s4 + $0x6a8] sm:$0xff]
    %v978 = vld [vmem:[%s4 + $0x6b0] sm:$0xff]
    %v979 = vld [vmem:[%s4 + $0x6b8] sm:$0xff]
    %v980 = vld [vmem:[%s4 + $0x6c0] sm:$0xff]
    %v981 = vld [vmem:[%s4 + $0x6c8] sm:$0xff]
    %v982 = vld [vmem:[%s4 + $0x6d0] sm:$0xff]
    %v983 = vld [vmem:[%s4 + $0x6d8] sm:$0xff]
    %v984 = vld [vmem:[%s4 + $0x6e0] sm:$0xff]
    %v985 = vld [vmem:[%s4 + $0x6e8] sm:$0xff]
    %v986 = vld [vmem:[%s4 + $0x6f0] sm:$0xff]
    %v987 = vld [vmem:[%s4 + $0x6f8] sm:$0xff]
    %v988 = vld [vmem:[%s4 + $0x700] sm:$0xff]
    %v989 = vld [vmem:[%s4 + $0x708] sm:$0xff]
    %v990 = vld [vmem:[%s4 + $0x710] sm:$0xff]
    %v991 = vld [vmem:[%s4 + $0x718] sm:$0xff]
    %v992 = vld [vmem:[%s4 + $0x720] sm:$0xff]
    %v993 = vld [vmem:[%s4 + $0x728] sm:$0xff]
    %v994 = vld [vmem:[%s4 + $0x730] sm:$0xff]
    %v995 = vld [vmem:[%s4 + $0x738] sm:$0xff]
    %v996 = vld [vmem:[%s4 + $0x740] sm:$0xff]
    %v997 = vld [vmem:[%s4 + $0x748] sm:$0xff]
    %v998 = vld [vmem:[%s4 + $0x750] sm:$0xff]
    %v999 = vld [vmem:[%s4 + $0x758] sm:$0xff]
    %v1000 = vld [vmem:[%s4 + $0x760] sm:$0xff]
    %v1001 = vld [vmem:[%s4 + $0x768] sm:$0xff]
    %v1002 = vld [vmem:[%s4 + $0x770] sm:$0xff]
    %v1003 = vld [vmem:[%s4 + $0x778] sm:$0xff]
    %v1004 = vld [vmem:[%s4 + $0x780] sm:$0xff]
    %v1005 = vld [vmem:[%s4 + $0x788] sm:$0xff]
    %v1006 = vld [vmem:[%s4 + $0x790] sm:$0xff]
    %v1007 = vld [vmem:[%s4 + $0x798] sm:$0xff]
    %v1008 = vld [vmem:[%s4 + $0x7a0] sm:$0xff]
    %v1009 = vld [vmem:[%s4 + $0x7a8] sm:$0xff]
    %v1010 = vld [vmem:[%s4 + $0x7b0] sm:$0xff]
    %v1011 = vld [vmem:[%s4 + $0x7b8] sm:$0xff]
    %v1012 = vld [vmem:[%s4 + $0x7c0] sm:$0xff]
    %v1013 = vld [vmem:[%s4 + $0x7c8] sm:$0xff]
    %v1014 = vld [vmem:[%s4 + $0x7d0] sm:$0xff]
    %v1015 = vld [vmem:[%s4 + $0x7d8] sm:$0xff]
    %v1016 = vld [vmem:[%s4 + $0x7e0] sm:$0xff]
    %v1017 = vld [vmem:[%s4 + $0x7e8] sm:$0xff]
    %v1018 = vld [vmem:[%s4 + $0x7f0] sm:$0xff]
    %v1019 = vld [vmem:[%s4 + $0x7f8] sm:$0xff]
    %v1020 = vld [vmem:[%s9] sm:$0xff]
    %v1022 = vlaneseq
    %v1023 = vshrl.u32 %v1022, 7
    %v1024 = vsub.s32 0, %v1023
    %v1025 = vrot.slane %v1020, %v1024
    %v1026 = vlaneseq
    %v1027 = vshrl.u32 %v1026, 7
    %v1028 = vsub.s32 1, %v1027
    %v1029 = vrot.slane %v1020, %v1028
    %v1030 = vlaneseq
    %v1031 = vshrl.u32 %v1030, 7
    %v1032 = vsub.s32 2, %v1031
    %v1033 = vrot.slane %v1020, %v1032
    %v1034 = vlaneseq
    %v1035 = vshrl.u32 %v1034, 7
    %v1036 = vsub.s32 3, %v1035
    %v1037 = vrot.slane %v1020, %v1036
    %v1038 = vlaneseq
    %v1039 = vshrl.u32 %v1038, 7
    %v1040 = vsub.s32 4, %v1039
    %v1041 = vrot.slane %v1020, %v1040
    %v1042 = vlaneseq
    %v1043 = vshrl.u32 %v1042, 7
    %v1044 = vsub.s32 5, %v1043
    %v1045 = vrot.slane %v1020, %v1044
    %v1046 = vlaneseq
    %v1047 = vshrl.u32 %v1046, 7
    %v1048 = vsub.s32 6, %v1047
    %v1049 = vrot.slane %v1020, %v1048
    %v1050 = vlaneseq
    %v1051 = vshrl.u32 %v1050, 7
    %v1052 = vsub.s32 7, %v1051
    %v1053 = vrot.slane %v1020, %v1052
    %v1318 = vunpack.c.l.b16 %v764
    %v1319 = vunpack.c.h.b16 %v764
    %v1320 = vunpack.c.l.b16 %v765
    %v1321 = vunpack.c.h.b16 %v765
    %v1322 = vunpack.c.l.b16 %v766
    %v1323 = vunpack.c.h.b16 %v766
    %v1324 = vunpack.c.l.b16 %v767
    %v1325 = vunpack.c.h.b16 %v767
    %v1326 = vunpack.c.l.b16 %v768
    %v1327 = vunpack.c.h.b16 %v768
    %v1328 = vunpack.c.l.b16 %v769
    %v1329 = vunpack.c.h.b16 %v769
    %v1330 = vunpack.c.l.b16 %v770
    %v1331 = vunpack.c.h.b16 %v770
    %v1332 = vunpack.c.l.b16 %v771
    %v1333 = vunpack.c.h.b16 %v771
    %v1334 = vunpack.c.l.b16 %v772
    %v1335 = vunpack.c.h.b16 %v772
    %v1336 = vunpack.c.l.b16 %v773
    %v1337 = vunpack.c.h.b16 %v773
    %v1338 = vunpack.c.l.b16 %v774
    %v1339 = vunpack.c.h.b16 %v774
    %v1340 = vunpack.c.l.b16 %v775
    %v1341 = vunpack.c.h.b16 %v775
    %v1342 = vunpack.c.l.b16 %v776
    %v1343 = vunpack.c.h.b16 %v776
    %v1344 = vunpack.c.l.b16 %v777
    %v1345 = vunpack.c.h.b16 %v777
    %v1346 = vunpack.c.l.b16 %v778
    %v1347 = vunpack.c.h.b16 %v778
    %v1348 = vunpack.c.l.b16 %v779
    %v1349 = vunpack.c.h.b16 %v779
    %v1350 = vunpack.c.l.b16 %v780
    %v1351 = vunpack.c.h.b16 %v780
    %v1352 = vunpack.c.l.b16 %v781
    %v1353 = vunpack.c.h.b16 %v781
    %v1354 = vunpack.c.l.b16 %v782
    %v1355 = vunpack.c.h.b16 %v782
    %v1356 = vunpack.c.l.b16 %v783
    %v1357 = vunpack.c.h.b16 %v783
    %v1358 = vunpack.c.l.b16 %v784
    %v1359 = vunpack.c.h.b16 %v784
    %v1360 = vunpack.c.l.b16 %v785
    %v1361 = vunpack.c.h.b16 %v785
    %v1362 = vunpack.c.l.b16 %v786
    %v1363 = vunpack.c.h.b16 %v786
    %v1364 = vunpack.c.l.b16 %v787
    %v1365 = vunpack.c.h.b16 %v787
    %v1366 = vunpack.c.l.b16 %v788
    %v1367 = vunpack.c.h.b16 %v788
    %v1368 = vunpack.c.l.b16 %v789
    %v1369 = vunpack.c.h.b16 %v789
    %v1370 = vunpack.c.l.b16 %v790
    %v1371 = vunpack.c.h.b16 %v790
    %v1372 = vunpack.c.l.b16 %v791
    %v1373 = vunpack.c.h.b16 %v791
    %v1374 = vunpack.c.l.b16 %v792
    %v1375 = vunpack.c.h.b16 %v792
    %v1376 = vunpack.c.l.b16 %v793
    %v1377 = vunpack.c.h.b16 %v793
    %v1378 = vunpack.c.l.b16 %v794
    %v1379 = vunpack.c.h.b16 %v794
    %v1380 = vunpack.c.l.b16 %v795
    %v1381 = vunpack.c.h.b16 %v795
    %v1382 = vunpack.c.l.b16 %v796
    %v1383 = vunpack.c.h.b16 %v796
    %v1384 = vunpack.c.l.b16 %v797
    %v1385 = vunpack.c.h.b16 %v797
    %v1386 = vunpack.c.l.b16 %v798
    %v1387 = vunpack.c.h.b16 %v798
    %v1388 = vunpack.c.l.b16 %v799
    %v1389 = vunpack.c.h.b16 %v799
    %v1390 = vunpack.c.l.b16 %v800
    %v1391 = vunpack.c.h.b16 %v800
    %v1392 = vunpack.c.l.b16 %v801
    %v1393 = vunpack.c.h.b16 %v801
    %v1394 = vunpack.c.l.b16 %v802
    %v1395 = vunpack.c.h.b16 %v802
    %v1396 = vunpack.c.l.b16 %v803
    %v1397 = vunpack.c.h.b16 %v803
    %v1398 = vunpack.c.l.b16 %v804
    %v1399 = vunpack.c.h.b16 %v804
    %v1400 = vunpack.c.l.b16 %v805
    %v1401 = vunpack.c.h.b16 %v805
    %v1402 = vunpack.c.l.b16 %v806
    %v1403 = vunpack.c.h.b16 %v806
    %v1404 = vunpack.c.l.b16 %v807
    %v1405 = vunpack.c.h.b16 %v807
    %v1406 = vunpack.c.l.b16 %v808
    %v1407 = vunpack.c.h.b16 %v808
    %v1408 = vunpack.c.l.b16 %v809
    %v1409 = vunpack.c.h.b16 %v809
    %v1410 = vunpack.c.l.b16 %v810
    %v1411 = vunpack.c.h.b16 %v810
    %v1412 = vunpack.c.l.b16 %v811
    %v1413 = vunpack.c.h.b16 %v811
    %v1414 = vunpack.c.l.b16 %v812
    %v1415 = vunpack.c.h.b16 %v812
    %v1416 = vunpack.c.l.b16 %v813
    %v1417 = vunpack.c.h.b16 %v813
    %v1418 = vunpack.c.l.b16 %v814
    %v1419 = vunpack.c.h.b16 %v814
    %v1420 = vunpack.c.l.b16 %v815
    %v1421 = vunpack.c.h.b16 %v815
    %v1422 = vunpack.c.l.b16 %v816
    %v1423 = vunpack.c.h.b16 %v816
    %v1424 = vunpack.c.l.b16 %v817
    %v1425 = vunpack.c.h.b16 %v817
    %v1426 = vunpack.c.l.b16 %v818
    %v1427 = vunpack.c.h.b16 %v818
    %v1428 = vunpack.c.l.b16 %v819
    %v1429 = vunpack.c.h.b16 %v819
    %v1430 = vunpack.c.l.b16 %v820
    %v1431 = vunpack.c.h.b16 %v820
    %v1432 = vunpack.c.l.b16 %v821
    %v1433 = vunpack.c.h.b16 %v821
    %v1434 = vunpack.c.l.b16 %v822
    %v1435 = vunpack.c.h.b16 %v822
    %v1436 = vunpack.c.l.b16 %v823
    %v1437 = vunpack.c.h.b16 %v823
    %v1438 = vunpack.c.l.b16 %v824
    %v1439 = vunpack.c.h.b16 %v824
    %v1440 = vunpack.c.l.b16 %v825
    %v1441 = vunpack.c.h.b16 %v825
    %v1442 = vunpack.c.l.b16 %v826
    %v1443 = vunpack.c.h.b16 %v826
    %v1444 = vunpack.c.l.b16 %v827
    %v1445 = vunpack.c.h.b16 %v827
    %v1446 = vunpack.c.l.b16 %v828
    %v1447 = vunpack.c.h.b16 %v828
    %v1448 = vunpack.c.l.b16 %v829
    %v1449 = vunpack.c.h.b16 %v829
    %v1450 = vunpack.c.l.b16 %v830
    %v1451 = vunpack.c.h.b16 %v830
    %v1452 = vunpack.c.l.b16 %v831
    %v1453 = vunpack.c.h.b16 %v831
    %v1454 = vunpack.c.l.b16 %v832
    %v1455 = vunpack.c.h.b16 %v832
    %v1456 = vunpack.c.l.b16 %v833
    %v1457 = vunpack.c.h.b16 %v833
    %v1458 = vunpack.c.l.b16 %v834
    %v1459 = vunpack.c.h.b16 %v834
    %v1460 = vunpack.c.l.b16 %v835
    %v1461 = vunpack.c.h.b16 %v835
    %v1462 = vunpack.c.l.b16 %v836
    %v1463 = vunpack.c.h.b16 %v836
    %v1464 = vunpack.c.l.b16 %v837
    %v1465 = vunpack.c.h.b16 %v837
    %v1466 = vunpack.c.l.b16 %v838
    %v1467 = vunpack.c.h.b16 %v838
    %v1468 = vunpack.c.l.b16 %v839
    %v1469 = vunpack.c.h.b16 %v839
    %v1470 = vunpack.c.l.b16 %v840
    %v1471 = vunpack.c.h.b16 %v840
    %v1472 = vunpack.c.l.b16 %v841
    %v1473 = vunpack.c.h.b16 %v841
    %v1474 = vunpack.c.l.b16 %v842
    %v1475 = vunpack.c.h.b16 %v842
    %v1476 = vunpack.c.l.b16 %v843
    %v1477 = vunpack.c.h.b16 %v843
    %v1478 = vunpack.c.l.b16 %v844
    %v1479 = vunpack.c.h.b16 %v844
    %v1480 = vunpack.c.l.b16 %v845
    %v1481 = vunpack.c.h.b16 %v845
    %v1482 = vunpack.c.l.b16 %v846
    %v1483 = vunpack.c.h.b16 %v846
    %v1484 = vunpack.c.l.b16 %v847
    %v1485 = vunpack.c.h.b16 %v847
    %v1486 = vunpack.c.l.b16 %v848
    %v1487 = vunpack.c.h.b16 %v848
    %v1488 = vunpack.c.l.b16 %v849
    %v1489 = vunpack.c.h.b16 %v849
    %v1490 = vunpack.c.l.b16 %v850
    %v1491 = vunpack.c.h.b16 %v850
    %v1492 = vunpack.c.l.b16 %v851
    %v1493 = vunpack.c.h.b16 %v851
    %v1494 = vunpack.c.l.b16 %v852
    %v1495 = vunpack.c.h.b16 %v852
    %v1496 = vunpack.c.l.b16 %v853
    %v1497 = vunpack.c.h.b16 %v853
    %v1498 = vunpack.c.l.b16 %v854
    %v1499 = vunpack.c.h.b16 %v854
    %v1500 = vunpack.c.l.b16 %v855
    %v1501 = vunpack.c.h.b16 %v855
    %v1502 = vunpack.c.l.b16 %v856
    %v1503 = vunpack.c.h.b16 %v856
    %v1504 = vunpack.c.l.b16 %v857
    %v1505 = vunpack.c.h.b16 %v857
    %v1506 = vunpack.c.l.b16 %v858
    %v1507 = vunpack.c.h.b16 %v858
    %v1508 = vunpack.c.l.b16 %v859
    %v1509 = vunpack.c.h.b16 %v859
    %v1510 = vunpack.c.l.b16 %v860
    %v1511 = vunpack.c.h.b16 %v860
    %v1512 = vunpack.c.l.b16 %v861
    %v1513 = vunpack.c.h.b16 %v861
    %v1514 = vunpack.c.l.b16 %v862
    %v1515 = vunpack.c.h.b16 %v862
    %v1516 = vunpack.c.l.b16 %v863
    %v1517 = vunpack.c.h.b16 %v863
    %v1518 = vunpack.c.l.b16 %v864
    %v1519 = vunpack.c.h.b16 %v864
    %v1520 = vunpack.c.l.b16 %v865
    %v1521 = vunpack.c.h.b16 %v865
    %v1522 = vunpack.c.l.b16 %v866
    %v1523 = vunpack.c.h.b16 %v866
    %v1524 = vunpack.c.l.b16 %v867
    %v1525 = vunpack.c.h.b16 %v867
    %v1526 = vunpack.c.l.b16 %v868
    %v1527 = vunpack.c.h.b16 %v868
    %v1528 = vunpack.c.l.b16 %v869
    %v1529 = vunpack.c.h.b16 %v869
    %v1530 = vunpack.c.l.b16 %v870
    %v1531 = vunpack.c.h.b16 %v870
    %v1532 = vunpack.c.l.b16 %v871
    %v1533 = vunpack.c.h.b16 %v871
    %v1534 = vunpack.c.l.b16 %v872
    %v1535 = vunpack.c.h.b16 %v872
    %v1536 = vunpack.c.l.b16 %v873
    %v1537 = vunpack.c.h.b16 %v873
    %v1538 = vunpack.c.l.b16 %v874
    %v1539 = vunpack.c.h.b16 %v874
    %v1540 = vunpack.c.l.b16 %v875
    %v1541 = vunpack.c.h.b16 %v875
    %v1542 = vunpack.c.l.b16 %v876
    %v1543 = vunpack.c.h.b16 %v876
    %v1544 = vunpack.c.l.b16 %v877
    %v1545 = vunpack.c.h.b16 %v877
    %v1546 = vunpack.c.l.b16 %v878
    %v1547 = vunpack.c.h.b16 %v878
    %v1548 = vunpack.c.l.b16 %v879
    %v1549 = vunpack.c.h.b16 %v879
    %v1550 = vunpack.c.l.b16 %v880
    %v1551 = vunpack.c.h.b16 %v880
    %v1552 = vunpack.c.l.b16 %v881
    %v1553 = vunpack.c.h.b16 %v881
    %v1554 = vunpack.c.l.b16 %v882
    %v1555 = vunpack.c.h.b16 %v882
    %v1556 = vunpack.c.l.b16 %v883
    %v1557 = vunpack.c.h.b16 %v883
    %v1558 = vunpack.c.l.b16 %v884
    %v1559 = vunpack.c.h.b16 %v884
    %v1560 = vunpack.c.l.b16 %v885
    %v1561 = vunpack.c.h.b16 %v885
    %v1562 = vunpack.c.l.b16 %v886
    %v1563 = vunpack.c.h.b16 %v886
    %v1564 = vunpack.c.l.b16 %v887
    %v1565 = vunpack.c.h.b16 %v887
    %v1566 = vunpack.c.l.b16 %v888
    %v1567 = vunpack.c.h.b16 %v888
    %v1568 = vunpack.c.l.b16 %v889
    %v1569 = vunpack.c.h.b16 %v889
    %v1570 = vunpack.c.l.b16 %v890
    %v1571 = vunpack.c.h.b16 %v890
    %v1572 = vunpack.c.l.b16 %v891
    %v1573 = vunpack.c.h.b16 %v891
    %v1574 = vunpack.c.l.b16 %v892
    %v1575 = vunpack.c.h.b16 %v892
    %v1576 = vunpack.c.l.b16 %v893
    %v1577 = vunpack.c.h.b16 %v893
    %v1578 = vunpack.c.l.b16 %v894
    %v1579 = vunpack.c.h.b16 %v894
    %v1580 = vunpack.c.l.b16 %v895
    %v1581 = vunpack.c.h.b16 %v895
    %v1582 = vunpack.c.l.b16 %v896
    %v1583 = vunpack.c.h.b16 %v896
    %v1584 = vunpack.c.l.b16 %v897
    %v1585 = vunpack.c.h.b16 %v897
    %v1586 = vunpack.c.l.b16 %v898
    %v1587 = vunpack.c.h.b16 %v898
    %v1588 = vunpack.c.l.b16 %v899
    %v1589 = vunpack.c.h.b16 %v899
    %v1590 = vunpack.c.l.b16 %v900
    %v1591 = vunpack.c.h.b16 %v900
    %v1592 = vunpack.c.l.b16 %v901
    %v1593 = vunpack.c.h.b16 %v901
    %v1594 = vunpack.c.l.b16 %v902
    %v1595 = vunpack.c.h.b16 %v902
    %v1596 = vunpack.c.l.b16 %v903
    %v1597 = vunpack.c.h.b16 %v903
    %v1598 = vunpack.c.l.b16 %v904
    %v1599 = vunpack.c.h.b16 %v904
    %v1600 = vunpack.c.l.b16 %v905
    %v1601 = vunpack.c.h.b16 %v905
    %v1602 = vunpack.c.l.b16 %v906
    %v1603 = vunpack.c.h.b16 %v906
    %v1604 = vunpack.c.l.b16 %v907
    %v1605 = vunpack.c.h.b16 %v907
    %v1606 = vunpack.c.l.b16 %v908
    %v1607 = vunpack.c.h.b16 %v908
    %v1608 = vunpack.c.l.b16 %v909
    %v1609 = vunpack.c.h.b16 %v909
    %v1610 = vunpack.c.l.b16 %v910
    %v1611 = vunpack.c.h.b16 %v910
    %v1612 = vunpack.c.l.b16 %v911
    %v1613 = vunpack.c.h.b16 %v911
    %v1614 = vunpack.c.l.b16 %v912
    %v1615 = vunpack.c.h.b16 %v912
    %v1616 = vunpack.c.l.b16 %v913
    %v1617 = vunpack.c.h.b16 %v913
    %v1618 = vunpack.c.l.b16 %v914
    %v1619 = vunpack.c.h.b16 %v914
    %v1620 = vunpack.c.l.b16 %v915
    %v1621 = vunpack.c.h.b16 %v915
    %v1622 = vunpack.c.l.b16 %v916
    %v1623 = vunpack.c.h.b16 %v916
    %v1624 = vunpack.c.l.b16 %v917
    %v1625 = vunpack.c.h.b16 %v917
    %v1626 = vunpack.c.l.b16 %v918
    %v1627 = vunpack.c.h.b16 %v918
    %v1628 = vunpack.c.l.b16 %v919
    %v1629 = vunpack.c.h.b16 %v919
    %v1630 = vunpack.c.l.b16 %v920
    %v1631 = vunpack.c.h.b16 %v920
    %v1632 = vunpack.c.l.b16 %v921
    %v1633 = vunpack.c.h.b16 %v921
    %v1634 = vunpack.c.l.b16 %v922
    %v1635 = vunpack.c.h.b16 %v922
    %v1636 = vunpack.c.l.b16 %v923
    %v1637 = vunpack.c.h.b16 %v923
    %v1638 = vunpack.c.l.b16 %v924
    %v1639 = vunpack.c.h.b16 %v924
    %v1640 = vunpack.c.l.b16 %v925
    %v1641 = vunpack.c.h.b16 %v925
    %v1642 = vunpack.c.l.b16 %v926
    %v1643 = vunpack.c.h.b16 %v926
    %v1644 = vunpack.c.l.b16 %v927
    %v1645 = vunpack.c.h.b16 %v927
    %v1646 = vunpack.c.l.b16 %v928
    %v1647 = vunpack.c.h.b16 %v928
    %v1648 = vunpack.c.l.b16 %v929
    %v1649 = vunpack.c.h.b16 %v929
    %v1650 = vunpack.c.l.b16 %v930
    %v1651 = vunpack.c.h.b16 %v930
    %v1652 = vunpack.c.l.b16 %v931
    %v1653 = vunpack.c.h.b16 %v931
    %v1654 = vunpack.c.l.b16 %v932
    %v1655 = vunpack.c.h.b16 %v932
    %v1656 = vunpack.c.l.b16 %v933
    %v1657 = vunpack.c.h.b16 %v933
    %v1658 = vunpack.c.l.b16 %v934
    %v1659 = vunpack.c.h.b16 %v934
    %v1660 = vunpack.c.l.b16 %v935
    %v1661 = vunpack.c.h.b16 %v935
    %v1662 = vunpack.c.l.b16 %v936
    %v1663 = vunpack.c.h.b16 %v936
    %v1664 = vunpack.c.l.b16 %v937
    %v1665 = vunpack.c.h.b16 %v937
    %v1666 = vunpack.c.l.b16 %v938
    %v1667 = vunpack.c.h.b16 %v938
    %v1668 = vunpack.c.l.b16 %v939
    %v1669 = vunpack.c.h.b16 %v939
    %v1670 = vunpack.c.l.b16 %v940
    %v1671 = vunpack.c.h.b16 %v940
    %v1672 = vunpack.c.l.b16 %v941
    %v1673 = vunpack.c.h.b16 %v941
    %v1674 = vunpack.c.l.b16 %v942
    %v1675 = vunpack.c.h.b16 %v942
    %v1676 = vunpack.c.l.b16 %v943
    %v1677 = vunpack.c.h.b16 %v943
    %v1678 = vunpack.c.l.b16 %v944
    %v1679 = vunpack.c.h.b16 %v944
    %v1680 = vunpack.c.l.b16 %v945
    %v1681 = vunpack.c.h.b16 %v945
    %v1682 = vunpack.c.l.b16 %v946
    %v1683 = vunpack.c.h.b16 %v946
    %v1684 = vunpack.c.l.b16 %v947
    %v1685 = vunpack.c.h.b16 %v947
    %v1686 = vunpack.c.l.b16 %v948
    %v1687 = vunpack.c.h.b16 %v948
    %v1688 = vunpack.c.l.b16 %v949
    %v1689 = vunpack.c.h.b16 %v949
    %v1690 = vunpack.c.l.b16 %v950
    %v1691 = vunpack.c.h.b16 %v950
    %v1692 = vunpack.c.l.b16 %v951
    %v1693 = vunpack.c.h.b16 %v951
    %v1694 = vunpack.c.l.b16 %v952
    %v1695 = vunpack.c.h.b16 %v952
    %v1696 = vunpack.c.l.b16 %v953
    %v1697 = vunpack.c.h.b16 %v953
    %v1698 = vunpack.c.l.b16 %v954
    %v1699 = vunpack.c.h.b16 %v954
    %v1700 = vunpack.c.l.b16 %v955
    %v1701 = vunpack.c.h.b16 %v955
    %v1702 = vunpack.c.l.b16 %v956
    %v1703 = vunpack.c.h.b16 %v956
    %v1704 = vunpack.c.l.b16 %v957
    %v1705 = vunpack.c.h.b16 %v957
    %v1706 = vunpack.c.l.b16 %v958
    %v1707 = vunpack.c.h.b16 %v958
    %v1708 = vunpack.c.l.b16 %v959
    %v1709 = vunpack.c.h.b16 %v959
    %v1710 = vunpack.c.l.b16 %v960
    %v1711 = vunpack.c.h.b16 %v960
    %v1712 = vunpack.c.l.b16 %v961
    %v1713 = vunpack.c.h.b16 %v961
    %v1714 = vunpack.c.l.b16 %v962
    %v1715 = vunpack.c.h.b16 %v962
    %v1716 = vunpack.c.l.b16 %v963
    %v1717 = vunpack.c.h.b16 %v963
    %v1718 = vunpack.c.l.b16 %v964
    %v1719 = vunpack.c.h.b16 %v964
    %v1720 = vunpack.c.l.b16 %v965
    %v1721 = vunpack.c.h.b16 %v965
    %v1722 = vunpack.c.l.b16 %v966
    %v1723 = vunpack.c.h.b16 %v966
    %v1724 = vunpack.c.l.b16 %v967
    %v1725 = vunpack.c.h.b16 %v967
    %v1726 = vunpack.c.l.b16 %v968
    %v1727 = vunpack.c.h.b16 %v968
    %v1728 = vunpack.c.l.b16 %v969
    %v1729 = vunpack.c.h.b16 %v969
    %v1730 = vunpack.c.l.b16 %v970
    %v1731 = vunpack.c.h.b16 %v970
    %v1732 = vunpack.c.l.b16 %v971
    %v1733 = vunpack.c.h.b16 %v971
    %v1734 = vunpack.c.l.b16 %v972
    %v1735 = vunpack.c.h.b16 %v972
    %v1736 = vunpack.c.l.b16 %v973
    %v1737 = vunpack.c.h.b16 %v973
    %v1738 = vunpack.c.l.b16 %v974
    %v1739 = vunpack.c.h.b16 %v974
    %v1740 = vunpack.c.l.b16 %v975
    %v1741 = vunpack.c.h.b16 %v975
    %v1742 = vunpack.c.l.b16 %v976
    %v1743 = vunpack.c.h.b16 %v976
    %v1744 = vunpack.c.l.b16 %v977
    %v1745 = vunpack.c.h.b16 %v977
    %v1746 = vunpack.c.l.b16 %v978
    %v1747 = vunpack.c.h.b16 %v978
    %v1748 = vunpack.c.l.b16 %v979
    %v1749 = vunpack.c.h.b16 %v979
    %v1750 = vunpack.c.l.b16 %v980
    %v1751 = vunpack.c.h.b16 %v980
    %v1752 = vunpack.c.l.b16 %v981
    %v1753 = vunpack.c.h.b16 %v981
    %v1754 = vunpack.c.l.b16 %v982
    %v1755 = vunpack.c.h.b16 %v982
    %v1756 = vunpack.c.l.b16 %v983
    %v1757 = vunpack.c.h.b16 %v983
    %v1758 = vunpack.c.l.b16 %v984
    %v1759 = vunpack.c.h.b16 %v984
    %v1760 = vunpack.c.l.b16 %v985
    %v1761 = vunpack.c.h.b16 %v985
    %v1762 = vunpack.c.l.b16 %v986
    %v1763 = vunpack.c.h.b16 %v986
    %v1764 = vunpack.c.l.b16 %v987
    %v1765 = vunpack.c.h.b16 %v987
    %v1766 = vunpack.c.l.b16 %v988
    %v1767 = vunpack.c.h.b16 %v988
    %v1768 = vunpack.c.l.b16 %v989
    %v1769 = vunpack.c.h.b16 %v989
    %v1770 = vunpack.c.l.b16 %v990
    %v1771 = vunpack.c.h.b16 %v990
    %v1772 = vunpack.c.l.b16 %v991
    %v1773 = vunpack.c.h.b16 %v991
    %v1774 = vunpack.c.l.b16 %v992
    %v1775 = vunpack.c.h.b16 %v992
    %v1776 = vunpack.c.l.b16 %v993
    %v1777 = vunpack.c.h.b16 %v993
    %v1778 = vunpack.c.l.b16 %v994
    %v1779 = vunpack.c.h.b16 %v994
    %v1780 = vunpack.c.l.b16 %v995
    %v1781 = vunpack.c.h.b16 %v995
    %v1782 = vunpack.c.l.b16 %v996
    %v1783 = vunpack.c.h.b16 %v996
    %v1784 = vunpack.c.l.b16 %v997
    %v1785 = vunpack.c.h.b16 %v997
    %v1786 = vunpack.c.l.b16 %v998
    %v1787 = vunpack.c.h.b16 %v998
    %v1788 = vunpack.c.l.b16 %v999
    %v1789 = vunpack.c.h.b16 %v999
    %v1790 = vunpack.c.l.b16 %v1000
    %v1791 = vunpack.c.h.b16 %v1000
    %v1792 = vunpack.c.l.b16 %v1001
    %v1793 = vunpack.c.h.b16 %v1001
    %v1794 = vunpack.c.l.b16 %v1002
    %v1795 = vunpack.c.h.b16 %v1002
    %v1796 = vunpack.c.l.b16 %v1003
    %v1797 = vunpack.c.h.b16 %v1003
    %v1798 = vunpack.c.l.b16 %v1004
    %v1799 = vunpack.c.h.b16 %v1004
    %v1800 = vunpack.c.l.b16 %v1005
    %v1801 = vunpack.c.h.b16 %v1005
    %v1802 = vunpack.c.l.b16 %v1006
    %v1803 = vunpack.c.h.b16 %v1006
    %v1804 = vunpack.c.l.b16 %v1007
    %v1805 = vunpack.c.h.b16 %v1007
    %v1806 = vunpack.c.l.b16 %v1008
    %v1807 = vunpack.c.h.b16 %v1008
    %v1808 = vunpack.c.l.b16 %v1009
    %v1809 = vunpack.c.h.b16 %v1009
    %v1810 = vunpack.c.l.b16 %v1010
    %v1811 = vunpack.c.h.b16 %v1010
    %v1812 = vunpack.c.l.b16 %v1011
    %v1813 = vunpack.c.h.b16 %v1011
    %v1814 = vunpack.c.l.b16 %v1012
    %v1815 = vunpack.c.h.b16 %v1012
    %v1816 = vunpack.c.l.b16 %v1013
    %v1817 = vunpack.c.h.b16 %v1013
    %v1818 = vunpack.c.l.b16 %v1014
    %v1819 = vunpack.c.h.b16 %v1014
    %v1820 = vunpack.c.l.b16 %v1015
    %v1821 = vunpack.c.h.b16 %v1015
    %v1822 = vunpack.c.l.b16 %v1016
    %v1823 = vunpack.c.h.b16 %v1016
    %v1824 = vunpack.c.l.b16 %v1017
    %v1825 = vunpack.c.h.b16 %v1017
    %v1826 = vunpack.c.l.b16 %v1018
    %v1827 = vunpack.c.h.b16 %v1018
    %v1828 = vunpack.c.l.b16 %v1019
    %v1829 = vunpack.c.h.b16 %v1019
    %v1830 = vpack.c.b16 %v1326, %v1318
    %v1831 = vpack.c.b16 %v1327, %v1319
    %v1832 = vpack.c.b16 %v1328, %v1320
    %v1833 = vpack.c.b16 %v1329, %v1321
    %v1834 = vpack.c.b16 %v1330, %v1322
    %v1835 = vpack.c.b16 %v1331, %v1323
    %v1836 = vpack.c.b16 %v1332, %v1324
    %v1837 = vpack.c.b16 %v1333, %v1325
    %v1838 = vpack.c.b16 %v1342, %v1334
    %v1839 = vpack.c.b16 %v1343, %v1335
    %v1840 = vpack.c.b16 %v1344, %v1336
    %v1841 = vpack.c.b16 %v1345, %v1337
    %v1842 = vpack.c.b16 %v1346, %v1338
    %v1843 = vpack.c.b16 %v1347, %v1339
    %v1844 = vpack.c.b16 %v1348, %v1340
    %v1845 = vpack.c.b16 %v1349, %v1341
    %v1846 = vpack.c.b16 %v1358, %v1350
    %v1847 = vpack.c.b16 %v1359, %v1351
    %v1848 = vpack.c.b16 %v1360, %v1352
    %v1849 = vpack.c.b16 %v1361, %v1353
    %v1850 = vpack.c.b16 %v1362, %v1354
    %v1851 = vpack.c.b16 %v1363, %v1355
    %v1852 = vpack.c.b16 %v1364, %v1356
    %v1853 = vpack.c.b16 %v1365, %v1357
    %v1854 = vpack.c.b16 %v1374, %v1366
    %v1855 = vpack.c.b16 %v1375, %v1367
    %v1856 = vpack.c.b16 %v1376, %v1368
    %v1857 = vpack.c.b16 %v1377, %v1369
    %v1858 = vpack.c.b16 %v1378, %v1370
    %v1859 = vpack.c.b16 %v1379, %v1371
    %v1860 = vpack.c.b16 %v1380, %v1372
    %v1861 = vpack.c.b16 %v1381, %v1373
    %v1862 = vpack.c.b16 %v1390, %v1382
    %v1863 = vpack.c.b16 %v1391, %v1383
    %v1864 = vpack.c.b16 %v1392, %v1384
    %v1865 = vpack.c.b16 %v1393, %v1385
    %v1866 = vpack.c.b16 %v1394, %v1386
    %v1867 = vpack.c.b16 %v1395, %v1387
    %v1868 = vpack.c.b16 %v1396, %v1388
    %v1869 = vpack.c.b16 %v1397, %v1389
    %v1870 = vpack.c.b16 %v1406, %v1398
    %v1871 = vpack.c.b16 %v1407, %v1399
    %v1872 = vpack.c.b16 %v1408, %v1400
    %v1873 = vpack.c.b16 %v1409, %v1401
    %v1874 = vpack.c.b16 %v1410, %v1402
    %v1875 = vpack.c.b16 %v1411, %v1403
    %v1876 = vpack.c.b16 %v1412, %v1404
    %v1877 = vpack.c.b16 %v1413, %v1405
    %v1878 = vpack.c.b16 %v1422, %v1414
    %v1879 = vpack.c.b16 %v1423, %v1415
    %v1880 = vpack.c.b16 %v1424, %v1416
    %v1881 = vpack.c.b16 %v1425, %v1417
    %v1882 = vpack.c.b16 %v1426, %v1418
    %v1883 = vpack.c.b16 %v1427, %v1419
    %v1884 = vpack.c.b16 %v1428, %v1420
    %v1885 = vpack.c.b16 %v1429, %v1421
    %v1886 = vpack.c.b16 %v1438, %v1430
    %v1887 = vpack.c.b16 %v1439, %v1431
    %v1888 = vpack.c.b16 %v1440, %v1432
    %v1889 = vpack.c.b16 %v1441, %v1433
    %v1890 = vpack.c.b16 %v1442, %v1434
    %v1891 = vpack.c.b16 %v1443, %v1435
    %v1892 = vpack.c.b16 %v1444, %v1436
    %v1893 = vpack.c.b16 %v1445, %v1437
    %v1894 = vpack.c.b16 %v1454, %v1446
    %v1895 = vpack.c.b16 %v1455, %v1447
    %v1896 = vpack.c.b16 %v1456, %v1448
    %v1897 = vpack.c.b16 %v1457, %v1449
    %v1898 = vpack.c.b16 %v1458, %v1450
    %v1899 = vpack.c.b16 %v1459, %v1451
    %v1900 = vpack.c.b16 %v1460, %v1452
    %v1901 = vpack.c.b16 %v1461, %v1453
    %v1902 = vpack.c.b16 %v1470, %v1462
    %v1903 = vpack.c.b16 %v1471, %v1463
    %v1904 = vpack.c.b16 %v1472, %v1464
    %v1905 = vpack.c.b16 %v1473, %v1465
    %v1906 = vpack.c.b16 %v1474, %v1466
    %v1907 = vpack.c.b16 %v1475, %v1467
    %v1908 = vpack.c.b16 %v1476, %v1468
    %v1909 = vpack.c.b16 %v1477, %v1469
    %v1910 = vpack.c.b16 %v1486, %v1478
    %v1911 = vpack.c.b16 %v1487, %v1479
    %v1912 = vpack.c.b16 %v1488, %v1480
    %v1913 = vpack.c.b16 %v1489, %v1481
    %v1914 = vpack.c.b16 %v1490, %v1482
    %v1915 = vpack.c.b16 %v1491, %v1483
    %v1916 = vpack.c.b16 %v1492, %v1484
    %v1917 = vpack.c.b16 %v1493, %v1485
    %v1918 = vpack.c.b16 %v1502, %v1494
    %v1919 = vpack.c.b16 %v1503, %v1495
    %v1920 = vpack.c.b16 %v1504, %v1496
    %v1921 = vpack.c.b16 %v1505, %v1497
    %v1922 = vpack.c.b16 %v1506, %v1498
    %v1923 = vpack.c.b16 %v1507, %v1499
    %v1924 = vpack.c.b16 %v1508, %v1500
    %v1925 = vpack.c.b16 %v1509, %v1501
    %v1926 = vpack.c.b16 %v1518, %v1510
    %v1927 = vpack.c.b16 %v1519, %v1511
    %v1928 = vpack.c.b16 %v1520, %v1512
    %v1929 = vpack.c.b16 %v1521, %v1513
    %v1930 = vpack.c.b16 %v1522, %v1514
    %v1931 = vpack.c.b16 %v1523, %v1515
    %v1932 = vpack.c.b16 %v1524, %v1516
    %v1933 = vpack.c.b16 %v1525, %v1517
    %v1934 = vpack.c.b16 %v1534, %v1526
    %v1935 = vpack.c.b16 %v1535, %v1527
    %v1936 = vpack.c.b16 %v1536, %v1528
    %v1937 = vpack.c.b16 %v1537, %v1529
    %v1938 = vpack.c.b16 %v1538, %v1530
    %v1939 = vpack.c.b16 %v1539, %v1531
    %v1940 = vpack.c.b16 %v1540, %v1532
    %v1941 = vpack.c.b16 %v1541, %v1533
    %v1942 = vpack.c.b16 %v1550, %v1542
    %v1943 = vpack.c.b16 %v1551, %v1543
    %v1944 = vpack.c.b16 %v1552, %v1544
    %v1945 = vpack.c.b16 %v1553, %v1545
    %v1946 = vpack.c.b16 %v1554, %v1546
    %v1947 = vpack.c.b16 %v1555, %v1547
    %v1948 = vpack.c.b16 %v1556, %v1548
    %v1949 = vpack.c.b16 %v1557, %v1549
    %v1950 = vpack.c.b16 %v1566, %v1558
    %v1951 = vpack.c.b16 %v1567, %v1559
    %v1952 = vpack.c.b16 %v1568, %v1560
    %v1953 = vpack.c.b16 %v1569, %v1561
    %v1954 = vpack.c.b16 %v1570, %v1562
    %v1955 = vpack.c.b16 %v1571, %v1563
    %v1956 = vpack.c.b16 %v1572, %v1564
    %v1957 = vpack.c.b16 %v1573, %v1565
    %v1958 = vpack.c.b16 %v1582, %v1574
    %v1959 = vpack.c.b16 %v1583, %v1575
    %v1960 = vpack.c.b16 %v1584, %v1576
    %v1961 = vpack.c.b16 %v1585, %v1577
    %v1962 = vpack.c.b16 %v1586, %v1578
    %v1963 = vpack.c.b16 %v1587, %v1579
    %v1964 = vpack.c.b16 %v1588, %v1580
    %v1965 = vpack.c.b16 %v1589, %v1581
    %v1966 = vpack.c.b16 %v1598, %v1590
    %v1967 = vpack.c.b16 %v1599, %v1591
    %v1968 = vpack.c.b16 %v1600, %v1592
    %v1969 = vpack.c.b16 %v1601, %v1593
    %v1970 = vpack.c.b16 %v1602, %v1594
    %v1971 = vpack.c.b16 %v1603, %v1595
    %v1972 = vpack.c.b16 %v1604, %v1596
    %v1973 = vpack.c.b16 %v1605, %v1597
    %v1974 = vpack.c.b16 %v1614, %v1606
    %v1975 = vpack.c.b16 %v1615, %v1607
    %v1976 = vpack.c.b16 %v1616, %v1608
    %v1977 = vpack.c.b16 %v1617, %v1609
    %v1978 = vpack.c.b16 %v1618, %v1610
    %v1979 = vpack.c.b16 %v1619, %v1611
    %v1980 = vpack.c.b16 %v1620, %v1612
    %v1981 = vpack.c.b16 %v1621, %v1613
    %v1982 = vpack.c.b16 %v1630, %v1622
    %v1983 = vpack.c.b16 %v1631, %v1623
    %v1984 = vpack.c.b16 %v1632, %v1624
    %v1985 = vpack.c.b16 %v1633, %v1625
    %v1986 = vpack.c.b16 %v1634, %v1626
    %v1987 = vpack.c.b16 %v1635, %v1627
    %v1988 = vpack.c.b16 %v1636, %v1628
    %v1989 = vpack.c.b16 %v1637, %v1629
    %v1990 = vpack.c.b16 %v1646, %v1638
    %v1991 = vpack.c.b16 %v1647, %v1639
    %v1992 = vpack.c.b16 %v1648, %v1640
    %v1993 = vpack.c.b16 %v1649, %v1641
    %v1994 = vpack.c.b16 %v1650, %v1642
    %v1995 = vpack.c.b16 %v1651, %v1643
    %v1996 = vpack.c.b16 %v1652, %v1644
    %v1997 = vpack.c.b16 %v1653, %v1645
    %v1998 = vpack.c.b16 %v1662, %v1654
    %v1999 = vpack.c.b16 %v1663, %v1655
    %v2000 = vpack.c.b16 %v1664, %v1656
    %v2001 = vpack.c.b16 %v1665, %v1657
    %v2002 = vpack.c.b16 %v1666, %v1658
    %v2003 = vpack.c.b16 %v1667, %v1659
    %v2004 = vpack.c.b16 %v1668, %v1660
    %v2005 = vpack.c.b16 %v1669, %v1661
    %v2006 = vpack.c.b16 %v1678, %v1670
    %v2007 = vpack.c.b16 %v1679, %v1671
    %v2008 = vpack.c.b16 %v1680, %v1672
    %v2009 = vpack.c.b16 %v1681, %v1673
    %v2010 = vpack.c.b16 %v1682, %v1674
    %v2011 = vpack.c.b16 %v1683, %v1675
    %v2012 = vpack.c.b16 %v1684, %v1676
    %v2013 = vpack.c.b16 %v1685, %v1677
    %v2014 = vpack.c.b16 %v1694, %v1686
    %v2015 = vpack.c.b16 %v1695, %v1687
    %v2016 = vpack.c.b16 %v1696, %v1688
    %v2017 = vpack.c.b16 %v1697, %v1689
    %v2018 = vpack.c.b16 %v1698, %v1690
    %v2019 = vpack.c.b16 %v1699, %v1691
    %v2020 = vpack.c.b16 %v1700, %v1692
    %v2021 = vpack.c.b16 %v1701, %v1693
    %v2022 = vpack.c.b16 %v1710, %v1702
    %v2023 = vpack.c.b16 %v1711, %v1703
    %v2024 = vpack.c.b16 %v1712, %v1704
    %v2025 = vpack.c.b16 %v1713, %v1705
    %v2026 = vpack.c.b16 %v1714, %v1706
    %v2027 = vpack.c.b16 %v1715, %v1707
    %v2028 = vpack.c.b16 %v1716, %v1708
    %v2029 = vpack.c.b16 %v1717, %v1709
    %v2030 = vpack.c.b16 %v1726, %v1718
    %v2031 = vpack.c.b16 %v1727, %v1719
    %v2032 = vpack.c.b16 %v1728, %v1720
    %v2033 = vpack.c.b16 %v1729, %v1721
    %v2034 = vpack.c.b16 %v1730, %v1722
    %v2035 = vpack.c.b16 %v1731, %v1723
    %v2036 = vpack.c.b16 %v1732, %v1724
    %v2037 = vpack.c.b16 %v1733, %v1725
    %v2038 = vpack.c.b16 %v1742, %v1734
    %v2039 = vpack.c.b16 %v1743, %v1735
    %v2040 = vpack.c.b16 %v1744, %v1736
    %v2041 = vpack.c.b16 %v1745, %v1737
    %v2042 = vpack.c.b16 %v1746, %v1738
    %v2043 = vpack.c.b16 %v1747, %v1739
    %v2044 = vpack.c.b16 %v1748, %v1740
    %v2045 = vpack.c.b16 %v1749, %v1741
    %v2046 = vpack.c.b16 %v1758, %v1750
    %v2047 = vpack.c.b16 %v1759, %v1751
    %v2048 = vpack.c.b16 %v1760, %v1752
    %v2049 = vpack.c.b16 %v1761, %v1753
    %v2050 = vpack.c.b16 %v1762, %v1754
    %v2051 = vpack.c.b16 %v1763, %v1755
    %v2052 = vpack.c.b16 %v1764, %v1756
    %v2053 = vpack.c.b16 %v1765, %v1757
    %v2054 = vpack.c.b16 %v1774, %v1766
    %v2055 = vpack.c.b16 %v1775, %v1767
    %v2056 = vpack.c.b16 %v1776, %v1768
    %v2057 = vpack.c.b16 %v1777, %v1769
    %v2058 = vpack.c.b16 %v1778, %v1770
    %v2059 = vpack.c.b16 %v1779, %v1771
    %v2060 = vpack.c.b16 %v1780, %v1772
    %v2061 = vpack.c.b16 %v1781, %v1773
    %v2062 = vpack.c.b16 %v1790, %v1782
    %v2063 = vpack.c.b16 %v1791, %v1783
    %v2064 = vpack.c.b16 %v1792, %v1784
    %v2065 = vpack.c.b16 %v1793, %v1785
    %v2066 = vpack.c.b16 %v1794, %v1786
    %v2067 = vpack.c.b16 %v1795, %v1787
    %v2068 = vpack.c.b16 %v1796, %v1788
    %v2069 = vpack.c.b16 %v1797, %v1789
    %v2070 = vpack.c.b16 %v1806, %v1798
    %v2071 = vpack.c.b16 %v1807, %v1799
    %v2072 = vpack.c.b16 %v1808, %v1800
    %v2073 = vpack.c.b16 %v1809, %v1801
    %v2074 = vpack.c.b16 %v1810, %v1802
    %v2075 = vpack.c.b16 %v1811, %v1803
    %v2076 = vpack.c.b16 %v1812, %v1804
    %v2077 = vpack.c.b16 %v1813, %v1805
    %v2078 = vpack.c.b16 %v1822, %v1814
    %v2079 = vpack.c.b16 %v1823, %v1815
    %v2080 = vpack.c.b16 %v1824, %v1816
    %v2081 = vpack.c.b16 %v1825, %v1817
    %v2082 = vpack.c.b16 %v1826, %v1818
    %v2083 = vpack.c.b16 %v1827, %v1819
    %v2084 = vpack.c.b16 %v1828, %v1820
    %v2085 = vpack.c.b16 %v1829, %v1821
    %2342 = vmatprep.subr.bf16.mxu0 %v1887
    %2343 = vmatpush1.bf16.msra.mxu0 %v1886
    %2344 = vmatprep.subr.bf16.mxu0 %v1879
    %2345 = vmatpush1.bf16.msra.mxu0 %v1878
    %2346 = vmatprep.subr.bf16.mxu0 %v1871
    %2347 = vmatpush1.bf16.msra.mxu0 %v1870
    %2348 = vmatprep.subr.bf16.mxu0 %v1863
    %2349 = vmatpush1.bf16.msra.mxu0 %v1862
    %2350 = vmatprep.subr.bf16.mxu0 %v1855
    %2351 = vmatpush1.bf16.msra.mxu0 %v1854
    %2352 = vmatprep.subr.bf16.mxu0 %v1847
    %2353 = vmatpush1.bf16.msra.mxu0 %v1846
    %2354 = vmatprep.subr.bf16.mxu0 %v1839
    %2355 = vmatpush1.bf16.msra.mxu0 %v1838
    %2356 = vmatprep.subr.bf16.mxu0 %v1831
    %2357 = vmatpush1.bf16.msra.mxu0 %v1830
    %2358 = vmatprep.subr.bf16.mxu0 %v1951
    %2359 = vmatpush2.bf16.msra.mxu0 %v1950
    %2360 = vmatprep.subr.bf16.mxu0 %v1943
    %2361 = vmatpush2.bf16.msra.mxu0 %v1942
    %2362 = vmatprep.subr.bf16.mxu0 %v1935
    %2363 = vmatpush2.bf16.msra.mxu0 %v1934
    %2364 = vmatprep.subr.bf16.mxu0 %v1927
    %2365 = vmatpush2.bf16.msra.mxu0 %v1926
    %2366 = vmatprep.subr.bf16.mxu0 %v1919
    %2367 = vmatpush2.bf16.msra.mxu0 %v1918
    %2368 = vmatprep.subr.bf16.mxu0 %v1911
    %2369 = vmatpush2.bf16.msra.mxu0 %v1910
    %2370 = vmatprep.subr.bf16.mxu0 %v1903
    %2371 = vmatpush2.bf16.msra.mxu0 %v1902
    %2372 = vmatprep.subr.bf16.mxu0 %v1895
    %2373 = vmatpush2.bf16.msra.mxu0 %v1894
    %2374 = vmatprep.mubr.bf16.mxu0 %v761
    %2375 = vmatmul.mubr.bf16.gmra.mxu0 %v760
    %v2376 = vpop.f32.mrf.mxu0
    %v2377 = vadd.f32 %v1025, %v2376
    %v2378 = vpop.f32.mrf.mxu0
    %v2379 = vadd.f32 %v1029, %v2378
    %v2380 = vpop.f32.mrf.mxu0
    %v2381 = vadd.f32 %v1025, %v2380
    %v2382 = vpop.f32.mrf.mxu0
    %v2383 = vadd.f32 %v1029, %v2382
    %2384 = vdwg.mxu0
    %2385 = vmatprep.subr.bf16.mxu0 %v2015
    %2386 = vmatpush1.bf16.msra.mxu0 %v2014
    %2387 = vmatprep.subr.bf16.mxu0 %v2007
    %2388 = vmatpush1.bf16.msra.mxu0 %v2006
    %2389 = vmatprep.subr.bf16.mxu0 %v1999
    %2390 = vmatpush1.bf16.msra.mxu0 %v1998
    %2391 = vmatprep.subr.bf16.mxu0 %v1991
    %2392 = vmatpush1.bf16.msra.mxu0 %v1990
    %2393 = vmatprep.subr.bf16.mxu0 %v1983
    %2394 = vmatpush1.bf16.msra.mxu0 %v1982
    %2395 = vmatprep.subr.bf16.mxu0 %v1975
    %2396 = vmatpush1.bf16.msra.mxu0 %v1974
    %2397 = vmatprep.subr.bf16.mxu0 %v1967
    %2398 = vmatpush1.bf16.msra.mxu0 %v1966
    %2399 = vmatprep.subr.bf16.mxu0 %v1959
    %2400 = vmatpush1.bf16.msra.mxu0 %v1958
    %2401 = vmatprep.subr.bf16.mxu0 %v2079
    %2402 = vmatpush2.bf16.msra.mxu0 %v2078
    %2403 = vmatprep.subr.bf16.mxu0 %v2071
    %2404 = vmatpush2.bf16.msra.mxu0 %v2070
    %2405 = vmatprep.subr.bf16.mxu0 %v2063
    %2406 = vmatpush2.bf16.msra.mxu0 %v2062
    %2407 = vmatprep.subr.bf16.mxu0 %v2055
    %2408 = vmatpush2.bf16.msra.mxu0 %v2054
    %2409 = vmatprep.subr.bf16.mxu0 %v2047
    %2410 = vmatpush2.bf16.msra.mxu0 %v2046
    %2411 = vmatprep.subr.bf16.mxu0 %v2039
    %2412 = vmatpush2.bf16.msra.mxu0 %v2038
    %2413 = vmatprep.subr.bf16.mxu0 %v2031
    %2414 = vmatpush2.bf16.msra.mxu0 %v2030
    %2415 = vmatprep.subr.bf16.mxu0 %v2023
    %2416 = vmatpush2.bf16.msra.mxu0 %v2022
    %2417 = vmatprep.mubr.bf16.mxu0 %v763
    %2418 = vmatmul.mubr.bf16.gmra.mxu0 %v762
    %v2419 = vpop.f32.mrf.mxu0
    %v2420 = vadd.f32 %v2377, %v2419
    %v2421 = vpop.f32.mrf.mxu0
    %v2422 = vadd.f32 %v2379, %v2421
    %v2423 = vpop.f32.mrf.mxu0
    %v2424 = vadd.f32 %v2381, %v2423
    %v2425 = vpop.f32.mrf.mxu0
    %v2426 = vadd.f32 %v2383, %v2425
    %2427 = vdwg.mxu0
    %2428 = vmatprep.subr.bf16.mxu0 %v1889
    %2429 = vmatpush1.bf16.msra.mxu0 %v1888
    %2430 = vmatprep.subr.bf16.mxu0 %v1881
    %2431 = vmatpush1.bf16.msra.mxu0 %v1880
    %2432 = vmatprep.subr.bf16.mxu0 %v1873
    %2433 = vmatpush1.bf16.msra.mxu0 %v1872
    %2434 = vmatprep.subr.bf16.mxu0 %v1865
    %2435 = vmatpush1.bf16.msra.mxu0 %v1864
    %2436 = vmatprep.subr.bf16.mxu0 %v1857
    %2437 = vmatpush1.bf16.msra.mxu0 %v1856
    %2438 = vmatprep.subr.bf16.mxu0 %v1849
    %2439 = vmatpush1.bf16.msra.mxu0 %v1848
    %2440 = vmatprep.subr.bf16.mxu0 %v1841
    %2441 = vmatpush1.bf16.msra.mxu0 %v1840
    %2442 = vmatprep.subr.bf16.mxu0 %v1833
    %2443 = vmatpush1.bf16.msra.mxu0 %v1832
    %2444 = vmatprep.subr.bf16.mxu0 %v1953
    %2445 = vmatpush2.bf16.msra.mxu0 %v1952
    %2446 = vmatprep.subr.bf16.mxu0 %v1945
    %2447 = vmatpush2.bf16.msra.mxu0 %v1944
    %2448 = vmatprep.subr.bf16.mxu0 %v1937
    %2449 = vmatpush2.bf16.msra.mxu0 %v1936
    %2450 = vmatprep.subr.bf16.mxu0 %v1929
    %2451 = vmatpush2.bf16.msra.mxu0 %v1928
    %2452 = vmatprep.subr.bf16.mxu0 %v1921
    %2453 = vmatpush2.bf16.msra.mxu0 %v1920
    %2454 = vmatprep.subr.bf16.mxu0 %v1913
    %2455 = vmatpush2.bf16.msra.mxu0 %v1912
    %2456 = vmatprep.subr.bf16.mxu0 %v1905
    %2457 = vmatpush2.bf16.msra.mxu0 %v1904
    %2458 = vmatprep.subr.bf16.mxu0 %v1897
    %2459 = vmatpush2.bf16.msra.mxu0 %v1896
    %2460 = vmatprep.mubr.bf16.mxu0 %v761
    %2461 = vmatmul.mubr.bf16.gmra.mxu0 %v760
    %v2462 = vpop.f32.mrf.mxu0
    %v2463 = vadd.f32 %v1033, %v2462
    %v2464 = vpop.f32.mrf.mxu0
    %v2465 = vadd.f32 %v1037, %v2464
    %v2466 = vpop.f32.mrf.mxu0
    %v2467 = vadd.f32 %v1033, %v2466
    %v2468 = vpop.f32.mrf.mxu0
    %v2469 = vadd.f32 %v1037, %v2468
    %2470 = vdwg.mxu0
    %2471 = vmatprep.subr.bf16.mxu0 %v2017
    %2472 = vmatpush1.bf16.msra.mxu0 %v2016
    %2473 = vmatprep.subr.bf16.mxu0 %v2009
    %2474 = vmatpush1.bf16.msra.mxu0 %v2008
    %2475 = vmatprep.subr.bf16.mxu0 %v2001
    %2476 = vmatpush1.bf16.msra.mxu0 %v2000
    %2477 = vmatprep.subr.bf16.mxu0 %v1993
    %2478 = vmatpush1.bf16.msra.mxu0 %v1992
    %2479 = vmatprep.subr.bf16.mxu0 %v1985
    %2480 = vmatpush1.bf16.msra.mxu0 %v1984
    %2481 = vmatprep.subr.bf16.mxu0 %v1977
    %2482 = vmatpush1.bf16.msra.mxu0 %v1976
    %2483 = vmatprep.subr.bf16.mxu0 %v1969
    %2484 = vmatpush1.bf16.msra.mxu0 %v1968
    %2485 = vmatprep.subr.bf16.mxu0 %v1961
    %2486 = vmatpush1.bf16.msra.mxu0 %v1960
    %2487 = vmatprep.subr.bf16.mxu0 %v2081
    %2488 = vmatpush2.bf16.msra.mxu0 %v2080
    %2489 = vmatprep.subr.bf16.mxu0 %v2073
    %2490 = vmatpush2.bf16.msra.mxu0 %v2072
    %2491 = vmatprep.subr.bf16.mxu0 %v2065
    %2492 = vmatpush2.bf16.msra.mxu0 %v2064
    %2493 = vmatprep.subr.bf16.mxu0 %v2057
    %2494 = vmatpush2.bf16.msra.mxu0 %v2056
    %2495 = vmatprep.subr.bf16.mxu0 %v2049
    %2496 = vmatpush2.bf16.msra.mxu0 %v2048
    %2497 = vmatprep.subr.bf16.mxu0 %v2041
    %2498 = vmatpush2.bf16.msra.mxu0 %v2040
    %2499 = vmatprep.subr.bf16.mxu0 %v2033
    %2500 = vmatpush2.bf16.msra.mxu0 %v2032
    %2501 = vmatprep.subr.bf16.mxu0 %v2025
    %2502 = vmatpush2.bf16.msra.mxu0 %v2024
    %2503 = vmatprep.mubr.bf16.mxu0 %v763
    %2504 = vmatmul.mubr.bf16.gmra.mxu0 %v762
    %v2505 = vpop.f32.mrf.mxu0
    %v2506 = vadd.f32 %v2463, %v2505
    %v2507 = vpop.f32.mrf.mxu0
    %v2508 = vadd.f32 %v2465, %v2507
    %v2509 = vpop.f32.mrf.mxu0
    %v2510 = vadd.f32 %v2467, %v2509
    %v2511 = vpop.f32.mrf.mxu0
    %v2512 = vadd.f32 %v2469, %v2511
    %2513 = vdwg.mxu0
    %2514 = vmatprep.subr.bf16.mxu0 %v1891
    %2515 = vmatpush1.bf16.msra.mxu0 %v1890
    %2516 = vmatprep.subr.bf16.mxu0 %v1883
    %2517 = vmatpush1.bf16.msra.mxu0 %v1882
    %2518 = vmatprep.subr.bf16.mxu0 %v1875
    %2519 = vmatpush1.bf16.msra.mxu0 %v1874
    %2520 = vmatprep.subr.bf16.mxu0 %v1867
    %2521 = vmatpush1.bf16.msra.mxu0 %v1866
    %2522 = vmatprep.subr.bf16.mxu0 %v1859
    %2523 = vmatpush1.bf16.msra.mxu0 %v1858
    %2524 = vmatprep.subr.bf16.mxu0 %v1851
    %2525 = vmatpush1.bf16.msra.mxu0 %v1850
    %2526 = vmatprep.subr.bf16.mxu0 %v1843
    %2527 = vmatpush1.bf16.msra.mxu0 %v1842
    %2528 = vmatprep.subr.bf16.mxu0 %v1835
    %2529 = vmatpush1.bf16.msra.mxu0 %v1834
    %2530 = vmatprep.subr.bf16.mxu0 %v1955
    %2531 = vmatpush2.bf16.msra.mxu0 %v1954
    %2532 = vmatprep.subr.bf16.mxu0 %v1947
    %2533 = vmatpush2.bf16.msra.mxu0 %v1946
    %2534 = vmatprep.subr.bf16.mxu0 %v1939
    %2535 = vmatpush2.bf16.msra.mxu0 %v1938
    %2536 = vmatprep.subr.bf16.mxu0 %v1931
    %2537 = vmatpush2.bf16.msra.mxu0 %v1930
    %2538 = vmatprep.subr.bf16.mxu0 %v1923
    %2539 = vmatpush2.bf16.msra.mxu0 %v1922
    %2540 = vmatprep.subr.bf16.mxu0 %v1915
    %2541 = vmatpush2.bf16.msra.mxu0 %v1914
    %2542 = vmatprep.subr.bf16.mxu0 %v1907
    %2543 = vmatpush2.bf16.msra.mxu0 %v1906
    %2544 = vmatprep.subr.bf16.mxu0 %v1899
    %2545 = vmatpush2.bf16.msra.mxu0 %v1898
    %2546 = vmatprep.mubr.bf16.mxu0 %v761
    %2547 = vmatmul.mubr.bf16.gmra.mxu0 %v760
    %v2548 = vpop.f32.mrf.mxu0
    %v2549 = vadd.f32 %v1041, %v2548
    %v2550 = vpop.f32.mrf.mxu0
    %v2551 = vadd.f32 %v1045, %v2550
    %v2552 = vpop.f32.mrf.mxu0
    %v2553 = vadd.f32 %v1041, %v2552
    %v2554 = vpop.f32.mrf.mxu0
    %v2555 = vadd.f32 %v1045, %v2554
    %2556 = vdwg.mxu0
    %2557 = vmatprep.subr.bf16.mxu0 %v2019
    %2558 = vmatpush1.bf16.msra.mxu0 %v2018
    %2559 = vmatprep.subr.bf16.mxu0 %v2011
    %2560 = vmatpush1.bf16.msra.mxu0 %v2010
    %2561 = vmatprep.subr.bf16.mxu0 %v2003
    %2562 = vmatpush1.bf16.msra.mxu0 %v2002
    %2563 = vmatprep.subr.bf16.mxu0 %v1995
    %2564 = vmatpush1.bf16.msra.mxu0 %v1994
    %2565 = vmatprep.subr.bf16.mxu0 %v1987
    %2566 = vmatpush1.bf16.msra.mxu0 %v1986
    %2567 = vmatprep.subr.bf16.mxu0 %v1979
    %2568 = vmatpush1.bf16.msra.mxu0 %v1978
    %2569 = vmatprep.subr.bf16.mxu0 %v1971
    %2570 = vmatpush1.bf16.msra.mxu0 %v1970
    %2571 = vmatprep.subr.bf16.mxu0 %v1963
    %2572 = vmatpush1.bf16.msra.mxu0 %v1962
    %2573 = vmatprep.subr.bf16.mxu0 %v2083
    %2574 = vmatpush2.bf16.msra.mxu0 %v2082
    %2575 = vmatprep.subr.bf16.mxu0 %v2075
    %2576 = vmatpush2.bf16.msra.mxu0 %v2074
    %2577 = vmatprep.subr.bf16.mxu0 %v2067
    %2578 = vmatpush2.bf16.msra.mxu0 %v2066
    %2579 = vmatprep.subr.bf16.mxu0 %v2059
    %2580 = vmatpush2.bf16.msra.mxu0 %v2058
    %2581 = vmatprep.subr.bf16.mxu0 %v2051
    %2582 = vmatpush2.bf16.msra.mxu0 %v2050
    %2583 = vmatprep.subr.bf16.mxu0 %v2043
    %2584 = vmatpush2.bf16.msra.mxu0 %v2042
    %2585 = vmatprep.subr.bf16.mxu0 %v2035
    %2586 = vmatpush2.bf16.msra.mxu0 %v2034
    %2587 = vmatprep.subr.bf16.mxu0 %v2027
    %2588 = vmatpush2.bf16.msra.mxu0 %v2026
    %2589 = vmatprep.mubr.bf16.mxu0 %v763
    %2590 = vmatmul.mubr.bf16.gmra.mxu0 %v762
    %v2591 = vpop.f32.mrf.mxu0
    %v2592 = vadd.f32 %v2549, %v2591
    %v2593 = vpop.f32.mrf.mxu0
    %v2594 = vadd.f32 %v2551, %v2593
    %v2595 = vpop.f32.mrf.mxu0
    %v2596 = vadd.f32 %v2553, %v2595
    %v2597 = vpop.f32.mrf.mxu0
    %v2598 = vadd.f32 %v2555, %v2597
    %2599 = vdwg.mxu0
    %2600 = vmatprep.subr.bf16.mxu0 %v1893
    %2601 = vmatpush1.bf16.msra.mxu0 %v1892
    %2602 = vmatprep.subr.bf16.mxu0 %v1885
    %2603 = vmatpush1.bf16.msra.mxu0 %v1884
    %2604 = vmatprep.subr.bf16.mxu0 %v1877
    %2605 = vmatpush1.bf16.msra.mxu0 %v1876
    %2606 = vmatprep.subr.bf16.mxu0 %v1869
    %2607 = vmatpush1.bf16.msra.mxu0 %v1868
    %2608 = vmatprep.subr.bf16.mxu0 %v1861
    %2609 = vmatpush1.bf16.msra.mxu0 %v1860
    %2610 = vmatprep.subr.bf16.mxu0 %v1853
    %2611 = vmatpush1.bf16.msra.mxu0 %v1852
    %2612 = vmatprep.subr.bf16.mxu0 %v1845
    %2613 = vmatpush1.bf16.msra.mxu0 %v1844
    %2614 = vmatprep.subr.bf16.mxu0 %v1837
    %2615 = vmatpush1.bf16.msra.mxu0 %v1836
    %2616 = vmatprep.subr.bf16.mxu0 %v1957
    %2617 = vmatpush2.bf16.msra.mxu0 %v1956
    %2618 = vmatprep.subr.bf16.mxu0 %v1949
    %2619 = vmatpush2.bf16.msra.mxu0 %v1948
    %2620 = vmatprep.subr.bf16.mxu0 %v1941
    %2621 = vmatpush2.bf16.msra.mxu0 %v1940
    %2622 = vmatprep.subr.bf16.mxu0 %v1933
    %2623 = vmatpush2.bf16.msra.mxu0 %v1932
    %2624 = vmatprep.subr.bf16.mxu0 %v1925
    %2625 = vmatpush2.bf16.msra.mxu0 %v1924
    %2626 = vmatprep.subr.bf16.mxu0 %v1917
    %2627 = vmatpush2.bf16.msra.mxu0 %v1916
    %2628 = vmatprep.subr.bf16.mxu0 %v1909
    %2629 = vmatpush2.bf16.msra.mxu0 %v1908
    %2630 = vmatprep.subr.bf16.mxu0 %v1901
    %2631 = vmatpush2.bf16.msra.mxu0 %v1900
    %2632 = vmatprep.mubr.bf16.mxu0 %v761
    %2633 = vmatmul.mubr.bf16.gmra.mxu0 %v760
    %v2634 = vpop.f32.mrf.mxu0
    %v2635 = vadd.f32 %v1049, %v2634
    %v2636 = vpop.f32.mrf.mxu0
    %v2637 = vadd.f32 %v1053, %v2636
    %v2638 = vpop.f32.mrf.mxu0
    %v2639 = vadd.f32 %v1049, %v2638
    %v2640 = vpop.f32.mrf.mxu0
    %v2641 = vadd.f32 %v1053, %v2640
    %2642 = vdwg.mxu0
    %2643 = vmatprep.subr.bf16.mxu0 %v2021
    %2644 = vmatpush1.bf16.msra.mxu0 %v2020
    %2645 = vmatprep.subr.bf16.mxu0 %v2013
    %2646 = vmatpush1.bf16.msra.mxu0 %v2012
    %2647 = vmatprep.subr.bf16.mxu0 %v2005
    %2648 = vmatpush1.bf16.msra.mxu0 %v2004
    %2649 = vmatprep.subr.bf16.mxu0 %v1997
    %2650 = vmatpush1.bf16.msra.mxu0 %v1996
    %2651 = vmatprep.subr.bf16.mxu0 %v1989
    %2652 = vmatpush1.bf16.msra.mxu0 %v1988
    %2653 = vmatprep.subr.bf16.mxu0 %v1981
    %2654 = vmatpush1.bf16.msra.mxu0 %v1980
    %2655 = vmatprep.subr.bf16.mxu0 %v1973
    %2656 = vmatpush1.bf16.msra.mxu0 %v1972
    %2657 = vmatprep.subr.bf16.mxu0 %v1965
    %2658 = vmatpush1.bf16.msra.mxu0 %v1964
    %2659 = vmatprep.subr.bf16.mxu0 %v2085
    %2660 = vmatpush2.bf16.msra.mxu0 %v2084
    %2661 = vmatprep.subr.bf16.mxu0 %v2077
    %2662 = vmatpush2.bf16.msra.mxu0 %v2076
    %2663 = vmatprep.subr.bf16.mxu0 %v2069
    %2664 = vmatpush2.bf16.msra.mxu0 %v2068
    %2665 = vmatprep.subr.bf16.mxu0 %v2061
    %2666 = vmatpush2.bf16.msra.mxu0 %v2060
    %2667 = vmatprep.subr.bf16.mxu0 %v2053
    %2668 = vmatpush2.bf16.msra.mxu0 %v2052
    %2669 = vmatprep.subr.bf16.mxu0 %v2045
    %2670 = vmatpush2.bf16.msra.mxu0 %v2044
    %2671 = vmatprep.subr.bf16.mxu0 %v2037
    %2672 = vmatpush2.bf16.msra.mxu0 %v2036
    %2673 = vmatprep.subr.bf16.mxu0 %v2029
    %2674 = vmatpush2.bf16.msra.mxu0 %v2028
    %2675 = vmatprep.mubr.bf16.mxu0 %v763
    %2676 = vmatmul.mubr.bf16.gmra.mxu0 %v762
    %v2677 = vpop.f32.mrf.mxu0
    %v2678 = vadd.f32 %v2635, %v2677
    %v2679 = vpop.f32.mrf.mxu0
    %v2680 = vadd.f32 %v2637, %v2679
    %v2681 = vpop.f32.mrf.mxu0
    %v2682 = vadd.f32 %v2639, %v2681
    %v2683 = vpop.f32.mrf.mxu0
    %v2684 = vadd.f32 %v2641, %v2683
    %2685 = vdwg.mxu0
    %v2686 = vmax.f32 %v2420, 0.0
    %v2687 = vmax.f32 %v2422, 0.0
    %v2688 = vmax.f32 %v2506, 0.0
    %v2689 = vmax.f32 %v2508, 0.0
    %v2690 = vmax.f32 %v2592, 0.0
    %v2691 = vmax.f32 %v2594, 0.0
    %v2692 = vmax.f32 %v2678, 0.0
    %v2693 = vmax.f32 %v2680, 0.0
    %v2694 = vmax.f32 %v2424, 0.0
    %v2695 = vmax.f32 %v2426, 0.0
    %v2696 = vmax.f32 %v2510, 0.0
    %v2697 = vmax.f32 %v2512, 0.0
    %v2698 = vmax.f32 %v2596, 0.0
    %v2699 = vmax.f32 %v2598, 0.0
    %v2700 = vmax.f32 %v2682, 0.0
    %v2701 = vmax.f32 %v2684, 0.0
    %v2702 = vpack.c.bf16 %v2694, %v2686
    %v2703 = vpack.c.bf16 %v2695, %v2687
    %v2704 = vpack.c.bf16 %v2696, %v2688
    %v2705 = vpack.c.bf16 %v2697, %v2689
    %v2706 = vpack.c.bf16 %v2698, %v2690
    %v2707 = vpack.c.bf16 %v2699, %v2691
    %v2708 = vpack.c.bf16 %v2700, %v2692
    %v2709 = vpack.c.bf16 %v2701, %v2693
    %v2710 = vld [vmem:[%s5] sm:$0xff]
    %v2711 = vld [vmem:[%s5 + $0x8] sm:$0xff]
    %v2712 = vld [vmem:[%s5 + $0x10] sm:$0xff]
    %v2713 = vld [vmem:[%s5 + $0x18] sm:$0xff]
    %v2714 = vld [vmem:[%s5 + $0x20] sm:$0xff]
    %v2715 = vld [vmem:[%s5 + $0x28] sm:$0xff]
    %v2716 = vld [vmem:[%s5 + $0x30] sm:$0xff]
    %v2717 = vld [vmem:[%s5 + $0x38] sm:$0xff]
    %v2718 = vld [vmem:[%s5 + $0x40] sm:$0xff]
    %v2719 = vld [vmem:[%s5 + $0x48] sm:$0xff]
    %v2720 = vld [vmem:[%s5 + $0x50] sm:$0xff]
    %v2721 = vld [vmem:[%s5 + $0x58] sm:$0xff]
    %v2722 = vld [vmem:[%s5 + $0x60] sm:$0xff]
    %v2723 = vld [vmem:[%s5 + $0x68] sm:$0xff]
    %v2724 = vld [vmem:[%s5 + $0x70] sm:$0xff]
    %v2725 = vld [vmem:[%s5 + $0x78] sm:$0xff]
    %v2726 = vld [vmem:[%s5 + $0x80] sm:$0xff]
    %v2727 = vld [vmem:[%s5 + $0x88] sm:$0xff]
    %v2728 = vld [vmem:[%s5 + $0x90] sm:$0xff]
    %v2729 = vld [vmem:[%s5 + $0x98] sm:$0xff]
    %v2730 = vld [vmem:[%s5 + $0xa0] sm:$0xff]
    %v2731 = vld [vmem:[%s5 + $0xa8] sm:$0xff]
    %v2732 = vld [vmem:[%s5 + $0xb0] sm:$0xff]
    %v2733 = vld [vmem:[%s5 + $0xb8] sm:$0xff]
    %v2734 = vld [vmem:[%s5 + $0xc0] sm:$0xff]
    %v2735 = vld [vmem:[%s5 + $0xc8] sm:$0xff]
    %v2736 = vld [vmem:[%s5 + $0xd0] sm:$0xff]
    %v2737 = vld [vmem:[%s5 + $0xd8] sm:$0xff]
    %v2738 = vld [vmem:[%s5 + $0xe0] sm:$0xff]
    %v2739 = vld [vmem:[%s5 + $0xe8] sm:$0xff]
    %v2740 = vld [vmem:[%s5 + $0xf0] sm:$0xff]
    %v2741 = vld [vmem:[%s5 + $0xf8] sm:$0xff]
    %v2742 = vld [vmem:[%s5 + $0x100] sm:$0xff]
    %v2743 = vld [vmem:[%s5 + $0x108] sm:$0xff]
    %v2744 = vld [vmem:[%s5 + $0x110] sm:$0xff]
    %v2745 = vld [vmem:[%s5 + $0x118] sm:$0xff]
    %v2746 = vld [vmem:[%s5 + $0x120] sm:$0xff]
    %v2747 = vld [vmem:[%s5 + $0x128] sm:$0xff]
    %v2748 = vld [vmem:[%s5 + $0x130] sm:$0xff]
    %v2749 = vld [vmem:[%s5 + $0x138] sm:$0xff]
    %v2750 = vld [vmem:[%s5 + $0x140] sm:$0xff]
    %v2751 = vld [vmem:[%s5 + $0x148] sm:$0xff]
    %v2752 = vld [vmem:[%s5 + $0x150] sm:$0xff]
    %v2753 = vld [vmem:[%s5 + $0x158] sm:$0xff]
    %v2754 = vld [vmem:[%s5 + $0x160] sm:$0xff]
    %v2755 = vld [vmem:[%s5 + $0x168] sm:$0xff]
    %v2756 = vld [vmem:[%s5 + $0x170] sm:$0xff]
    %v2757 = vld [vmem:[%s5 + $0x178] sm:$0xff]
    %v2758 = vld [vmem:[%s5 + $0x180] sm:$0xff]
    %v2759 = vld [vmem:[%s5 + $0x188] sm:$0xff]
    %v2760 = vld [vmem:[%s5 + $0x190] sm:$0xff]
    %v2761 = vld [vmem:[%s5 + $0x198] sm:$0xff]
    %v2762 = vld [vmem:[%s5 + $0x1a0] sm:$0xff]
    %v2763 = vld [vmem:[%s5 + $0x1a8] sm:$0xff]
    %v2764 = vld [vmem:[%s5 + $0x1b0] sm:$0xff]
    %v2765 = vld [vmem:[%s5 + $0x1b8] sm:$0xff]
    %v2766 = vld [vmem:[%s5 + $0x1c0] sm:$0xff]
    %v2767 = vld [vmem:[%s5 + $0x1c8] sm:$0xff]
    %v2768 = vld [vmem:[%s5 + $0x1d0] sm:$0xff]
    %v2769 = vld [vmem:[%s5 + $0x1d8] sm:$0xff]
    %v2770 = vld [vmem:[%s5 + $0x1e0] sm:$0xff]
    %v2771 = vld [vmem:[%s5 + $0x1e8] sm:$0xff]
    %v2772 = vld [vmem:[%s5 + $0x1f0] sm:$0xff]
    %v2773 = vld [vmem:[%s5 + $0x1f8] sm:$0xff]
    %v2774 = vld [vmem:[%s5 + $0x200] sm:$0xff]
    %v2775 = vld [vmem:[%s5 + $0x208] sm:$0xff]
    %v2776 = vld [vmem:[%s5 + $0x210] sm:$0xff]
    %v2777 = vld [vmem:[%s5 + $0x218] sm:$0xff]
    %v2778 = vld [vmem:[%s5 + $0x220] sm:$0xff]
    %v2779 = vld [vmem:[%s5 + $0x228] sm:$0xff]
    %v2780 = vld [vmem:[%s5 + $0x230] sm:$0xff]
    %v2781 = vld [vmem:[%s5 + $0x238] sm:$0xff]
    %v2782 = vld [vmem:[%s5 + $0x240] sm:$0xff]
    %v2783 = vld [vmem:[%s5 + $0x248] sm:$0xff]
    %v2784 = vld [vmem:[%s5 + $0x250] sm:$0xff]
    %v2785 = vld [vmem:[%s5 + $0x258] sm:$0xff]
    %v2786 = vld [vmem:[%s5 + $0x260] sm:$0xff]
    %v2787 = vld [vmem:[%s5 + $0x268] sm:$0xff]
    %v2788 = vld [vmem:[%s5 + $0x270] sm:$0xff]
    %v2789 = vld [vmem:[%s5 + $0x278] sm:$0xff]
    %v2790 = vld [vmem:[%s5 + $0x280] sm:$0xff]
    %v2791 = vld [vmem:[%s5 + $0x288] sm:$0xff]
    %v2792 = vld [vmem:[%s5 + $0x290] sm:$0xff]
    %v2793 = vld [vmem:[%s5 + $0x298] sm:$0xff]
    %v2794 = vld [vmem:[%s5 + $0x2a0] sm:$0xff]
    %v2795 = vld [vmem:[%s5 + $0x2a8] sm:$0xff]
    %v2796 = vld [vmem:[%s5 + $0x2b0] sm:$0xff]
    %v2797 = vld [vmem:[%s5 + $0x2b8] sm:$0xff]
    %v2798 = vld [vmem:[%s5 + $0x2c0] sm:$0xff]
    %v2799 = vld [vmem:[%s5 + $0x2c8] sm:$0xff]
    %v2800 = vld [vmem:[%s5 + $0x2d0] sm:$0xff]
    %v2801 = vld [vmem:[%s5 + $0x2d8] sm:$0xff]
    %v2802 = vld [vmem:[%s5 + $0x2e0] sm:$0xff]
    %v2803 = vld [vmem:[%s5 + $0x2e8] sm:$0xff]
    %v2804 = vld [vmem:[%s5 + $0x2f0] sm:$0xff]
    %v2805 = vld [vmem:[%s5 + $0x2f8] sm:$0xff]
    %v2806 = vld [vmem:[%s5 + $0x300] sm:$0xff]
    %v2807 = vld [vmem:[%s5 + $0x308] sm:$0xff]
    %v2808 = vld [vmem:[%s5 + $0x310] sm:$0xff]
    %v2809 = vld [vmem:[%s5 + $0x318] sm:$0xff]
    %v2810 = vld [vmem:[%s5 + $0x320] sm:$0xff]
    %v2811 = vld [vmem:[%s5 + $0x328] sm:$0xff]
    %v2812 = vld [vmem:[%s5 + $0x330] sm:$0xff]
    %v2813 = vld [vmem:[%s5 + $0x338] sm:$0xff]
    %v2814 = vld [vmem:[%s5 + $0x340] sm:$0xff]
    %v2815 = vld [vmem:[%s5 + $0x348] sm:$0xff]
    %v2816 = vld [vmem:[%s5 + $0x350] sm:$0xff]
    %v2817 = vld [vmem:[%s5 + $0x358] sm:$0xff]
    %v2818 = vld [vmem:[%s5 + $0x360] sm:$0xff]
    %v2819 = vld [vmem:[%s5 + $0x368] sm:$0xff]
    %v2820 = vld [vmem:[%s5 + $0x370] sm:$0xff]
    %v2821 = vld [vmem:[%s5 + $0x378] sm:$0xff]
    %v2822 = vld [vmem:[%s5 + $0x380] sm:$0xff]
    %v2823 = vld [vmem:[%s5 + $0x388] sm:$0xff]
    %v2824 = vld [vmem:[%s5 + $0x390] sm:$0xff]
    %v2825 = vld [vmem:[%s5 + $0x398] sm:$0xff]
    %v2826 = vld [vmem:[%s5 + $0x3a0] sm:$0xff]
    %v2827 = vld [vmem:[%s5 + $0x3a8] sm:$0xff]
    %v2828 = vld [vmem:[%s5 + $0x3b0] sm:$0xff]
    %v2829 = vld [vmem:[%s5 + $0x3b8] sm:$0xff]
    %v2830 = vld [vmem:[%s5 + $0x3c0] sm:$0xff]
    %v2831 = vld [vmem:[%s5 + $0x3c8] sm:$0xff]
    %v2832 = vld [vmem:[%s5 + $0x3d0] sm:$0xff]
    %v2833 = vld [vmem:[%s5 + $0x3d8] sm:$0xff]
    %v2834 = vld [vmem:[%s5 + $0x3e0] sm:$0xff]
    %v2835 = vld [vmem:[%s5 + $0x3e8] sm:$0xff]
    %v2836 = vld [vmem:[%s5 + $0x3f0] sm:$0xff]
    %v2837 = vld [vmem:[%s5 + $0x3f8] sm:$0xff]
    %v2838 = vld [vmem:[%s5 + $0x400] sm:$0xff]
    %v2839 = vld [vmem:[%s5 + $0x408] sm:$0xff]
    %v2840 = vld [vmem:[%s5 + $0x410] sm:$0xff]
    %v2841 = vld [vmem:[%s5 + $0x418] sm:$0xff]
    %v2842 = vld [vmem:[%s5 + $0x420] sm:$0xff]
    %v2843 = vld [vmem:[%s5 + $0x428] sm:$0xff]
    %v2844 = vld [vmem:[%s5 + $0x430] sm:$0xff]
    %v2845 = vld [vmem:[%s5 + $0x438] sm:$0xff]
    %v2846 = vld [vmem:[%s5 + $0x440] sm:$0xff]
    %v2847 = vld [vmem:[%s5 + $0x448] sm:$0xff]
    %v2848 = vld [vmem:[%s5 + $0x450] sm:$0xff]
    %v2849 = vld [vmem:[%s5 + $0x458] sm:$0xff]
    %v2850 = vld [vmem:[%s5 + $0x460] sm:$0xff]
    %v2851 = vld [vmem:[%s5 + $0x468] sm:$0xff]
    %v2852 = vld [vmem:[%s5 + $0x470] sm:$0xff]
    %v2853 = vld [vmem:[%s5 + $0x478] sm:$0xff]
    %v2854 = vld [vmem:[%s5 + $0x480] sm:$0xff]
    %v2855 = vld [vmem:[%s5 + $0x488] sm:$0xff]
    %v2856 = vld [vmem:[%s5 + $0x490] sm:$0xff]
    %v2857 = vld [vmem:[%s5 + $0x498] sm:$0xff]
    %v2858 = vld [vmem:[%s5 + $0x4a0] sm:$0xff]
    %v2859 = vld [vmem:[%s5 + $0x4a8] sm:$0xff]
    %v2860 = vld [vmem:[%s5 + $0x4b0] sm:$0xff]
    %v2861 = vld [vmem:[%s5 + $0x4b8] sm:$0xff]
    %v2862 = vld [vmem:[%s5 + $0x4c0] sm:$0xff]
    %v2863 = vld [vmem:[%s5 + $0x4c8] sm:$0xff]
    %v2864 = vld [vmem:[%s5 + $0x4d0] sm:$0xff]
    %v2865 = vld [vmem:[%s5 + $0x4d8] sm:$0xff]
    %v2866 = vld [vmem:[%s5 + $0x4e0] sm:$0xff]
    %v2867 = vld [vmem:[%s5 + $0x4e8] sm:$0xff]
    %v2868 = vld [vmem:[%s5 + $0x4f0] sm:$0xff]
    %v2869 = vld [vmem:[%s5 + $0x4f8] sm:$0xff]
    %v2870 = vld [vmem:[%s5 + $0x500] sm:$0xff]
    %v2871 = vld [vmem:[%s5 + $0x508] sm:$0xff]
    %v2872 = vld [vmem:[%s5 + $0x510] sm:$0xff]
    %v2873 = vld [vmem:[%s5 + $0x518] sm:$0xff]
    %v2874 = vld [vmem:[%s5 + $0x520] sm:$0xff]
    %v2875 = vld [vmem:[%s5 + $0x528] sm:$0xff]
    %v2876 = vld [vmem:[%s5 + $0x530] sm:$0xff]
    %v2877 = vld [vmem:[%s5 + $0x538] sm:$0xff]
    %v2878 = vld [vmem:[%s5 + $0x540] sm:$0xff]
    %v2879 = vld [vmem:[%s5 + $0x548] sm:$0xff]
    %v2880 = vld [vmem:[%s5 + $0x550] sm:$0xff]
    %v2881 = vld [vmem:[%s5 + $0x558] sm:$0xff]
    %v2882 = vld [vmem:[%s5 + $0x560] sm:$0xff]
    %v2883 = vld [vmem:[%s5 + $0x568] sm:$0xff]
    %v2884 = vld [vmem:[%s5 + $0x570] sm:$0xff]
    %v2885 = vld [vmem:[%s5 + $0x578] sm:$0xff]
    %v2886 = vld [vmem:[%s5 + $0x580] sm:$0xff]
    %v2887 = vld [vmem:[%s5 + $0x588] sm:$0xff]
    %v2888 = vld [vmem:[%s5 + $0x590] sm:$0xff]
    %v2889 = vld [vmem:[%s5 + $0x598] sm:$0xff]
    %v2890 = vld [vmem:[%s5 + $0x5a0] sm:$0xff]
    %v2891 = vld [vmem:[%s5 + $0x5a8] sm:$0xff]
    %v2892 = vld [vmem:[%s5 + $0x5b0] sm:$0xff]
    %v2893 = vld [vmem:[%s5 + $0x5b8] sm:$0xff]
    %v2894 = vld [vmem:[%s5 + $0x5c0] sm:$0xff]
    %v2895 = vld [vmem:[%s5 + $0x5c8] sm:$0xff]
    %v2896 = vld [vmem:[%s5 + $0x5d0] sm:$0xff]
    %v2897 = vld [vmem:[%s5 + $0x5d8] sm:$0xff]
    %v2898 = vld [vmem:[%s5 + $0x5e0] sm:$0xff]
    %v2899 = vld [vmem:[%s5 + $0x5e8] sm:$0xff]
    %v2900 = vld [vmem:[%s5 + $0x5f0] sm:$0xff]
    %v2901 = vld [vmem:[%s5 + $0x5f8] sm:$0xff]
    %v2902 = vld [vmem:[%s5 + $0x600] sm:$0xff]
    %v2903 = vld [vmem:[%s5 + $0x608] sm:$0xff]
    %v2904 = vld [vmem:[%s5 + $0x610] sm:$0xff]
    %v2905 = vld [vmem:[%s5 + $0x618] sm:$0xff]
    %v2906 = vld [vmem:[%s5 + $0x620] sm:$0xff]
    %v2907 = vld [vmem:[%s5 + $0x628] sm:$0xff]
    %v2908 = vld [vmem:[%s5 + $0x630] sm:$0xff]
    %v2909 = vld [vmem:[%s5 + $0x638] sm:$0xff]
    %v2910 = vld [vmem:[%s5 + $0x640] sm:$0xff]
    %v2911 = vld [vmem:[%s5 + $0x648] sm:$0xff]
    %v2912 = vld [vmem:[%s5 + $0x650] sm:$0xff]
    %v2913 = vld [vmem:[%s5 + $0x658] sm:$0xff]
    %v2914 = vld [vmem:[%s5 + $0x660] sm:$0xff]
    %v2915 = vld [vmem:[%s5 + $0x668] sm:$0xff]
    %v2916 = vld [vmem:[%s5 + $0x670] sm:$0xff]
    %v2917 = vld [vmem:[%s5 + $0x678] sm:$0xff]
    %v2918 = vld [vmem:[%s5 + $0x680] sm:$0xff]
    %v2919 = vld [vmem:[%s5 + $0x688] sm:$0xff]
    %v2920 = vld [vmem:[%s5 + $0x690] sm:$0xff]
    %v2921 = vld [vmem:[%s5 + $0x698] sm:$0xff]
    %v2922 = vld [vmem:[%s5 + $0x6a0] sm:$0xff]
    %v2923 = vld [vmem:[%s5 + $0x6a8] sm:$0xff]
    %v2924 = vld [vmem:[%s5 + $0x6b0] sm:$0xff]
    %v2925 = vld [vmem:[%s5 + $0x6b8] sm:$0xff]
    %v2926 = vld [vmem:[%s5 + $0x6c0] sm:$0xff]
    %v2927 = vld [vmem:[%s5 + $0x6c8] sm:$0xff]
    %v2928 = vld [vmem:[%s5 + $0x6d0] sm:$0xff]
    %v2929 = vld [vmem:[%s5 + $0x6d8] sm:$0xff]
    %v2930 = vld [vmem:[%s5 + $0x6e0] sm:$0xff]
    %v2931 = vld [vmem:[%s5 + $0x6e8] sm:$0xff]
    %v2932 = vld [vmem:[%s5 + $0x6f0] sm:$0xff]
    %v2933 = vld [vmem:[%s5 + $0x6f8] sm:$0xff]
    %v2934 = vld [vmem:[%s5 + $0x700] sm:$0xff]
    %v2935 = vld [vmem:[%s5 + $0x708] sm:$0xff]
    %v2936 = vld [vmem:[%s5 + $0x710] sm:$0xff]
    %v2937 = vld [vmem:[%s5 + $0x718] sm:$0xff]
    %v2938 = vld [vmem:[%s5 + $0x720] sm:$0xff]
    %v2939 = vld [vmem:[%s5 + $0x728] sm:$0xff]
    %v2940 = vld [vmem:[%s5 + $0x730] sm:$0xff]
    %v2941 = vld [vmem:[%s5 + $0x738] sm:$0xff]
    %v2942 = vld [vmem:[%s5 + $0x740] sm:$0xff]
    %v2943 = vld [vmem:[%s5 + $0x748] sm:$0xff]
    %v2944 = vld [vmem:[%s5 + $0x750] sm:$0xff]
    %v2945 = vld [vmem:[%s5 + $0x758] sm:$0xff]
    %v2946 = vld [vmem:[%s5 + $0x760] sm:$0xff]
    %v2947 = vld [vmem:[%s5 + $0x768] sm:$0xff]
    %v2948 = vld [vmem:[%s5 + $0x770] sm:$0xff]
    %v2949 = vld [vmem:[%s5 + $0x778] sm:$0xff]
    %v2950 = vld [vmem:[%s5 + $0x780] sm:$0xff]
    %v2951 = vld [vmem:[%s5 + $0x788] sm:$0xff]
    %v2952 = vld [vmem:[%s5 + $0x790] sm:$0xff]
    %v2953 = vld [vmem:[%s5 + $0x798] sm:$0xff]
    %v2954 = vld [vmem:[%s5 + $0x7a0] sm:$0xff]
    %v2955 = vld [vmem:[%s5 + $0x7a8] sm:$0xff]
    %v2956 = vld [vmem:[%s5 + $0x7b0] sm:$0xff]
    %v2957 = vld [vmem:[%s5 + $0x7b8] sm:$0xff]
    %v2958 = vld [vmem:[%s5 + $0x7c0] sm:$0xff]
    %v2959 = vld [vmem:[%s5 + $0x7c8] sm:$0xff]
    %v2960 = vld [vmem:[%s5 + $0x7d0] sm:$0xff]
    %v2961 = vld [vmem:[%s5 + $0x7d8] sm:$0xff]
    %v2962 = vld [vmem:[%s5 + $0x7e0] sm:$0xff]
    %v2963 = vld [vmem:[%s5 + $0x7e8] sm:$0xff]
    %v2964 = vld [vmem:[%s5 + $0x7f0] sm:$0xff]
    %v2965 = vld [vmem:[%s5 + $0x7f8] sm:$0xff]
    %v2966 = vld [vmem:[%s10] sm:$0xf]
    %v2968 = vlaneseq
    %v2969 = vshrl.u32 %v2968, 7
    %v2970 = vsub.s32 0, %v2969
    %v2971 = vrot.slane %v2966, %v2970
    %v2972 = vlaneseq
    %v2973 = vshrl.u32 %v2972, 7
    %v2974 = vsub.s32 1, %v2973
    %v2975 = vrot.slane %v2966, %v2974
    %v2976 = vlaneseq
    %v2977 = vshrl.u32 %v2976, 7
    %v2978 = vsub.s32 2, %v2977
    %v2979 = vrot.slane %v2966, %v2978
    %v2980 = vlaneseq
    %v2981 = vshrl.u32 %v2980, 7
    %v2982 = vsub.s32 3, %v2981
    %v2983 = vrot.slane %v2966, %v2982
    %v3244 = vunpack.c.l.b16 %v2710
    %v3245 = vunpack.c.h.b16 %v2710
    %v3246 = vunpack.c.l.b16 %v2711
    %v3247 = vunpack.c.h.b16 %v2711
    %v3248 = vunpack.c.l.b16 %v2712
    %v3249 = vunpack.c.h.b16 %v2712
    %v3250 = vunpack.c.l.b16 %v2713
    %v3251 = vunpack.c.h.b16 %v2713
    %v3252 = vunpack.c.l.b16 %v2714
    %v3253 = vunpack.c.h.b16 %v2714
    %v3254 = vunpack.c.l.b16 %v2715
    %v3255 = vunpack.c.h.b16 %v2715
    %v3256 = vunpack.c.l.b16 %v2716
    %v3257 = vunpack.c.h.b16 %v2716
    %v3258 = vunpack.c.l.b16 %v2717
    %v3259 = vunpack.c.h.b16 %v2717
    %v3260 = vunpack.c.l.b16 %v2718
    %v3261 = vunpack.c.h.b16 %v2718
    %v3262 = vunpack.c.l.b16 %v2719
    %v3263 = vunpack.c.h.b16 %v2719
    %v3264 = vunpack.c.l.b16 %v2720
    %v3265 = vunpack.c.h.b16 %v2720
    %v3266 = vunpack.c.l.b16 %v2721
    %v3267 = vunpack.c.h.b16 %v2721
    %v3268 = vunpack.c.l.b16 %v2722
    %v3269 = vunpack.c.h.b16 %v2722
    %v3270 = vunpack.c.l.b16 %v2723
    %v3271 = vunpack.c.h.b16 %v2723
    %v3272 = vunpack.c.l.b16 %v2724
    %v3273 = vunpack.c.h.b16 %v2724
    %v3274 = vunpack.c.l.b16 %v2725
    %v3275 = vunpack.c.h.b16 %v2725
    %v3276 = vunpack.c.l.b16 %v2726
    %v3277 = vunpack.c.h.b16 %v2726
    %v3278 = vunpack.c.l.b16 %v2727
    %v3279 = vunpack.c.h.b16 %v2727
    %v3280 = vunpack.c.l.b16 %v2728
    %v3281 = vunpack.c.h.b16 %v2728
    %v3282 = vunpack.c.l.b16 %v2729
    %v3283 = vunpack.c.h.b16 %v2729
    %v3284 = vunpack.c.l.b16 %v2730
    %v3285 = vunpack.c.h.b16 %v2730
    %v3286 = vunpack.c.l.b16 %v2731
    %v3287 = vunpack.c.h.b16 %v2731
    %v3288 = vunpack.c.l.b16 %v2732
    %v3289 = vunpack.c.h.b16 %v2732
    %v3290 = vunpack.c.l.b16 %v2733
    %v3291 = vunpack.c.h.b16 %v2733
    %v3292 = vunpack.c.l.b16 %v2734
    %v3293 = vunpack.c.h.b16 %v2734
    %v3294 = vunpack.c.l.b16 %v2735
    %v3295 = vunpack.c.h.b16 %v2735
    %v3296 = vunpack.c.l.b16 %v2736
    %v3297 = vunpack.c.h.b16 %v2736
    %v3298 = vunpack.c.l.b16 %v2737
    %v3299 = vunpack.c.h.b16 %v2737
    %v3300 = vunpack.c.l.b16 %v2738
    %v3301 = vunpack.c.h.b16 %v2738
    %v3302 = vunpack.c.l.b16 %v2739
    %v3303 = vunpack.c.h.b16 %v2739
    %v3304 = vunpack.c.l.b16 %v2740
    %v3305 = vunpack.c.h.b16 %v2740
    %v3306 = vunpack.c.l.b16 %v2741
    %v3307 = vunpack.c.h.b16 %v2741
    %v3308 = vunpack.c.l.b16 %v2742
    %v3309 = vunpack.c.h.b16 %v2742
    %v3310 = vunpack.c.l.b16 %v2743
    %v3311 = vunpack.c.h.b16 %v2743
    %v3312 = vunpack.c.l.b16 %v2744
    %v3313 = vunpack.c.h.b16 %v2744
    %v3314 = vunpack.c.l.b16 %v2745
    %v3315 = vunpack.c.h.b16 %v2745
    %v3316 = vunpack.c.l.b16 %v2746
    %v3317 = vunpack.c.h.b16 %v2746
    %v3318 = vunpack.c.l.b16 %v2747
    %v3319 = vunpack.c.h.b16 %v2747
    %v3320 = vunpack.c.l.b16 %v2748
    %v3321 = vunpack.c.h.b16 %v2748
    %v3322 = vunpack.c.l.b16 %v2749
    %v3323 = vunpack.c.h.b16 %v2749
    %v3324 = vunpack.c.l.b16 %v2750
    %v3325 = vunpack.c.h.b16 %v2750
    %v3326 = vunpack.c.l.b16 %v2751
    %v3327 = vunpack.c.h.b16 %v2751
    %v3328 = vunpack.c.l.b16 %v2752
    %v3329 = vunpack.c.h.b16 %v2752
    %v3330 = vunpack.c.l.b16 %v2753
    %v3331 = vunpack.c.h.b16 %v2753
    %v3332 = vunpack.c.l.b16 %v2754
    %v3333 = vunpack.c.h.b16 %v2754
    %v3334 = vunpack.c.l.b16 %v2755
    %v3335 = vunpack.c.h.b16 %v2755
    %v3336 = vunpack.c.l.b16 %v2756
    %v3337 = vunpack.c.h.b16 %v2756
    %v3338 = vunpack.c.l.b16 %v2757
    %v3339 = vunpack.c.h.b16 %v2757
    %v3340 = vunpack.c.l.b16 %v2758
    %v3341 = vunpack.c.h.b16 %v2758
    %v3342 = vunpack.c.l.b16 %v2759
    %v3343 = vunpack.c.h.b16 %v2759
    %v3344 = vunpack.c.l.b16 %v2760
    %v3345 = vunpack.c.h.b16 %v2760
    %v3346 = vunpack.c.l.b16 %v2761
    %v3347 = vunpack.c.h.b16 %v2761
    %v3348 = vunpack.c.l.b16 %v2762
    %v3349 = vunpack.c.h.b16 %v2762
    %v3350 = vunpack.c.l.b16 %v2763
    %v3351 = vunpack.c.h.b16 %v2763
    %v3352 = vunpack.c.l.b16 %v2764
    %v3353 = vunpack.c.h.b16 %v2764
    %v3354 = vunpack.c.l.b16 %v2765
    %v3355 = vunpack.c.h.b16 %v2765
    %v3356 = vunpack.c.l.b16 %v2766
    %v3357 = vunpack.c.h.b16 %v2766
    %v3358 = vunpack.c.l.b16 %v2767
    %v3359 = vunpack.c.h.b16 %v2767
    %v3360 = vunpack.c.l.b16 %v2768
    %v3361 = vunpack.c.h.b16 %v2768
    %v3362 = vunpack.c.l.b16 %v2769
    %v3363 = vunpack.c.h.b16 %v2769
    %v3364 = vunpack.c.l.b16 %v2770
    %v3365 = vunpack.c.h.b16 %v2770
    %v3366 = vunpack.c.l.b16 %v2771
    %v3367 = vunpack.c.h.b16 %v2771
    %v3368 = vunpack.c.l.b16 %v2772
    %v3369 = vunpack.c.h.b16 %v2772
    %v3370 = vunpack.c.l.b16 %v2773
    %v3371 = vunpack.c.h.b16 %v2773
    %v3372 = vunpack.c.l.b16 %v2774
    %v3373 = vunpack.c.h.b16 %v2774
    %v3374 = vunpack.c.l.b16 %v2775
    %v3375 = vunpack.c.h.b16 %v2775
    %v3376 = vunpack.c.l.b16 %v2776
    %v3377 = vunpack.c.h.b16 %v2776
    %v3378 = vunpack.c.l.b16 %v2777
    %v3379 = vunpack.c.h.b16 %v2777
    %v3380 = vunpack.c.l.b16 %v2778
    %v3381 = vunpack.c.h.b16 %v2778
    %v3382 = vunpack.c.l.b16 %v2779
    %v3383 = vunpack.c.h.b16 %v2779
    %v3384 = vunpack.c.l.b16 %v2780
    %v3385 = vunpack.c.h.b16 %v2780
    %v3386 = vunpack.c.l.b16 %v2781
    %v3387 = vunpack.c.h.b16 %v2781
    %v3388 = vunpack.c.l.b16 %v2782
    %v3389 = vunpack.c.h.b16 %v2782
    %v3390 = vunpack.c.l.b16 %v2783
    %v3391 = vunpack.c.h.b16 %v2783
    %v3392 = vunpack.c.l.b16 %v2784
    %v3393 = vunpack.c.h.b16 %v2784
    %v3394 = vunpack.c.l.b16 %v2785
    %v3395 = vunpack.c.h.b16 %v2785
    %v3396 = vunpack.c.l.b16 %v2786
    %v3397 = vunpack.c.h.b16 %v2786
    %v3398 = vunpack.c.l.b16 %v2787
    %v3399 = vunpack.c.h.b16 %v2787
    %v3400 = vunpack.c.l.b16 %v2788
    %v3401 = vunpack.c.h.b16 %v2788
    %v3402 = vunpack.c.l.b16 %v2789
    %v3403 = vunpack.c.h.b16 %v2789
    %v3404 = vunpack.c.l.b16 %v2790
    %v3405 = vunpack.c.h.b16 %v2790
    %v3406 = vunpack.c.l.b16 %v2791
    %v3407 = vunpack.c.h.b16 %v2791
    %v3408 = vunpack.c.l.b16 %v2792
    %v3409 = vunpack.c.h.b16 %v2792
    %v3410 = vunpack.c.l.b16 %v2793
    %v3411 = vunpack.c.h.b16 %v2793
    %v3412 = vunpack.c.l.b16 %v2794
    %v3413 = vunpack.c.h.b16 %v2794
    %v3414 = vunpack.c.l.b16 %v2795
    %v3415 = vunpack.c.h.b16 %v2795
    %v3416 = vunpack.c.l.b16 %v2796
    %v3417 = vunpack.c.h.b16 %v2796
    %v3418 = vunpack.c.l.b16 %v2797
    %v3419 = vunpack.c.h.b16 %v2797
    %v3420 = vunpack.c.l.b16 %v2798
    %v3421 = vunpack.c.h.b16 %v2798
    %v3422 = vunpack.c.l.b16 %v2799
    %v3423 = vunpack.c.h.b16 %v2799
    %v3424 = vunpack.c.l.b16 %v2800
    %v3425 = vunpack.c.h.b16 %v2800
    %v3426 = vunpack.c.l.b16 %v2801
    %v3427 = vunpack.c.h.b16 %v2801
    %v3428 = vunpack.c.l.b16 %v2802
    %v3429 = vunpack.c.h.b16 %v2802
    %v3430 = vunpack.c.l.b16 %v2803
    %v3431 = vunpack.c.h.b16 %v2803
    %v3432 = vunpack.c.l.b16 %v2804
    %v3433 = vunpack.c.h.b16 %v2804
    %v3434 = vunpack.c.l.b16 %v2805
    %v3435 = vunpack.c.h.b16 %v2805
    %v3436 = vunpack.c.l.b16 %v2806
    %v3437 = vunpack.c.h.b16 %v2806
    %v3438 = vunpack.c.l.b16 %v2807
    %v3439 = vunpack.c.h.b16 %v2807
    %v3440 = vunpack.c.l.b16 %v2808
    %v3441 = vunpack.c.h.b16 %v2808
    %v3442 = vunpack.c.l.b16 %v2809
    %v3443 = vunpack.c.h.b16 %v2809
    %v3444 = vunpack.c.l.b16 %v2810
    %v3445 = vunpack.c.h.b16 %v2810
    %v3446 = vunpack.c.l.b16 %v2811
    %v3447 = vunpack.c.h.b16 %v2811
    %v3448 = vunpack.c.l.b16 %v2812
    %v3449 = vunpack.c.h.b16 %v2812
    %v3450 = vunpack.c.l.b16 %v2813
    %v3451 = vunpack.c.h.b16 %v2813
    %v3452 = vunpack.c.l.b16 %v2814
    %v3453 = vunpack.c.h.b16 %v2814
    %v3454 = vunpack.c.l.b16 %v2815
    %v3455 = vunpack.c.h.b16 %v2815
    %v3456 = vunpack.c.l.b16 %v2816
    %v3457 = vunpack.c.h.b16 %v2816
    %v3458 = vunpack.c.l.b16 %v2817
    %v3459 = vunpack.c.h.b16 %v2817
    %v3460 = vunpack.c.l.b16 %v2818
    %v3461 = vunpack.c.h.b16 %v2818
    %v3462 = vunpack.c.l.b16 %v2819
    %v3463 = vunpack.c.h.b16 %v2819
    %v3464 = vunpack.c.l.b16 %v2820
    %v3465 = vunpack.c.h.b16 %v2820
    %v3466 = vunpack.c.l.b16 %v2821
    %v3467 = vunpack.c.h.b16 %v2821
    %v3468 = vunpack.c.l.b16 %v2822
    %v3469 = vunpack.c.h.b16 %v2822
    %v3470 = vunpack.c.l.b16 %v2823
    %v3471 = vunpack.c.h.b16 %v2823
    %v3472 = vunpack.c.l.b16 %v2824
    %v3473 = vunpack.c.h.b16 %v2824
    %v3474 = vunpack.c.l.b16 %v2825
    %v3475 = vunpack.c.h.b16 %v2825
    %v3476 = vunpack.c.l.b16 %v2826
    %v3477 = vunpack.c.h.b16 %v2826
    %v3478 = vunpack.c.l.b16 %v2827
    %v3479 = vunpack.c.h.b16 %v2827
    %v3480 = vunpack.c.l.b16 %v2828
    %v3481 = vunpack.c.h.b16 %v2828
    %v3482 = vunpack.c.l.b16 %v2829
    %v3483 = vunpack.c.h.b16 %v2829
    %v3484 = vunpack.c.l.b16 %v2830
    %v3485 = vunpack.c.h.b16 %v2830
    %v3486 = vunpack.c.l.b16 %v2831
    %v3487 = vunpack.c.h.b16 %v2831
    %v3488 = vunpack.c.l.b16 %v2832
    %v3489 = vunpack.c.h.b16 %v2832
    %v3490 = vunpack.c.l.b16 %v2833
    %v3491 = vunpack.c.h.b16 %v2833
    %v3492 = vunpack.c.l.b16 %v2834
    %v3493 = vunpack.c.h.b16 %v2834
    %v3494 = vunpack.c.l.b16 %v2835
    %v3495 = vunpack.c.h.b16 %v2835
    %v3496 = vunpack.c.l.b16 %v2836
    %v3497 = vunpack.c.h.b16 %v2836
    %v3498 = vunpack.c.l.b16 %v2837
    %v3499 = vunpack.c.h.b16 %v2837
    %v3500 = vunpack.c.l.b16 %v2838
    %v3501 = vunpack.c.h.b16 %v2838
    %v3502 = vunpack.c.l.b16 %v2839
    %v3503 = vunpack.c.h.b16 %v2839
    %v3504 = vunpack.c.l.b16 %v2840
    %v3505 = vunpack.c.h.b16 %v2840
    %v3506 = vunpack.c.l.b16 %v2841
    %v3507 = vunpack.c.h.b16 %v2841
    %v3508 = vunpack.c.l.b16 %v2842
    %v3509 = vunpack.c.h.b16 %v2842
    %v3510 = vunpack.c.l.b16 %v2843
    %v3511 = vunpack.c.h.b16 %v2843
    %v3512 = vunpack.c.l.b16 %v2844
    %v3513 = vunpack.c.h.b16 %v2844
    %v3514 = vunpack.c.l.b16 %v2845
    %v3515 = vunpack.c.h.b16 %v2845
    %v3516 = vunpack.c.l.b16 %v2846
    %v3517 = vunpack.c.h.b16 %v2846
    %v3518 = vunpack.c.l.b16 %v2847
    %v3519 = vunpack.c.h.b16 %v2847
    %v3520 = vunpack.c.l.b16 %v2848
    %v3521 = vunpack.c.h.b16 %v2848
    %v3522 = vunpack.c.l.b16 %v2849
    %v3523 = vunpack.c.h.b16 %v2849
    %v3524 = vunpack.c.l.b16 %v2850
    %v3525 = vunpack.c.h.b16 %v2850
    %v3526 = vunpack.c.l.b16 %v2851
    %v3527 = vunpack.c.h.b16 %v2851
    %v3528 = vunpack.c.l.b16 %v2852
    %v3529 = vunpack.c.h.b16 %v2852
    %v3530 = vunpack.c.l.b16 %v2853
    %v3531 = vunpack.c.h.b16 %v2853
    %v3532 = vunpack.c.l.b16 %v2854
    %v3533 = vunpack.c.h.b16 %v2854
    %v3534 = vunpack.c.l.b16 %v2855
    %v3535 = vunpack.c.h.b16 %v2855
    %v3536 = vunpack.c.l.b16 %v2856
    %v3537 = vunpack.c.h.b16 %v2856
    %v3538 = vunpack.c.l.b16 %v2857
    %v3539 = vunpack.c.h.b16 %v2857
    %v3540 = vunpack.c.l.b16 %v2858
    %v3541 = vunpack.c.h.b16 %v2858
    %v3542 = vunpack.c.l.b16 %v2859
    %v3543 = vunpack.c.h.b16 %v2859
    %v3544 = vunpack.c.l.b16 %v2860
    %v3545 = vunpack.c.h.b16 %v2860
    %v3546 = vunpack.c.l.b16 %v2861
    %v3547 = vunpack.c.h.b16 %v2861
    %v3548 = vunpack.c.l.b16 %v2862
    %v3549 = vunpack.c.h.b16 %v2862
    %v3550 = vunpack.c.l.b16 %v2863
    %v3551 = vunpack.c.h.b16 %v2863
    %v3552 = vunpack.c.l.b16 %v2864
    %v3553 = vunpack.c.h.b16 %v2864
    %v3554 = vunpack.c.l.b16 %v2865
    %v3555 = vunpack.c.h.b16 %v2865
    %v3556 = vunpack.c.l.b16 %v2866
    %v3557 = vunpack.c.h.b16 %v2866
    %v3558 = vunpack.c.l.b16 %v2867
    %v3559 = vunpack.c.h.b16 %v2867
    %v3560 = vunpack.c.l.b16 %v2868
    %v3561 = vunpack.c.h.b16 %v2868
    %v3562 = vunpack.c.l.b16 %v2869
    %v3563 = vunpack.c.h.b16 %v2869
    %v3564 = vunpack.c.l.b16 %v2870
    %v3565 = vunpack.c.h.b16 %v2870
    %v3566 = vunpack.c.l.b16 %v2871
    %v3567 = vunpack.c.h.b16 %v2871
    %v3568 = vunpack.c.l.b16 %v2872
    %v3569 = vunpack.c.h.b16 %v2872
    %v3570 = vunpack.c.l.b16 %v2873
    %v3571 = vunpack.c.h.b16 %v2873
    %v3572 = vunpack.c.l.b16 %v2874
    %v3573 = vunpack.c.h.b16 %v2874
    %v3574 = vunpack.c.l.b16 %v2875
    %v3575 = vunpack.c.h.b16 %v2875
    %v3576 = vunpack.c.l.b16 %v2876
    %v3577 = vunpack.c.h.b16 %v2876
    %v3578 = vunpack.c.l.b16 %v2877
    %v3579 = vunpack.c.h.b16 %v2877
    %v3580 = vunpack.c.l.b16 %v2878
    %v3581 = vunpack.c.h.b16 %v2878
    %v3582 = vunpack.c.l.b16 %v2879
    %v3583 = vunpack.c.h.b16 %v2879
    %v3584 = vunpack.c.l.b16 %v2880
    %v3585 = vunpack.c.h.b16 %v2880
    %v3586 = vunpack.c.l.b16 %v2881
    %v3587 = vunpack.c.h.b16 %v2881
    %v3588 = vunpack.c.l.b16 %v2882
    %v3589 = vunpack.c.h.b16 %v2882
    %v3590 = vunpack.c.l.b16 %v2883
    %v3591 = vunpack.c.h.b16 %v2883
    %v3592 = vunpack.c.l.b16 %v2884
    %v3593 = vunpack.c.h.b16 %v2884
    %v3594 = vunpack.c.l.b16 %v2885
    %v3595 = vunpack.c.h.b16 %v2885
    %v3596 = vunpack.c.l.b16 %v2886
    %v3597 = vunpack.c.h.b16 %v2886
    %v3598 = vunpack.c.l.b16 %v2887
    %v3599 = vunpack.c.h.b16 %v2887
    %v3600 = vunpack.c.l.b16 %v2888
    %v3601 = vunpack.c.h.b16 %v2888
    %v3602 = vunpack.c.l.b16 %v2889
    %v3603 = vunpack.c.h.b16 %v2889
    %v3604 = vunpack.c.l.b16 %v2890
    %v3605 = vunpack.c.h.b16 %v2890
    %v3606 = vunpack.c.l.b16 %v2891
    %v3607 = vunpack.c.h.b16 %v2891
    %v3608 = vunpack.c.l.b16 %v2892
    %v3609 = vunpack.c.h.b16 %v2892
    %v3610 = vunpack.c.l.b16 %v2893
    %v3611 = vunpack.c.h.b16 %v2893
    %v3612 = vunpack.c.l.b16 %v2894
    %v3613 = vunpack.c.h.b16 %v2894
    %v3614 = vunpack.c.l.b16 %v2895
    %v3615 = vunpack.c.h.b16 %v2895
    %v3616 = vunpack.c.l.b16 %v2896
    %v3617 = vunpack.c.h.b16 %v2896
    %v3618 = vunpack.c.l.b16 %v2897
    %v3619 = vunpack.c.h.b16 %v2897
    %v3620 = vunpack.c.l.b16 %v2898
    %v3621 = vunpack.c.h.b16 %v2898
    %v3622 = vunpack.c.l.b16 %v2899
    %v3623 = vunpack.c.h.b16 %v2899
    %v3624 = vunpack.c.l.b16 %v2900
    %v3625 = vunpack.c.h.b16 %v2900
    %v3626 = vunpack.c.l.b16 %v2901
    %v3627 = vunpack.c.h.b16 %v2901
    %v3628 = vunpack.c.l.b16 %v2902
    %v3629 = vunpack.c.h.b16 %v2902
    %v3630 = vunpack.c.l.b16 %v2903
    %v3631 = vunpack.c.h.b16 %v2903
    %v3632 = vunpack.c.l.b16 %v2904
    %v3633 = vunpack.c.h.b16 %v2904
    %v3634 = vunpack.c.l.b16 %v2905
    %v3635 = vunpack.c.h.b16 %v2905
    %v3636 = vunpack.c.l.b16 %v2906
    %v3637 = vunpack.c.h.b16 %v2906
    %v3638 = vunpack.c.l.b16 %v2907
    %v3639 = vunpack.c.h.b16 %v2907
    %v3640 = vunpack.c.l.b16 %v2908
    %v3641 = vunpack.c.h.b16 %v2908
    %v3642 = vunpack.c.l.b16 %v2909
    %v3643 = vunpack.c.h.b16 %v2909
    %v3644 = vunpack.c.l.b16 %v2910
    %v3645 = vunpack.c.h.b16 %v2910
    %v3646 = vunpack.c.l.b16 %v2911
    %v3647 = vunpack.c.h.b16 %v2911
    %v3648 = vunpack.c.l.b16 %v2912
    %v3649 = vunpack.c.h.b16 %v2912
    %v3650 = vunpack.c.l.b16 %v2913
    %v3651 = vunpack.c.h.b16 %v2913
    %v3652 = vunpack.c.l.b16 %v2914
    %v3653 = vunpack.c.h.b16 %v2914
    %v3654 = vunpack.c.l.b16 %v2915
    %v3655 = vunpack.c.h.b16 %v2915
    %v3656 = vunpack.c.l.b16 %v2916
    %v3657 = vunpack.c.h.b16 %v2916
    %v3658 = vunpack.c.l.b16 %v2917
    %v3659 = vunpack.c.h.b16 %v2917
    %v3660 = vunpack.c.l.b16 %v2918
    %v3661 = vunpack.c.h.b16 %v2918
    %v3662 = vunpack.c.l.b16 %v2919
    %v3663 = vunpack.c.h.b16 %v2919
    %v3664 = vunpack.c.l.b16 %v2920
    %v3665 = vunpack.c.h.b16 %v2920
    %v3666 = vunpack.c.l.b16 %v2921
    %v3667 = vunpack.c.h.b16 %v2921
    %v3668 = vunpack.c.l.b16 %v2922
    %v3669 = vunpack.c.h.b16 %v2922
    %v3670 = vunpack.c.l.b16 %v2923
    %v3671 = vunpack.c.h.b16 %v2923
    %v3672 = vunpack.c.l.b16 %v2924
    %v3673 = vunpack.c.h.b16 %v2924
    %v3674 = vunpack.c.l.b16 %v2925
    %v3675 = vunpack.c.h.b16 %v2925
    %v3676 = vunpack.c.l.b16 %v2926
    %v3677 = vunpack.c.h.b16 %v2926
    %v3678 = vunpack.c.l.b16 %v2927
    %v3679 = vunpack.c.h.b16 %v2927
    %v3680 = vunpack.c.l.b16 %v2928
    %v3681 = vunpack.c.h.b16 %v2928
    %v3682 = vunpack.c.l.b16 %v2929
    %v3683 = vunpack.c.h.b16 %v2929
    %v3684 = vunpack.c.l.b16 %v2930
    %v3685 = vunpack.c.h.b16 %v2930
    %v3686 = vunpack.c.l.b16 %v2931
    %v3687 = vunpack.c.h.b16 %v2931
    %v3688 = vunpack.c.l.b16 %v2932
    %v3689 = vunpack.c.h.b16 %v2932
    %v3690 = vunpack.c.l.b16 %v2933
    %v3691 = vunpack.c.h.b16 %v2933
    %v3692 = vunpack.c.l.b16 %v2934
    %v3693 = vunpack.c.h.b16 %v2934
    %v3694 = vunpack.c.l.b16 %v2935
    %v3695 = vunpack.c.h.b16 %v2935
    %v3696 = vunpack.c.l.b16 %v2936
    %v3697 = vunpack.c.h.b16 %v2936
    %v3698 = vunpack.c.l.b16 %v2937
    %v3699 = vunpack.c.h.b16 %v2937
    %v3700 = vunpack.c.l.b16 %v2938
    %v3701 = vunpack.c.h.b16 %v2938
    %v3702 = vunpack.c.l.b16 %v2939
    %v3703 = vunpack.c.h.b16 %v2939
    %v3704 = vunpack.c.l.b16 %v2940
    %v3705 = vunpack.c.h.b16 %v2940
    %v3706 = vunpack.c.l.b16 %v2941
    %v3707 = vunpack.c.h.b16 %v2941
    %v3708 = vunpack.c.l.b16 %v2942
    %v3709 = vunpack.c.h.b16 %v2942
    %v3710 = vunpack.c.l.b16 %v2943
    %v3711 = vunpack.c.h.b16 %v2943
    %v3712 = vunpack.c.l.b16 %v2944
    %v3713 = vunpack.c.h.b16 %v2944
    %v3714 = vunpack.c.l.b16 %v2945
    %v3715 = vunpack.c.h.b16 %v2945
    %v3716 = vunpack.c.l.b16 %v2946
    %v3717 = vunpack.c.h.b16 %v2946
    %v3718 = vunpack.c.l.b16 %v2947
    %v3719 = vunpack.c.h.b16 %v2947
    %v3720 = vunpack.c.l.b16 %v2948
    %v3721 = vunpack.c.h.b16 %v2948
    %v3722 = vunpack.c.l.b16 %v2949
    %v3723 = vunpack.c.h.b16 %v2949
    %v3724 = vunpack.c.l.b16 %v2950
    %v3725 = vunpack.c.h.b16 %v2950
    %v3726 = vunpack.c.l.b16 %v2951
    %v3727 = vunpack.c.h.b16 %v2951
    %v3728 = vunpack.c.l.b16 %v2952
    %v3729 = vunpack.c.h.b16 %v2952
    %v3730 = vunpack.c.l.b16 %v2953
    %v3731 = vunpack.c.h.b16 %v2953
    %v3732 = vunpack.c.l.b16 %v2954
    %v3733 = vunpack.c.h.b16 %v2954
    %v3734 = vunpack.c.l.b16 %v2955
    %v3735 = vunpack.c.h.b16 %v2955
    %v3736 = vunpack.c.l.b16 %v2956
    %v3737 = vunpack.c.h.b16 %v2956
    %v3738 = vunpack.c.l.b16 %v2957
    %v3739 = vunpack.c.h.b16 %v2957
    %v3740 = vunpack.c.l.b16 %v2958
    %v3741 = vunpack.c.h.b16 %v2958
    %v3742 = vunpack.c.l.b16 %v2959
    %v3743 = vunpack.c.h.b16 %v2959
    %v3744 = vunpack.c.l.b16 %v2960
    %v3745 = vunpack.c.h.b16 %v2960
    %v3746 = vunpack.c.l.b16 %v2961
    %v3747 = vunpack.c.h.b16 %v2961
    %v3748 = vunpack.c.l.b16 %v2962
    %v3749 = vunpack.c.h.b16 %v2962
    %v3750 = vunpack.c.l.b16 %v2963
    %v3751 = vunpack.c.h.b16 %v2963
    %v3752 = vunpack.c.l.b16 %v2964
    %v3753 = vunpack.c.h.b16 %v2964
    %v3754 = vunpack.c.l.b16 %v2965
    %v3755 = vunpack.c.h.b16 %v2965
    %v3756 = vpack.c.b16 %v3248, %v3244
    %v3757 = vpack.c.b16 %v3249, %v3245
    %v3758 = vpack.c.b16 %v3250, %v3246
    %v3759 = vpack.c.b16 %v3251, %v3247
    %v3760 = vpack.c.b16 %v3256, %v3252
    %v3761 = vpack.c.b16 %v3257, %v3253
    %v3762 = vpack.c.b16 %v3258, %v3254
    %v3763 = vpack.c.b16 %v3259, %v3255
    %v3764 = vpack.c.b16 %v3264, %v3260
    %v3765 = vpack.c.b16 %v3265, %v3261
    %v3766 = vpack.c.b16 %v3266, %v3262
    %v3767 = vpack.c.b16 %v3267, %v3263
    %v3768 = vpack.c.b16 %v3272, %v3268
    %v3769 = vpack.c.b16 %v3273, %v3269
    %v3770 = vpack.c.b16 %v3274, %v3270
    %v3771 = vpack.c.b16 %v3275, %v3271
    %v3772 = vpack.c.b16 %v3280, %v3276
    %v3773 = vpack.c.b16 %v3281, %v3277
    %v3774 = vpack.c.b16 %v3282, %v3278
    %v3775 = vpack.c.b16 %v3283, %v3279
    %v3776 = vpack.c.b16 %v3288, %v3284
    %v3777 = vpack.c.b16 %v3289, %v3285
    %v3778 = vpack.c.b16 %v3290, %v3286
    %v3779 = vpack.c.b16 %v3291, %v3287
    %v3780 = vpack.c.b16 %v3296, %v3292
    %v3781 = vpack.c.b16 %v3297, %v3293
    %v3782 = vpack.c.b16 %v3298, %v3294
    %v3783 = vpack.c.b16 %v3299, %v3295
    %v3784 = vpack.c.b16 %v3304, %v3300
    %v3785 = vpack.c.b16 %v3305, %v3301
    %v3786 = vpack.c.b16 %v3306, %v3302
    %v3787 = vpack.c.b16 %v3307, %v3303
    %v3788 = vpack.c.b16 %v3312, %v3308
    %v3789 = vpack.c.b16 %v3313, %v3309
    %v3790 = vpack.c.b16 %v3314, %v3310
    %v3791 = vpack.c.b16 %v3315, %v3311
    %v3792 = vpack.c.b16 %v3320, %v3316
    %v3793 = vpack.c.b16 %v3321, %v3317
    %v3794 = vpack.c.b16 %v3322, %v3318
    %v3795 = vpack.c.b16 %v3323, %v3319
    %v3796 = vpack.c.b16 %v3328, %v3324
    %v3797 = vpack.c.b16 %v3329, %v3325
    %v3798 = vpack.c.b16 %v3330, %v3326
    %v3799 = vpack.c.b16 %v3331, %v3327
    %v3800 = vpack.c.b16 %v3336, %v3332
    %v3801 = vpack.c.b16 %v3337, %v3333
    %v3802 = vpack.c.b16 %v3338, %v3334
    %v3803 = vpack.c.b16 %v3339, %v3335
    %v3804 = vpack.c.b16 %v3344, %v3340
    %v3805 = vpack.c.b16 %v3345, %v3341
    %v3806 = vpack.c.b16 %v3346, %v3342
    %v3807 = vpack.c.b16 %v3347, %v3343
    %v3808 = vpack.c.b16 %v3352, %v3348
    %v3809 = vpack.c.b16 %v3353, %v3349
    %v3810 = vpack.c.b16 %v3354, %v3350
    %v3811 = vpack.c.b16 %v3355, %v3351
    %v3812 = vpack.c.b16 %v3360, %v3356
    %v3813 = vpack.c.b16 %v3361, %v3357
    %v3814 = vpack.c.b16 %v3362, %v3358
    %v3815 = vpack.c.b16 %v3363, %v3359
    %v3816 = vpack.c.b16 %v3368, %v3364
    %v3817 = vpack.c.b16 %v3369, %v3365
    %v3818 = vpack.c.b16 %v3370, %v3366
    %v3819 = vpack.c.b16 %v3371, %v3367
    %v3820 = vpack.c.b16 %v3376, %v3372
    %v3821 = vpack.c.b16 %v3377, %v3373
    %v3822 = vpack.c.b16 %v3378, %v3374
    %v3823 = vpack.c.b16 %v3379, %v3375
    %v3824 = vpack.c.b16 %v3384, %v3380
    %v3825 = vpack.c.b16 %v3385, %v3381
    %v3826 = vpack.c.b16 %v3386, %v3382
    %v3827 = vpack.c.b16 %v3387, %v3383
    %v3828 = vpack.c.b16 %v3392, %v3388
    %v3829 = vpack.c.b16 %v3393, %v3389
    %v3830 = vpack.c.b16 %v3394, %v3390
    %v3831 = vpack.c.b16 %v3395, %v3391
    %v3832 = vpack.c.b16 %v3400, %v3396
    %v3833 = vpack.c.b16 %v3401, %v3397
    %v3834 = vpack.c.b16 %v3402, %v3398
    %v3835 = vpack.c.b16 %v3403, %v3399
    %v3836 = vpack.c.b16 %v3408, %v3404
    %v3837 = vpack.c.b16 %v3409, %v3405
    %v3838 = vpack.c.b16 %v3410, %v3406
    %v3839 = vpack.c.b16 %v3411, %v3407
    %v3840 = vpack.c.b16 %v3416, %v3412
    %v3841 = vpack.c.b16 %v3417, %v3413
    %v3842 = vpack.c.b16 %v3418, %v3414
    %v3843 = vpack.c.b16 %v3419, %v3415
    %v3844 = vpack.c.b16 %v3424, %v3420
    %v3845 = vpack.c.b16 %v3425, %v3421
    %v3846 = vpack.c.b16 %v3426, %v3422
    %v3847 = vpack.c.b16 %v3427, %v3423
    %v3848 = vpack.c.b16 %v3432, %v3428
    %v3849 = vpack.c.b16 %v3433, %v3429
    %v3850 = vpack.c.b16 %v3434, %v3430
    %v3851 = vpack.c.b16 %v3435, %v3431
    %v3852 = vpack.c.b16 %v3440, %v3436
    %v3853 = vpack.c.b16 %v3441, %v3437
    %v3854 = vpack.c.b16 %v3442, %v3438
    %v3855 = vpack.c.b16 %v3443, %v3439
    %v3856 = vpack.c.b16 %v3448, %v3444
    %v3857 = vpack.c.b16 %v3449, %v3445
    %v3858 = vpack.c.b16 %v3450, %v3446
    %v3859 = vpack.c.b16 %v3451, %v3447
    %v3860 = vpack.c.b16 %v3456, %v3452
    %v3861 = vpack.c.b16 %v3457, %v3453
    %v3862 = vpack.c.b16 %v3458, %v3454
    %v3863 = vpack.c.b16 %v3459, %v3455
    %v3864 = vpack.c.b16 %v3464, %v3460
    %v3865 = vpack.c.b16 %v3465, %v3461
    %v3866 = vpack.c.b16 %v3466, %v3462
    %v3867 = vpack.c.b16 %v3467, %v3463
    %v3868 = vpack.c.b16 %v3472, %v3468
    %v3869 = vpack.c.b16 %v3473, %v3469
    %v3870 = vpack.c.b16 %v3474, %v3470
    %v3871 = vpack.c.b16 %v3475, %v3471
    %v3872 = vpack.c.b16 %v3480, %v3476
    %v3873 = vpack.c.b16 %v3481, %v3477
    %v3874 = vpack.c.b16 %v3482, %v3478
    %v3875 = vpack.c.b16 %v3483, %v3479
    %v3876 = vpack.c.b16 %v3488, %v3484
    %v3877 = vpack.c.b16 %v3489, %v3485
    %v3878 = vpack.c.b16 %v3490, %v3486
    %v3879 = vpack.c.b16 %v3491, %v3487
    %v3880 = vpack.c.b16 %v3496, %v3492
    %v3881 = vpack.c.b16 %v3497, %v3493
    %v3882 = vpack.c.b16 %v3498, %v3494
    %v3883 = vpack.c.b16 %v3499, %v3495
    %v3884 = vpack.c.b16 %v3504, %v3500
    %v3885 = vpack.c.b16 %v3505, %v3501
    %v3886 = vpack.c.b16 %v3506, %v3502
    %v3887 = vpack.c.b16 %v3507, %v3503
    %v3888 = vpack.c.b16 %v3512, %v3508
    %v3889 = vpack.c.b16 %v3513, %v3509
    %v3890 = vpack.c.b16 %v3514, %v3510
    %v3891 = vpack.c.b16 %v3515, %v3511
    %v3892 = vpack.c.b16 %v3520, %v3516
    %v3893 = vpack.c.b16 %v3521, %v3517
    %v3894 = vpack.c.b16 %v3522, %v3518
    %v3895 = vpack.c.b16 %v3523, %v3519
    %v3896 = vpack.c.b16 %v3528, %v3524
    %v3897 = vpack.c.b16 %v3529, %v3525
    %v3898 = vpack.c.b16 %v3530, %v3526
    %v3899 = vpack.c.b16 %v3531, %v3527
    %v3900 = vpack.c.b16 %v3536, %v3532
    %v3901 = vpack.c.b16 %v3537, %v3533
    %v3902 = vpack.c.b16 %v3538, %v3534
    %v3903 = vpack.c.b16 %v3539, %v3535
    %v3904 = vpack.c.b16 %v3544, %v3540
    %v3905 = vpack.c.b16 %v3545, %v3541
    %v3906 = vpack.c.b16 %v3546, %v3542
    %v3907 = vpack.c.b16 %v3547, %v3543
    %v3908 = vpack.c.b16 %v3552, %v3548
    %v3909 = vpack.c.b16 %v3553, %v3549
    %v3910 = vpack.c.b16 %v3554, %v3550
    %v3911 = vpack.c.b16 %v3555, %v3551
    %v3912 = vpack.c.b16 %v3560, %v3556
    %v3913 = vpack.c.b16 %v3561, %v3557
    %v3914 = vpack.c.b16 %v3562, %v3558
    %v3915 = vpack.c.b16 %v3563, %v3559
    %v3916 = vpack.c.b16 %v3568, %v3564
    %v3917 = vpack.c.b16 %v3569, %v3565
    %v3918 = vpack.c.b16 %v3570, %v3566
    %v3919 = vpack.c.b16 %v3571, %v3567
    %v3920 = vpack.c.b16 %v3576, %v3572
    %v3921 = vpack.c.b16 %v3577, %v3573
    %v3922 = vpack.c.b16 %v3578, %v3574
    %v3923 = vpack.c.b16 %v3579, %v3575
    %v3924 = vpack.c.b16 %v3584, %v3580
    %v3925 = vpack.c.b16 %v3585, %v3581
    %v3926 = vpack.c.b16 %v3586, %v3582
    %v3927 = vpack.c.b16 %v3587, %v3583
    %v3928 = vpack.c.b16 %v3592, %v3588
    %v3929 = vpack.c.b16 %v3593, %v3589
    %v3930 = vpack.c.b16 %v3594, %v3590
    %v3931 = vpack.c.b16 %v3595, %v3591
    %v3932 = vpack.c.b16 %v3600, %v3596
    %v3933 = vpack.c.b16 %v3601, %v3597
    %v3934 = vpack.c.b16 %v3602, %v3598
    %v3935 = vpack.c.b16 %v3603, %v3599
    %v3936 = vpack.c.b16 %v3608, %v3604
    %v3937 = vpack.c.b16 %v3609, %v3605
    %v3938 = vpack.c.b16 %v3610, %v3606
    %v3939 = vpack.c.b16 %v3611, %v3607
    %v3940 = vpack.c.b16 %v3616, %v3612
    %v3941 = vpack.c.b16 %v3617, %v3613
    %v3942 = vpack.c.b16 %v3618, %v3614
    %v3943 = vpack.c.b16 %v3619, %v3615
    %v3944 = vpack.c.b16 %v3624, %v3620
    %v3945 = vpack.c.b16 %v3625, %v3621
    %v3946 = vpack.c.b16 %v3626, %v3622
    %v3947 = vpack.c.b16 %v3627, %v3623
    %v3948 = vpack.c.b16 %v3632, %v3628
    %v3949 = vpack.c.b16 %v3633, %v3629
    %v3950 = vpack.c.b16 %v3634, %v3630
    %v3951 = vpack.c.b16 %v3635, %v3631
    %v3952 = vpack.c.b16 %v3640, %v3636
    %v3953 = vpack.c.b16 %v3641, %v3637
    %v3954 = vpack.c.b16 %v3642, %v3638
    %v3955 = vpack.c.b16 %v3643, %v3639
    %v3956 = vpack.c.b16 %v3648, %v3644
    %v3957 = vpack.c.b16 %v3649, %v3645
    %v3958 = vpack.c.b16 %v3650, %v3646
    %v3959 = vpack.c.b16 %v3651, %v3647
    %v3960 = vpack.c.b16 %v3656, %v3652
    %v3961 = vpack.c.b16 %v3657, %v3653
    %v3962 = vpack.c.b16 %v3658, %v3654
    %v3963 = vpack.c.b16 %v3659, %v3655
    %v3964 = vpack.c.b16 %v3664, %v3660
    %v3965 = vpack.c.b16 %v3665, %v3661
    %v3966 = vpack.c.b16 %v3666, %v3662
    %v3967 = vpack.c.b16 %v3667, %v3663
    %v3968 = vpack.c.b16 %v3672, %v3668
    %v3969 = vpack.c.b16 %v3673, %v3669
    %v3970 = vpack.c.b16 %v3674, %v3670
    %v3971 = vpack.c.b16 %v3675, %v3671
    %v3972 = vpack.c.b16 %v3680, %v3676
    %v3973 = vpack.c.b16 %v3681, %v3677
    %v3974 = vpack.c.b16 %v3682, %v3678
    %v3975 = vpack.c.b16 %v3683, %v3679
    %v3976 = vpack.c.b16 %v3688, %v3684
    %v3977 = vpack.c.b16 %v3689, %v3685
    %v3978 = vpack.c.b16 %v3690, %v3686
    %v3979 = vpack.c.b16 %v3691, %v3687
    %v3980 = vpack.c.b16 %v3696, %v3692
    %v3981 = vpack.c.b16 %v3697, %v3693
    %v3982 = vpack.c.b16 %v3698, %v3694
    %v3983 = vpack.c.b16 %v3699, %v3695
    %v3984 = vpack.c.b16 %v3704, %v3700
    %v3985 = vpack.c.b16 %v3705, %v3701
    %v3986 = vpack.c.b16 %v3706, %v3702
    %v3987 = vpack.c.b16 %v3707, %v3703
    %v3988 = vpack.c.b16 %v3712, %v3708
    %v3989 = vpack.c.b16 %v3713, %v3709
    %v3990 = vpack.c.b16 %v3714, %v3710
    %v3991 = vpack.c.b16 %v3715, %v3711
    %v3992 = vpack.c.b16 %v3720, %v3716
    %v3993 = vpack.c.b16 %v3721, %v3717
    %v3994 = vpack.c.b16 %v3722, %v3718
    %v3995 = vpack.c.b16 %v3723, %v3719
    %v3996 = vpack.c.b16 %v3728, %v3724
    %v3997 = vpack.c.b16 %v3729, %v3725
    %v3998 = vpack.c.b16 %v3730, %v3726
    %v3999 = vpack.c.b16 %v3731, %v3727
    %v4000 = vpack.c.b16 %v3736, %v3732
    %v4001 = vpack.c.b16 %v3737, %v3733
    %v4002 = vpack.c.b16 %v3738, %v3734
    %v4003 = vpack.c.b16 %v3739, %v3735
    %v4004 = vpack.c.b16 %v3744, %v3740
    %v4005 = vpack.c.b16 %v3745, %v3741
    %v4006 = vpack.c.b16 %v3746, %v3742
    %v4007 = vpack.c.b16 %v3747, %v3743
    %v4008 = vpack.c.b16 %v3752, %v3748
    %v4009 = vpack.c.b16 %v3753, %v3749
    %v4010 = vpack.c.b16 %v3754, %v3750
    %v4011 = vpack.c.b16 %v3755, %v3751
    %4268 = vmatprep.subr.bf16.mxu0 %v3785
    %4269 = vmatpush1.bf16.msra.mxu0 %v3784
    %4270 = vmatprep.subr.bf16.mxu0 %v3781
    %4271 = vmatpush1.bf16.msra.mxu0 %v3780
    %4272 = vmatprep.subr.bf16.mxu0 %v3777
    %4273 = vmatpush1.bf16.msra.mxu0 %v3776
    %4274 = vmatprep.subr.bf16.mxu0 %v3773
    %4275 = vmatpush1.bf16.msra.mxu0 %v3772
    %4276 = vmatprep.subr.bf16.mxu0 %v3769
    %4277 = vmatpush1.bf16.msra.mxu0 %v3768
    %4278 = vmatprep.subr.bf16.mxu0 %v3765
    %4279 = vmatpush1.bf16.msra.mxu0 %v3764
    %4280 = vmatprep.subr.bf16.mxu0 %v3761
    %4281 = vmatpush1.bf16.msra.mxu0 %v3760
    %4282 = vmatprep.subr.bf16.mxu0 %v3757
    %4283 = vmatpush1.bf16.msra.mxu0 %v3756
    %4284 = vmatprep.subr.bf16.mxu0 %v3817
    %4285 = vmatpush2.bf16.msra.mxu0 %v3816
    %4286 = vmatprep.subr.bf16.mxu0 %v3813
    %4287 = vmatpush2.bf16.msra.mxu0 %v3812
    %4288 = vmatprep.subr.bf16.mxu0 %v3809
    %4289 = vmatpush2.bf16.msra.mxu0 %v3808
    %4290 = vmatprep.subr.bf16.mxu0 %v3805
    %4291 = vmatpush2.bf16.msra.mxu0 %v3804
    %4292 = vmatprep.subr.bf16.mxu0 %v3801
    %4293 = vmatpush2.bf16.msra.mxu0 %v3800
    %4294 = vmatprep.subr.bf16.mxu0 %v3797
    %4295 = vmatpush2.bf16.msra.mxu0 %v3796
    %4296 = vmatprep.subr.bf16.mxu0 %v3793
    %4297 = vmatpush2.bf16.msra.mxu0 %v3792
    %4298 = vmatprep.subr.bf16.mxu0 %v3789
    %4299 = vmatpush2.bf16.msra.mxu0 %v3788
    %4300 = vmatprep.mubr.bf16.mxu0 %v2703
    %4301 = vmatmul.mubr.bf16.gmra.mxu0 %v2702
    %v4302 = vpop.f32.mrf.mxu0
    %v4303 = vadd.f32 %v2971, %v4302
    %v4304 = vpop.f32.mrf.mxu0
    %v4305 = vadd.f32 %v2975, %v4304
    %v4306 = vpop.f32.mrf.mxu0
    %v4307 = vadd.f32 %v2971, %v4306
    %v4308 = vpop.f32.mrf.mxu0
    %v4309 = vadd.f32 %v2975, %v4308
    %4310 = vdwg.mxu0
    %4311 = vmatprep.subr.bf16.mxu0 %v3849
    %4312 = vmatpush1.bf16.msra.mxu0 %v3848
    %4313 = vmatprep.subr.bf16.mxu0 %v3845
    %4314 = vmatpush1.bf16.msra.mxu0 %v3844
    %4315 = vmatprep.subr.bf16.mxu0 %v3841
    %4316 = vmatpush1.bf16.msra.mxu0 %v3840
    %4317 = vmatprep.subr.bf16.mxu0 %v3837
    %4318 = vmatpush1.bf16.msra.mxu0 %v3836
    %4319 = vmatprep.subr.bf16.mxu0 %v3833
    %4320 = vmatpush1.bf16.msra.mxu0 %v3832
    %4321 = vmatprep.subr.bf16.mxu0 %v3829
    %4322 = vmatpush1.bf16.msra.mxu0 %v3828
    %4323 = vmatprep.subr.bf16.mxu0 %v3825
    %4324 = vmatpush1.bf16.msra.mxu0 %v3824
    %4325 = vmatprep.subr.bf16.mxu0 %v3821
    %4326 = vmatpush1.bf16.msra.mxu0 %v3820
    %4327 = vmatprep.subr.bf16.mxu0 %v3881
    %4328 = vmatpush2.bf16.msra.mxu0 %v3880
    %4329 = vmatprep.subr.bf16.mxu0 %v3877
    %4330 = vmatpush2.bf16.msra.mxu0 %v3876
    %4331 = vmatprep.subr.bf16.mxu0 %v3873
    %4332 = vmatpush2.bf16.msra.mxu0 %v3872
    %4333 = vmatprep.subr.bf16.mxu0 %v3869
    %4334 = vmatpush2.bf16.msra.mxu0 %v3868
    %4335 = vmatprep.subr.bf16.mxu0 %v3865
    %4336 = vmatpush2.bf16.msra.mxu0 %v3864
    %4337 = vmatprep.subr.bf16.mxu0 %v3861
    %4338 = vmatpush2.bf16.msra.mxu0 %v3860
    %4339 = vmatprep.subr.bf16.mxu0 %v3857
    %4340 = vmatpush2.bf16.msra.mxu0 %v3856
    %4341 = vmatprep.subr.bf16.mxu0 %v3853
    %4342 = vmatpush2.bf16.msra.mxu0 %v3852
    %4343 = vmatprep.mubr.bf16.mxu0 %v2705
    %4344 = vmatmul.mubr.bf16.gmra.mxu0 %v2704
    %v4345 = vpop.f32.mrf.mxu0
    %v4346 = vadd.f32 %v4303, %v4345
    %v4347 = vpop.f32.mrf.mxu0
    %v4348 = vadd.f32 %v4305, %v4347
    %v4349 = vpop.f32.mrf.mxu0
    %v4350 = vadd.f32 %v4307, %v4349
    %v4351 = vpop.f32.mrf.mxu0
    %v4352 = vadd.f32 %v4309, %v4351
    %4353 = vdwg.mxu0
    %4354 = vmatprep.subr.bf16.mxu0 %v3913
    %4355 = vmatpush1.bf16.msra.mxu0 %v3912
    %4356 = vmatprep.subr.bf16.mxu0 %v3909
    %4357 = vmatpush1.bf16.msra.mxu0 %v3908
    %4358 = vmatprep.subr.bf16.mxu0 %v3905
    %4359 = vmatpush1.bf16.msra.mxu0 %v3904
    %4360 = vmatprep.subr.bf16.mxu0 %v3901
    %4361 = vmatpush1.bf16.msra.mxu0 %v3900
    %4362 = vmatprep.subr.bf16.mxu0 %v3897
    %4363 = vmatpush1.bf16.msra.mxu0 %v3896
    %4364 = vmatprep.subr.bf16.mxu0 %v3893
    %4365 = vmatpush1.bf16.msra.mxu0 %v3892
    %4366 = vmatprep.subr.bf16.mxu0 %v3889
    %4367 = vmatpush1.bf16.msra.mxu0 %v3888
    %4368 = vmatprep.subr.bf16.mxu0 %v3885
    %4369 = vmatpush1.bf16.msra.mxu0 %v3884
    %4370 = vmatprep.subr.bf16.mxu0 %v3945
    %4371 = vmatpush2.bf16.msra.mxu0 %v3944
    %4372 = vmatprep.subr.bf16.mxu0 %v3941
    %4373 = vmatpush2.bf16.msra.mxu0 %v3940
    %4374 = vmatprep.subr.bf16.mxu0 %v3937
    %4375 = vmatpush2.bf16.msra.mxu0 %v3936
    %4376 = vmatprep.subr.bf16.mxu0 %v3933
    %4377 = vmatpush2.bf16.msra.mxu0 %v3932
    %4378 = vmatprep.subr.bf16.mxu0 %v3929
    %4379 = vmatpush2.bf16.msra.mxu0 %v3928
    %4380 = vmatprep.subr.bf16.mxu0 %v3925
    %4381 = vmatpush2.bf16.msra.mxu0 %v3924
    %4382 = vmatprep.subr.bf16.mxu0 %v3921
    %4383 = vmatpush2.bf16.msra.mxu0 %v3920
    %4384 = vmatprep.subr.bf16.mxu0 %v3917
    %4385 = vmatpush2.bf16.msra.mxu0 %v3916
    %4386 = vmatprep.mubr.bf16.mxu0 %v2707
    %4387 = vmatmul.mubr.bf16.gmra.mxu0 %v2706
    %v4388 = vpop.f32.mrf.mxu0
    %v4389 = vadd.f32 %v4346, %v4388
    %v4390 = vpop.f32.mrf.mxu0
    %v4391 = vadd.f32 %v4348, %v4390
    %v4392 = vpop.f32.mrf.mxu0
    %v4393 = vadd.f32 %v4350, %v4392
    %v4394 = vpop.f32.mrf.mxu0
    %v4395 = vadd.f32 %v4352, %v4394
    %4396 = vdwg.mxu0
    %4397 = vmatprep.subr.bf16.mxu0 %v3977
    %4398 = vmatpush1.bf16.msra.mxu0 %v3976
    %4399 = vmatprep.subr.bf16.mxu0 %v3973
    %4400 = vmatpush1.bf16.msra.mxu0 %v3972
    %4401 = vmatprep.subr.bf16.mxu0 %v3969
    %4402 = vmatpush1.bf16.msra.mxu0 %v3968
    %4403 = vmatprep.subr.bf16.mxu0 %v3965
    %4404 = vmatpush1.bf16.msra.mxu0 %v3964
    %4405 = vmatprep.subr.bf16.mxu0 %v3961
    %4406 = vmatpush1.bf16.msra.mxu0 %v3960
    %4407 = vmatprep.subr.bf16.mxu0 %v3957
    %4408 = vmatpush1.bf16.msra.mxu0 %v3956
    %4409 = vmatprep.subr.bf16.mxu0 %v3953
    %4410 = vmatpush1.bf16.msra.mxu0 %v3952
    %4411 = vmatprep.subr.bf16.mxu0 %v3949
    %4412 = vmatpush1.bf16.msra.mxu0 %v3948
    %4413 = vmatprep.subr.bf16.mxu0 %v4009
    %4414 = vmatpush2.bf16.msra.mxu0 %v4008
    %4415 = vmatprep.subr.bf16.mxu0 %v4005
    %4416 = vmatpush2.bf16.msra.mxu0 %v4004
    %4417 = vmatprep.subr.bf16.mxu0 %v4001
    %4418 = vmatpush2.bf16.msra.mxu0 %v4000
    %4419 = vmatprep.subr.bf16.mxu0 %v3997
    %4420 = vmatpush2.bf16.msra.mxu0 %v3996
    %4421 = vmatprep.subr.bf16.mxu0 %v3993
    %4422 = vmatpush2.bf16.msra.mxu0 %v3992
    %4423 = vmatprep.subr.bf16.mxu0 %v3989
    %4424 = vmatpush2.bf16.msra.mxu0 %v3988
    %4425 = vmatprep.subr.bf16.mxu0 %v3985
    %4426 = vmatpush2.bf16.msra.mxu0 %v3984
    %4427 = vmatprep.subr.bf16.mxu0 %v3981
    %4428 = vmatpush2.bf16.msra.mxu0 %v3980
    %4429 = vmatprep.mubr.bf16.mxu0 %v2709
    %4430 = vmatmul.mubr.bf16.gmra.mxu0 %v2708
    %v4431 = vpop.f32.mrf.mxu0
    %v4432 = vadd.f32 %v4389, %v4431
    %v4433 = vpop.f32.mrf.mxu0
    %v4434 = vadd.f32 %v4391, %v4433
    %v4435 = vpop.f32.mrf.mxu0
    %v4436 = vadd.f32 %v4393, %v4435
    %v4437 = vpop.f32.mrf.mxu0
    %v4438 = vadd.f32 %v4395, %v4437
    %4439 = vdwg.mxu0
    %4440 = vmatprep.subr.bf16.mxu0 %v3787
    %4441 = vmatpush1.bf16.msra.mxu0 %v3786
    %4442 = vmatprep.subr.bf16.mxu0 %v3783
    %4443 = vmatpush1.bf16.msra.mxu0 %v3782
    %4444 = vmatprep.subr.bf16.mxu0 %v3779
    %4445 = vmatpush1.bf16.msra.mxu0 %v3778
    %4446 = vmatprep.subr.bf16.mxu0 %v3775
    %4447 = vmatpush1.bf16.msra.mxu0 %v3774
    %4448 = vmatprep.subr.bf16.mxu0 %v3771
    %4449 = vmatpush1.bf16.msra.mxu0 %v3770
    %4450 = vmatprep.subr.bf16.mxu0 %v3767
    %4451 = vmatpush1.bf16.msra.mxu0 %v3766
    %4452 = vmatprep.subr.bf16.mxu0 %v3763
    %4453 = vmatpush1.bf16.msra.mxu0 %v3762
    %4454 = vmatprep.subr.bf16.mxu0 %v3759
    %4455 = vmatpush1.bf16.msra.mxu0 %v3758
    %4456 = vmatprep.subr.bf16.mxu0 %v3819
    %4457 = vmatpush2.bf16.msra.mxu0 %v3818
    %4458 = vmatprep.subr.bf16.mxu0 %v3815
    %4459 = vmatpush2.bf16.msra.mxu0 %v3814
    %4460 = vmatprep.subr.bf16.mxu0 %v3811
    %4461 = vmatpush2.bf16.msra.mxu0 %v3810
    %4462 = vmatprep.subr.bf16.mxu0 %v3807
    %4463 = vmatpush2.bf16.msra.mxu0 %v3806
    %4464 = vmatprep.subr.bf16.mxu0 %v3803
    %4465 = vmatpush2.bf16.msra.mxu0 %v3802
    %4466 = vmatprep.subr.bf16.mxu0 %v3799
    %4467 = vmatpush2.bf16.msra.mxu0 %v3798
    %4468 = vmatprep.subr.bf16.mxu0 %v3795
    %4469 = vmatpush2.bf16.msra.mxu0 %v3794
    %4470 = vmatprep.subr.bf16.mxu0 %v3791
    %4471 = vmatpush2.bf16.msra.mxu0 %v3790
    %4472 = vmatprep.mubr.bf16.mxu0 %v2703
    %4473 = vmatmul.mubr.bf16.gmra.mxu0 %v2702
    %v4474 = vpop.f32.mrf.mxu0
    %v4475 = vadd.f32 %v2979, %v4474
    %v4476 = vpop.f32.mrf.mxu0
    %v4477 = vadd.f32 %v2983, %v4476
    %v4478 = vpop.f32.mrf.mxu0
    %v4479 = vadd.f32 %v2979, %v4478
    %v4480 = vpop.f32.mrf.mxu0
    %v4481 = vadd.f32 %v2983, %v4480
    %4482 = vdwg.mxu0
    %4483 = vmatprep.subr.bf16.mxu0 %v3851
    %4484 = vmatpush1.bf16.msra.mxu0 %v3850
    %4485 = vmatprep.subr.bf16.mxu0 %v3847
    %4486 = vmatpush1.bf16.msra.mxu0 %v3846
    %4487 = vmatprep.subr.bf16.mxu0 %v3843
    %4488 = vmatpush1.bf16.msra.mxu0 %v3842
    %4489 = vmatprep.subr.bf16.mxu0 %v3839
    %4490 = vmatpush1.bf16.msra.mxu0 %v3838
    %4491 = vmatprep.subr.bf16.mxu0 %v3835
    %4492 = vmatpush1.bf16.msra.mxu0 %v3834
    %4493 = vmatprep.subr.bf16.mxu0 %v3831
    %4494 = vmatpush1.bf16.msra.mxu0 %v3830
    %4495 = vmatprep.subr.bf16.mxu0 %v3827
    %4496 = vmatpush1.bf16.msra.mxu0 %v3826
    %4497 = vmatprep.subr.bf16.mxu0 %v3823
    %4498 = vmatpush1.bf16.msra.mxu0 %v3822
    %4499 = vmatprep.subr.bf16.mxu0 %v3883
    %4500 = vmatpush2.bf16.msra.mxu0 %v3882
    %4501 = vmatprep.subr.bf16.mxu0 %v3879
    %4502 = vmatpush2.bf16.msra.mxu0 %v3878
    %4503 = vmatprep.subr.bf16.mxu0 %v3875
    %4504 = vmatpush2.bf16.msra.mxu0 %v3874
    %4505 = vmatprep.subr.bf16.mxu0 %v3871
    %4506 = vmatpush2.bf16.msra.mxu0 %v3870
    %4507 = vmatprep.subr.bf16.mxu0 %v3867
    %4508 = vmatpush2.bf16.msra.mxu0 %v3866
    %4509 = vmatprep.subr.bf16.mxu0 %v3863
    %4510 = vmatpush2.bf16.msra.mxu0 %v3862
    %4511 = vmatprep.subr.bf16.mxu0 %v3859
    %4512 = vmatpush2.bf16.msra.mxu0 %v3858
    %4513 = vmatprep.subr.bf16.mxu0 %v3855
    %4514 = vmatpush2.bf16.msra.mxu0 %v3854
    %4515 = vmatprep.mubr.bf16.mxu0 %v2705
    %4516 = vmatmul.mubr.bf16.gmra.mxu0 %v2704
    %v4517 = vpop.f32.mrf.mxu0
    %v4518 = vadd.f32 %v4475, %v4517
    %v4519 = vpop.f32.mrf.mxu0
    %v4520 = vadd.f32 %v4477, %v4519
    %v4521 = vpop.f32.mrf.mxu0
    %v4522 = vadd.f32 %v4479, %v4521
    %v4523 = vpop.f32.mrf.mxu0
    %v4524 = vadd.f32 %v4481, %v4523
    %4525 = vdwg.mxu0
    %4526 = vmatprep.subr.bf16.mxu0 %v3915
    %4527 = vmatpush1.bf16.msra.mxu0 %v3914
    %4528 = vmatprep.subr.bf16.mxu0 %v3911
    %4529 = vmatpush1.bf16.msra.mxu0 %v3910
    %4530 = vmatprep.subr.bf16.mxu0 %v3907
    %4531 = vmatpush1.bf16.msra.mxu0 %v3906
    %4532 = vmatprep.subr.bf16.mxu0 %v3903
    %4533 = vmatpush1.bf16.msra.mxu0 %v3902
    %4534 = vmatprep.subr.bf16.mxu0 %v3899
    %4535 = vmatpush1.bf16.msra.mxu0 %v3898
    %4536 = vmatprep.subr.bf16.mxu0 %v3895
    %4537 = vmatpush1.bf16.msra.mxu0 %v3894
    %4538 = vmatprep.subr.bf16.mxu0 %v3891
    %4539 = vmatpush1.bf16.msra.mxu0 %v3890
    %4540 = vmatprep.subr.bf16.mxu0 %v3887
    %4541 = vmatpush1.bf16.msra.mxu0 %v3886
    %4542 = vmatprep.subr.bf16.mxu0 %v3947
    %4543 = vmatpush2.bf16.msra.mxu0 %v3946
    %4544 = vmatprep.subr.bf16.mxu0 %v3943
    %4545 = vmatpush2.bf16.msra.mxu0 %v3942
    %4546 = vmatprep.subr.bf16.mxu0 %v3939
    %4547 = vmatpush2.bf16.msra.mxu0 %v3938
    %4548 = vmatprep.subr.bf16.mxu0 %v3935
    %4549 = vmatpush2.bf16.msra.mxu0 %v3934
    %4550 = vmatprep.subr.bf16.mxu0 %v3931
    %4551 = vmatpush2.bf16.msra.mxu0 %v3930
    %4552 = vmatprep.subr.bf16.mxu0 %v3927
    %4553 = vmatpush2.bf16.msra.mxu0 %v3926
    %4554 = vmatprep.subr.bf16.mxu0 %v3923
    %4555 = vmatpush2.bf16.msra.mxu0 %v3922
    %4556 = vmatprep.subr.bf16.mxu0 %v3919
    %4557 = vmatpush2.bf16.msra.mxu0 %v3918
    %4558 = vmatprep.mubr.bf16.mxu0 %v2707
    %4559 = vmatmul.mubr.bf16.gmra.mxu0 %v2706
    %v4560 = vpop.f32.mrf.mxu0
    %v4561 = vadd.f32 %v4518, %v4560
    %v4562 = vpop.f32.mrf.mxu0
    %v4563 = vadd.f32 %v4520, %v4562
    %v4564 = vpop.f32.mrf.mxu0
    %v4565 = vadd.f32 %v4522, %v4564
    %v4566 = vpop.f32.mrf.mxu0
    %v4567 = vadd.f32 %v4524, %v4566
    %4568 = vdwg.mxu0
    %4569 = vmatprep.subr.bf16.mxu0 %v3979
    %4570 = vmatpush1.bf16.msra.mxu0 %v3978
    %4571 = vmatprep.subr.bf16.mxu0 %v3975
    %4572 = vmatpush1.bf16.msra.mxu0 %v3974
    %4573 = vmatprep.subr.bf16.mxu0 %v3971
    %4574 = vmatpush1.bf16.msra.mxu0 %v3970
    %4575 = vmatprep.subr.bf16.mxu0 %v3967
    %4576 = vmatpush1.bf16.msra.mxu0 %v3966
    %4577 = vmatprep.subr.bf16.mxu0 %v3963
    %4578 = vmatpush1.bf16.msra.mxu0 %v3962
    %4579 = vmatprep.subr.bf16.mxu0 %v3959
    %4580 = vmatpush1.bf16.msra.mxu0 %v3958
    %4581 = vmatprep.subr.bf16.mxu0 %v3955
    %4582 = vmatpush1.bf16.msra.mxu0 %v3954
    %4583 = vmatprep.subr.bf16.mxu0 %v3951
    %4584 = vmatpush1.bf16.msra.mxu0 %v3950
    %4585 = vmatprep.subr.bf16.mxu0 %v4011
    %4586 = vmatpush2.bf16.msra.mxu0 %v4010
    %4587 = vmatprep.subr.bf16.mxu0 %v4007
    %4588 = vmatpush2.bf16.msra.mxu0 %v4006
    %4589 = vmatprep.subr.bf16.mxu0 %v4003
    %4590 = vmatpush2.bf16.msra.mxu0 %v4002
    %4591 = vmatprep.subr.bf16.mxu0 %v3999
    %4592 = vmatpush2.bf16.msra.mxu0 %v3998
    %4593 = vmatprep.subr.bf16.mxu0 %v3995
    %4594 = vmatpush2.bf16.msra.mxu0 %v3994
    %4595 = vmatprep.subr.bf16.mxu0 %v3991
    %4596 = vmatpush2.bf16.msra.mxu0 %v3990
    %4597 = vmatprep.subr.bf16.mxu0 %v3987
    %4598 = vmatpush2.bf16.msra.mxu0 %v3986
    %4599 = vmatprep.subr.bf16.mxu0 %v3983
    %4600 = vmatpush2.bf16.msra.mxu0 %v3982
    %4601 = vmatprep.mubr.bf16.mxu0 %v2709
    %4602 = vmatmul.mubr.bf16.gmra.mxu0 %v2708
    %v4603 = vpop.f32.mrf.mxu0
    %v4604 = vadd.f32 %v4561, %v4603
    %v4605 = vpop.f32.mrf.mxu0
    %v4606 = vadd.f32 %v4563, %v4605
    %v4607 = vpop.f32.mrf.mxu0
    %v4608 = vadd.f32 %v4565, %v4607
    %v4609 = vpop.f32.mrf.mxu0
    %v4610 = vadd.f32 %v4567, %v4609
    %4611 = vdwg.mxu0
    %4612 = vst [vmem:[#allocation2] sm:$0xff] %v4432
    %4613 = vst [vmem:[#allocation2 + $0x8] sm:$0xff] %v4434
    %4614 = vst [vmem:[#allocation2 + $0x10] sm:$0xff] %v4604
    %vm4615 = vcmask 949248
    %4616 = vst.msk [vmem:[#allocation2 + $0x18] sm:$0xff] %vm4615, %v4606
    %4617 = vst [vmem:[#allocation2 + $0x20] sm:$0xff] %v4436
    %4618 = vst [vmem:[#allocation2 + $0x28] sm:$0xff] %v4438
    %4619 = vst [vmem:[#allocation2 + $0x30] sm:$0xff] %v4608
    %4620 = vst.msk [vmem:[#allocation2 + $0x38] sm:$0xff] %vm4615, %v4610
    // Predicated region
    $region46: #{_forward.1} parent=1 // pred_check
      _
    $region47: #{_forward.1} parent=1 // pred_check_branch
      %4622 = sbr.rel (0) target = $region49
    $region48: #{_forward.1} parent=1 // pred_region
      %s4624 = ssub.s32 1024, 1024
      %4625 = vsyncadd [#allocation3], %s4624
      %s4626 = sshll.u32 [#allocation2], 4
      %s4627 = int_to_ptr.vmem [resolvable:$true] %s4626
      %4632 = dma.vmem_to_hbm [thread:$0]  %s4627, 1024, %s11, [#allocation3], 512, 512, 32
    $region49: #{_forward.1} parent=1 // pred_fallthru
      _
    // Predicated region
    $region50: #{_forward.1} parent=1 // pred_check
      _
    $region51: #{_forward.1} parent=1 // pred_check_branch
      %4634 = sbr.rel (0) target = $region53
    $region52: #{_forward.1} parent=1 // pred_region
      %4635 = dma.done [#allocation3], 1024
    $region53: #{_forward.1} parent=1 // pred_fallthru
      _
    %4636 = vsyncpa [#allocation3], 1

</llo_original>
